<compile_context>
chip_gen: v7x
topology: tpu7x:2x2x1
jax: 0.10.0
libtpu: 0.0.40
codegen_flags: <defaults>
</compile_context>

<pallas_src>
import math

import jax
import jax.numpy as jnp
import numpy as np
from jax import lax
from jax.experimental import pallas as pl
from jax.experimental.pallas import tpu as pltpu

IMAGE_SIZE = 16
PATCH = 4
GRID = IMAGE_SIZE // PATCH
WIDTH = 32
HEADS = 4
HEAD_DIM = WIDTH // HEADS
LAYERS = 2
MLP_DIM = 4 * WIDTH
LN_EPS = 1e-5
L_TOKENS = 1 + GRID * GRID          # 17 (CLS + patches)
HW = GRID * GRID                    # 16 patches per image
PATCH_DIM = 3 * PATCH * PATCH       # 48 = im2col row width


# --------------------------------------------------------------------------------------
# In-kernel math helpers (all f32, VPU/EUP)
# --------------------------------------------------------------------------------------
def _ln(x, g, b):
    mean = jnp.mean(x, axis=-1, keepdims=True)
    var = jnp.mean(jnp.square(x - mean), axis=-1, keepdims=True)
    return (x - mean) * lax.rsqrt(var + LN_EPS) * g + b


def _gelu_tanh(x):
    # TODO(synk): PyTorch nn.GELU default is erf; tanh approximation used (diff < 1e-3 here).
    c = math.sqrt(2.0 / math.pi)
    return 0.5 * x * (1.0 + jnp.tanh(c * (x + 0.044715 * x * x * x)))


# --------------------------------------------------------------------------------------
# Fused kernel: one grid step == one image (all layers)
# --------------------------------------------------------------------------------------
def _fused_vit_kernel(*refs):
    (patches_ref, conv_w_ref, cls_ref, pos_ref, lnpre_g_ref, lnpre_b_ref,
     ln1_g_ref, ln1_b_ref, qkv_w_ref, qkv_b_ref, outp_w_ref, outp_b_ref,
     ln2_g_ref, ln2_b_ref, fc_w_ref, fc_b_ref, proj_w_ref, proj_b_ref) = refs[:18]
    out_refs = refs[18:18 + LAYERS + 1]          # (LAYERS+1) outputs of shape (L, C)
    attn_sc = refs[18 + LAYERS + 1]              # VMEM scratch (L, C) f32

    out0_ref = out_refs[0]

    # ---- Stem: conv1 (stride==kernel, no bias) as an im2col matmul, CLS token,
    #      positional embedding, ln_pre.  Everything stays in VMEM.
    feat = jnp.dot(patches_ref[...], conv_w_ref[...],
                   preferred_element_type=jnp.float32)            # (HW, C) f32
    out0_ref[0:1, :] = cls_ref[...]                               # CLS row
    out0_ref[1:L_TOKENS, :] = feat                                # patch rows
    x = out0_ref[...] + pos_ref[...]                              # (L, C)
    x = _ln(x, lnpre_g_ref[...], lnpre_b_ref[...])
    out0_ref[...] = x                                             # save(0, ...)

    scale = 1.0 / math.sqrt(HEAD_DIM)

    for layer in range(LAYERS):                                   # unrolled (LAYERS == 2)
        # ---- Attention: ln1 -> fused qkv proj -> per-head softmax(QK^T)V -> out proj + res
        y = _ln(x, ln1_g_ref[layer], ln1_b_ref[layer])
        qkv = jnp.dot(y.astype(jnp.bfloat16), qkv_w_ref[layer],
                      preferred_element_type=jnp.float32) + qkv_b_ref[layer]   # (L, 3C) f32

        for hd in range(HEADS):                                   # head split via lane slices
            q = qkv[:, hd * HEAD_DIM:(hd + 1) * HEAD_DIM]
            k = qkv[:, WIDTH + hd * HEAD_DIM:WIDTH + (hd + 1) * HEAD_DIM]
            v = qkv[:, 2 * WIDTH + hd * HEAD_DIM:2 * WIDTH + (hd + 1) * HEAD_DIM]
            s = jnp.dot(q, k.T, preferred_element_type=jnp.float32) * scale    # (L, L)
            s = s - jnp.max(s, axis=-1, keepdims=True)
            p = jnp.exp(s)
            p = p * pl.reciprocal(jnp.sum(p, axis=-1, keepdims=True), approx=True)
            attn_sc[:, hd * HEAD_DIM:(hd + 1) * HEAD_DIM] = jnp.dot(
                p, v, preferred_element_type=jnp.float32)                      # (L, D)

        o = attn_sc[...]                                                       # (L, C)
        x = x + (jnp.dot(o.astype(jnp.bfloat16), outp_w_ref[layer],
                         preferred_element_type=jnp.float32) + outp_b_ref[layer])

        # ---- MLP: ln2 -> fc + gelu -> proj + residual
        y2 = _ln(x, ln2_g_ref[layer], ln2_b_ref[layer])
        h1 = jnp.dot(y2.astype(jnp.bfloat16), fc_w_ref[layer],
                     preferred_element_type=jnp.float32) + fc_b_ref[layer]      # (L, MLP)
        h1 = _gelu_tanh(h1)
        x = x + (jnp.dot(h1.astype(jnp.bfloat16), proj_w_ref[layer],
                         preferred_element_type=jnp.float32) + proj_b_ref[layer])

        out_refs[layer + 1][...] = x                                            # save(layer+1, ...)


# --------------------------------------------------------------------------------------
# Wrapper: one pallas_call for the whole forward
# --------------------------------------------------------------------------------------
def _full_spec(shape):
    nd = len(shape)
    return pl.BlockSpec(shape, lambda n, _nd=nd: (0,) * _nd)


@jax.jit
def _forward_stack(x_nchw, packed):
    """Returns a tuple of (LAYERS+1) arrays of shape (N, L, C) (feature after stem + each block)."""
    N = x_nchw.shape[0]

    # im2col for the stride==kernel conv (pure layout plumbing, tiny, done once in XLA).
    patches = x_nchw.reshape(N, 3, GRID, PATCH, GRID, PATCH)
    patches = patches.transpose(0, 2, 4, 1, 3, 5).reshape(N, HW, PATCH_DIM)

    in_arrays = (
        patches,
        packed["conv_w"], packed["cls"], packed["pos"],
        packed["lnpre_g"], packed["lnpre_b"],
        packed["ln1_g"], packed["ln1_b"],
        packed["qkv_w"], packed["qkv_b"],
        packed["outp_w"], packed["outp_b"],
        packed["ln2_g"], packed["ln2_b"],
        packed["fc_w"], packed["fc_b"],
        packed["proj_w"], packed["proj_b"],
    )

    in_specs = [pl.BlockSpec((None, HW, PATCH_DIM), lambda n: (n, 0, 0))]
    in_specs += [_full_spec(a.shape) for a in in_arrays[1:]]

    out_shape = tuple(jax.ShapeDtypeStruct((N, L_TOKENS, WIDTH), jnp.float32)
                      for _ in range(LAYERS + 1))
    out_specs = tuple(pl.BlockSpec((None, L_TOKENS, WIDTH), lambda n: (n, 0, 0))
                      for _ in range(LAYERS + 1))

    return pl.pallas_call(
        _fused_vit_kernel,
        grid=(N,),
        in_specs=in_specs,
        out_specs=out_specs,
        out_shape=out_shape,
        scratch_shapes=[pltpu.VMEM((L_TOKENS, WIDTH), jnp.float32)],
        compiler_params=pltpu.CompilerParams(dimension_semantics=("parallel",)),
    )(*in_arrays)


# --------------------------------------------------------------------------------------
# Model glue (parameter packing / output formatting, plain JAX)
# --------------------------------------------------------------------------------------
class ClipOutput(dict):
    def __init__(self, spacial_shape, *args, **kwargs):
        super().__init__(*args, **kwargs)
        self.spacial_shape = spacial_shape

    def save(self, idx, clip_feat):
        l, n, c = clip_feat.shape
        self[idx] = clip_feat[1:].transpose(1, 2, 0).reshape(n, c, *self.spacial_shape)
        self[f"{idx}_cls_token"] = clip_feat[0:1]


def init_params(key):
    ks = jax.random.split(key, 8 + LAYERS)

    def nrm(k, shape, scale=0.02):
        return scale * jax.random.normal(k, shape, jnp.float32)

    params = {
        "conv1_w": nrm(ks[0], (WIDTH, 3, PATCH, PATCH), WIDTH ** -0.5),  # OIHW, no bias
        "class_embedding": nrm(ks[1], (WIDTH,), WIDTH ** -0.5),
        "positional_embedding": nrm(ks[2], (L_TOKENS, WIDTH), WIDTH ** -0.5),
        "ln_pre_g": jnp.ones((WIDTH,), jnp.float32),
        "ln_pre_b": jnp.zeros((WIDTH,), jnp.float32),
        "resblocks": [],
    }
    for i in range(LAYERS):
        bk = jax.random.split(ks[8 + i], 6)
        params["resblocks"].append({
            "ln1_g": jnp.ones((WIDTH,), jnp.float32), "ln1_b": jnp.zeros((WIDTH,), jnp.float32),
            "in_proj_w": nrm(bk[0], (WIDTH, 3 * WIDTH)),     # (in, out); cols [q | k | v]
            "in_proj_b": nrm(bk[1], (3 * WIDTH,)),
            "out_proj_w": nrm(bk[2], (WIDTH, WIDTH)),
            "out_proj_b": jnp.zeros((WIDTH,), jnp.float32),
            "ln2_g": jnp.ones((WIDTH,), jnp.float32), "ln2_b": jnp.zeros((WIDTH,), jnp.float32),
            "fc_w": nrm(bk[3], (WIDTH, MLP_DIM)),
            "fc_b": jnp.zeros((MLP_DIM,), jnp.float32),
            "proj_w": nrm(bk[4], (MLP_DIM, WIDTH)),
            "proj_b": jnp.zeros((WIDTH,), jnp.float32),
        })
    return params


def pack_params(params):
    """One-time packing: stack per-layer weights on a leading layer axis; bf16 MXU operands."""
    def stack(name):
        return jnp.stack([blk[name] for blk in params["resblocks"]])

    return {
        "conv_w": params["conv1_w"].reshape(WIDTH, PATCH_DIM).T,           # (48, 32) f32
        "cls": params["class_embedding"].reshape(1, WIDTH),
        "pos": params["positional_embedding"],                             # (17, 32)
        "lnpre_g": params["ln_pre_g"].reshape(1, WIDTH),
        "lnpre_b": params["ln_pre_b"].reshape(1, WIDTH),
        "ln1_g": stack("ln1_g").reshape(LAYERS, 1, WIDTH),
        "ln1_b": stack("ln1_b").reshape(LAYERS, 1, WIDTH),
        "qkv_w": stack("in_proj_w").astype(jnp.bfloat16),                  # (Ly, 32, 96)
        "qkv_b": stack("in_proj_b").reshape(LAYERS, 1, 3 * WIDTH),
        "outp_w": stack("out_proj_w").astype(jnp.bfloat16),                # (Ly, 32, 32)
        "outp_b": stack("out_proj_b").reshape(LAYERS, 1, WIDTH),
        "ln2_g": stack("ln2_g").reshape(LAYERS, 1, WIDTH),
        "ln2_b": stack("ln2_b").reshape(LAYERS, 1, WIDTH),
        "fc_w": stack("fc_w").astype(jnp.bfloat16),                        # (Ly, 32, 128)
        "fc_b": stack("fc_b").reshape(LAYERS, 1, MLP_DIM),
        "proj_w": stack("proj_w").astype(jnp.bfloat16),                    # (Ly, 128, 32)
        "proj_b": stack("proj_b").reshape(LAYERS, 1, WIDTH),
    }


def feature_extractor_forward(x, packed):
    # TODO(synk): input_patchnorm branch raises NotImplementedError in the original module.
    N, Cin, H, W = x.shape
    h, w = H // PATCH, W // PATCH
    feats = _forward_stack(x, packed)                 # tuple of (N, L, C)
    outputs = ClipOutput(spacial_shape=(h, w))
    for idx, f in enumerate(feats):
        outputs.save(idx, f.transpose(1, 0, 2))       # present as (L, N, C) like torch
    return outputs


# --------------------------------------------------------------------------------------
# Pure-JAX reference (correctness check only)
# --------------------------------------------------------------------------------------
def _ref_ln(x, g, b):
    mean = x.mean(-1, keepdims=True)
    var = ((x - mean) ** 2).mean(-1, keepdims=True)
    return (x - mean) / jnp.sqrt(var + LN_EPS) * g + b


def _ref_forward(x, params):
    N = x.shape[0]
    feat = lax.conv_general_dilated(
        x, params["conv1_w"], window_strides=(PATCH, PATCH), padding="VALID",
        dimension_numbers=("NCHW", "OIHW", "NCHW"))
    feat = feat.reshape(N, WIDTH, GRID * GRID).transpose(0, 2, 1)
    cls = jnp.broadcast_to(params["class_embedding"][None, None, :], (N, 1, WIDTH))
    xs = jnp.concatenate([cls, feat], axis=1) + params["positional_embedding"][None]
    xs = _ref_ln(xs, params["ln_pre_g"], params["ln_pre_b"]).transpose(1, 0, 2)
    outs = [xs]
    for p in params["resblocks"]:
        L, Nn, C = xs.shape
        y = _ref_ln(xs, p["ln1_g"], p["ln1_b"])
        qkv = (y @ p["in_proj_w"] + p["in_proj_b"]).reshape(L, Nn, 3, HEADS, HEAD_DIM)
        q, k, v = (qkv[:, :, j].transpose(1, 2, 0, 3) for j in range(3))
        s = jnp.einsum("nhld,nhmd->nhlm", q, k) / math.sqrt(HEAD_DIM)
        a = jax.nn.softmax(s, axis=-1)
        o = jnp.einsum("nhlm,nhmd->nhld", a, v).transpose(2, 0, 1, 3).reshape(L, Nn, C)
        xs = xs + o @ p["out_proj_w"] + p["out_proj_b"]
        y2 = _ref_ln(xs, p["ln2_g"], p["ln2_b"])
        hm = y2 @ p["fc_w"] + p["fc_b"]
        c = math.sqrt(2.0 / math.pi)
        hm = 0.5 * hm * (1.0 + jnp.tanh(c * (hm + 0.044715 * hm ** 3)))
        xs = xs + hm @ p["proj_w"] + p["proj_b"]
        outs.append(xs)
    return outs


if __name__ == "__main__":
    key = jax.random.PRNGKey(0)
    pkey, xkey = jax.random.split(key)
    params = init_params(pkey)
    packed = pack_params(params)
    x = jax.random.normal(xkey, (2, 3, IMAGE_SIZE, IMAGE_SIZE), jnp.float32)

    outputs = feature_extractor_forward(x, packed)
    jax.block_until_ready(list(outputs.values()))

    # correctness check against the pure-JAX f32 reference
    ref_feats = _ref_forward(x, params)
    for i, rf in enumerate(ref_feats):
        n, c = rf.shape[1], rf.shape[2]
        np.testing.assert_allclose(
            np.asarray(outputs[i]),
            np.asarray(rf[1:].transpose(1, 2, 0).reshape(n, c, GRID, GRID)),
            atol=2e-2, rtol=2e-2)
        np.testing.assert_allclose(
            np.asarray(outputs[f"{i}_cls_token"]), np.asarray(rf[0:1]),
            atol=2e-2, rtol=2e-2)

    print("KERNEL_OK")
</pallas_src>

<mosaic_0001>
module attributes {stable_mosaic.version = 11 : i64} {
  func.func @_fused_vit_kernel(%arg0: i32, %arg1: memref<1x16x48xf32, #tpu.memory_space<vmem>>, %arg2: memref<48x32xf32, #tpu.memory_space<vmem>>, %arg3: memref<1x32xf32, #tpu.memory_space<vmem>>, %arg4: memref<17x32xf32, #tpu.memory_space<vmem>>, %arg5: memref<1x32xf32, #tpu.memory_space<vmem>>, %arg6: memref<1x32xf32, #tpu.memory_space<vmem>>, %arg7: memref<2x1x32xf32, #tpu.memory_space<vmem>>, %arg8: memref<2x1x32xf32, #tpu.memory_space<vmem>>, %arg9: memref<2x32x96xbf16, #tpu.memory_space<vmem>>, %arg10: memref<2x1x96xf32, #tpu.memory_space<vmem>>, %arg11: memref<2x32x32xbf16, #tpu.memory_space<vmem>>, %arg12: memref<2x1x32xf32, #tpu.memory_space<vmem>>, %arg13: memref<2x1x32xf32, #tpu.memory_space<vmem>>, %arg14: memref<2x1x32xf32, #tpu.memory_space<vmem>>, %arg15: memref<2x32x128xbf16, #tpu.memory_space<vmem>>, %arg16: memref<2x1x128xf32, #tpu.memory_space<vmem>>, %arg17: memref<2x128x32xbf16, #tpu.memory_space<vmem>>, %arg18: memref<2x1x32xf32, #tpu.memory_space<vmem>>, %arg19: memref<1x17x32xf32, #tpu.memory_space<vmem>>, %arg20: memref<1x17x32xf32, #tpu.memory_space<vmem>>, %arg21: memref<1x17x32xf32, #tpu.memory_space<vmem>>, %arg22: memref<17x32xf32, #tpu.memory_space<vmem>>) attributes {dimension_semantics = [#tpu.dimension_semantics<parallel>], iteration_bounds = array<i64: 2>, scalar_prefetch = 0 : i64, scratch_operands = 1 : i64, tpu.core_type = #tpu.core_type<tc>, window_params = [{transform_indices = @transform_0, window_bounds = array<i64: 1, 16, 48>}, {pipeline_mode = #tpu.pipeline_mode<synchronous>, transform_indices = @transform_1, window_bounds = array<i64: 48, 32>}, {pipeline_mode = #tpu.pipeline_mode<synchronous>, transform_indices = @transform_2, window_bounds = array<i64: 1, 32>}, {pipeline_mode = #tpu.pipeline_mode<synchronous>, transform_indices = @transform_3, window_bounds = array<i64: 17, 32>}, {pipeline_mode = #tpu.pipeline_mode<synchronous>, transform_indices = @transform_4, window_bounds = array<i64: 1, 32>}, {pipeline_mode = #tpu.pipeline_mode<synchronous>, transform_indices = @transform_5, window_bounds = array<i64: 1, 32>}, {pipeline_mode = #tpu.pipeline_mode<synchronous>, transform_indices = @transform_6, window_bounds = array<i64: 2, 1, 32>}, {pipeline_mode = #tpu.pipeline_mode<synchronous>, transform_indices = @transform_7, window_bounds = array<i64: 2, 1, 32>}, {pipeline_mode = #tpu.pipeline_mode<synchronous>, transform_indices = @transform_8, window_bounds = array<i64: 2, 32, 96>}, {pipeline_mode = #tpu.pipeline_mode<synchronous>, transform_indices = @transform_9, window_bounds = array<i64: 2, 1, 96>}, {pipeline_mode = #tpu.pipeline_mode<synchronous>, transform_indices = @transform_10, window_bounds = array<i64: 2, 32, 32>}, {pipeline_mode = #tpu.pipeline_mode<synchronous>, transform_indices = @transform_11, window_bounds = array<i64: 2, 1, 32>}, {pipeline_mode = #tpu.pipeline_mode<synchronous>, transform_indices = @transform_12, window_bounds = array<i64: 2, 1, 32>}, {pipeline_mode = #tpu.pipeline_mode<synchronous>, transform_indices = @transform_13, window_bounds = array<i64: 2, 1, 32>}, {pipeline_mode = #tpu.pipeline_mode<synchronous>, transform_indices = @transform_14, window_bounds = array<i64: 2, 32, 128>}, {pipeline_mode = #tpu.pipeline_mode<synchronous>, transform_indices = @transform_15, window_bounds = array<i64: 2, 1, 128>}, {pipeline_mode = #tpu.pipeline_mode<synchronous>, transform_indices = @transform_16, window_bounds = array<i64: 2, 128, 32>}, {pipeline_mode = #tpu.pipeline_mode<synchronous>, transform_indices = @transform_17, window_bounds = array<i64: 2, 1, 32>}, {transform_indices = @transform_18, window_bounds = array<i64: 1, 17, 32>}, {transform_indices = @transform_19, window_bounds = array<i64: 1, 17, 32>}, {transform_indices = @transform_20, window_bounds = array<i64: 1, 17, 32>}]} {
    %c0 = arith.constant 0 : index
    %c0_0 = arith.constant 0 : index
    %c0_1 = arith.constant 0 : index
    %0 = vector.load %arg1[%c0, %c0_0, %c0_1] : memref<1x16x48xf32, #tpu.memory_space<vmem>>, vector<1x16x48xf32>
    %1 = vector.shape_cast %0 : vector<1x16x48xf32> to vector<16x48xf32>
    %c0_2 = arith.constant 0 : index
    %c0_3 = arith.constant 0 : index
    %2 = vector.load %arg2[%c0_2, %c0_3] : memref<48x32xf32, #tpu.memory_space<vmem>>, vector<48x32xf32>
    %cst = arith.constant dense<0.000000e+00> : vector<16x32xf32>
    %3 = tpu.matmul %1, %2, %cst {dimension_numbers = #tpu.dot_dimension_numbers<[1], [0], [0], [1], [0, 0, 1, 1], [], []>} : vector<16x48xf32>, vector<48x32xf32>, vector<16x32xf32> -> vector<16x32xf32>
    %c0_4 = arith.constant 0 : index
    %c0_5 = arith.constant 0 : index
    %4 = vector.load %arg3[%c0_4, %c0_5] : memref<1x32xf32, #tpu.memory_space<vmem>>, vector<1x32xf32>
    %c0_6 = arith.constant 0 : index
    %c0_7 = arith.constant 0 : index
    %c0_8 = arith.constant 0 : index
    %5 = vector.load %arg19[%c0_6, %c0_7, %c0_8] : memref<1x17x32xf32, #tpu.memory_space<vmem>>, vector<1x1x32xf32>
    %6 = vector.shape_cast %5 : vector<1x1x32xf32> to vector<1x32xf32>
    %7 = vector.shape_cast %4 : vector<1x32xf32> to vector<1x1x32xf32>
    tpu.vector_store %arg19[%c0_6, %c0_7, %c0_8], %7 {strides = array<i32>} : memref<1x17x32xf32, #tpu.memory_space<vmem>>, vector<1x1x32xf32>,
    %c0_9 = arith.constant 0 : index
    %c1 = arith.constant 1 : index
    %c0_10 = arith.constant 0 : index
    %8 = vector.load %arg19[%c0_9, %c1, %c0_10] : memref<1x17x32xf32, #tpu.memory_space<vmem>>, vector<1x16x32xf32>
    %9 = vector.shape_cast %8 : vector<1x16x32xf32> to vector<16x32xf32>
    %10 = vector.shape_cast %3 : vector<16x32xf32> to vector<1x16x32xf32>
    tpu.vector_store %arg19[%c0_9, %c1, %c0_10], %10 {strides = array<i32>} : memref<1x17x32xf32, #tpu.memory_space<vmem>>, vector<1x16x32xf32>,
    %c0_11 = arith.constant 0 : index
    %c0_12 = arith.constant 0 : index
    %c0_13 = arith.constant 0 : index
    %11 = vector.load %arg19[%c0_11, %c0_12, %c0_13] : memref<1x17x32xf32, #tpu.memory_space<vmem>>, vector<1x17x32xf32>
    %12 = vector.shape_cast %11 : vector<1x17x32xf32> to vector<17x32xf32>
    %c0_14 = arith.constant 0 : index
    %c0_15 = arith.constant 0 : index
    %13 = vector.load %arg4[%c0_14, %c0_15] : memref<17x32xf32, #tpu.memory_space<vmem>>, vector<17x32xf32>
    %14 = arith.addf %12, %13 : vector<17x32xf32>
    %c0_16 = arith.constant 0 : index
    %c0_17 = arith.constant 0 : index
    %15 = vector.load %arg5[%c0_16, %c0_17] : memref<1x32xf32, #tpu.memory_space<vmem>>, vector<1x32xf32>
    %c0_18 = arith.constant 0 : index
    %c0_19 = arith.constant 0 : index
    %16 = vector.load %arg6[%c0_18, %c0_19] : memref<1x32xf32, #tpu.memory_space<vmem>>, vector<1x32xf32>
    %cst_20 = arith.constant dense<0.000000e+00> : vector<17xf32>
    %17 = vector.multi_reduction <add>, %14, %cst_20 [1] : vector<17x32xf32> to vector<17xf32>
    %18 = vector.shape_cast %17 : vector<17xf32> to vector<17x1xf32>
    %cst_21 = arith.constant 3.200000e+01 : f32
    %19 = vector.broadcast %cst_21 : f32 to vector<17x1xf32>
    %20 = arith.divf %18, %19 : vector<17x1xf32>
    %21 = vector.broadcast %20 : vector<17x1xf32> to vector<17x32xf32>
    %22 = arith.subf %14, %21 : vector<17x32xf32>
    %23 = arith.mulf %22, %22 : vector<17x32xf32>
    %cst_22 = arith.constant dense<0.000000e+00> : vector<17xf32>
    %24 = vector.multi_reduction <add>, %23, %cst_22 [1] : vector<17x32xf32> to vector<17xf32>
    %25 = vector.shape_cast %24 : vector<17xf32> to vector<17x1xf32>
    %cst_23 = arith.constant 3.200000e+01 : f32
    %26 = vector.broadcast %cst_23 : f32 to vector<17x1xf32>
    %27 = arith.divf %25, %26 : vector<17x1xf32>
    %28 = vector.broadcast %20 : vector<17x1xf32> to vector<17x32xf32>
    %29 = arith.subf %14, %28 : vector<17x32xf32>
    %cst_24 = arith.constant 9.99999974E-6 : f32
    %30 = vector.broadcast %cst_24 : f32 to vector<17x1xf32>
    %31 = arith.addf %27, %30 : vector<17x1xf32>
    %32 = math.rsqrt %31 : vector<17x1xf32>
    %33 = vector.broadcast %32 : vector<17x1xf32> to vector<17x32xf32>
    %34 = arith.mulf %29, %33 : vector<17x32xf32>
    %35 = vector.broadcast %15 : vector<1x32xf32> to vector<17x32xf32>
    %36 = arith.mulf %34, %35 : vector<17x32xf32>
    %37 = vector.broadcast %16 : vector<1x32xf32> to vector<17x32xf32>
    %38 = arith.addf %36, %37 : vector<17x32xf32>
    %c0_25 = arith.constant 0 : index
    %c0_26 = arith.constant 0 : index
    %c0_27 = arith.constant 0 : index
    %39 = vector.load %arg19[%c0_25, %c0_26, %c0_27] : memref<1x17x32xf32, #tpu.memory_space<vmem>>, vector<1x17x32xf32>
    %40 = vector.shape_cast %39 : vector<1x17x32xf32> to vector<17x32xf32>
    %41 = vector.shape_cast %38 : vector<17x32xf32> to vector<1x17x32xf32>
    tpu.vector_store %arg19[%c0_25, %c0_26, %c0_27], %41 {strides = array<i32>} : memref<1x17x32xf32, #tpu.memory_space<vmem>>, vector<1x17x32xf32>,
    %c0_28 = arith.constant 0 : index
    %c0_29 = arith.constant 0 : index
    %c0_30 = arith.constant 0 : index
    %42 = vector.load %arg7[%c0_28, %c0_29, %c0_30] : memref<2x1x32xf32, #tpu.memory_space<vmem>>, vector<1x1x32xf32>
    %43 = vector.shape_cast %42 : vector<1x1x32xf32> to vector<1x32xf32>
    %c0_31 = arith.constant 0 : index
    %c0_32 = arith.constant 0 : index
    %c0_33 = arith.constant 0 : index
    %44 = vector.load %arg8[%c0_31, %c0_32, %c0_33] : memref<2x1x32xf32, #tpu.memory_space<vmem>>, vector<1x1x32xf32>
    %45 = vector.shape_cast %44 : vector<1x1x32xf32> to vector<1x32xf32>
    %cst_34 = arith.constant dense<0.000000e+00> : vector<17xf32>
    %46 = vector.multi_reduction <add>, %38, %cst_34 [1] : vector<17x32xf32> to vector<17xf32>
    %47 = vector.shape_cast %46 : vector<17xf32> to vector<17x1xf32>
    %cst_35 = arith.constant 3.200000e+01 : f32
    %48 = vector.broadcast %cst_35 : f32 to vector<17x1xf32>
    %49 = arith.divf %47, %48 : vector<17x1xf32>
    %50 = vector.broadcast %49 : vector<17x1xf32> to vector<17x32xf32>
    %51 = arith.subf %38, %50 : vector<17x32xf32>
    %52 = arith.mulf %51, %51 : vector<17x32xf32>
    %cst_36 = arith.constant dense<0.000000e+00> : vector<17xf32>
    %53 = vector.multi_reduction <add>, %52, %cst_36 [1] : vector<17x32xf32> to vector<17xf32>
    %54 = vector.shape_cast %53 : vector<17xf32> to vector<17x1xf32>
    %cst_37 = arith.constant 3.200000e+01 : f32
    %55 = vector.broadcast %cst_37 : f32 to vector<17x1xf32>
    %56 = arith.divf %54, %55 : vector<17x1xf32>
    %57 = vector.broadcast %49 : vector<17x1xf32> to vector<17x32xf32>
    %58 = arith.subf %38, %57 : vector<17x32xf32>
    %cst_38 = arith.constant 9.99999974E-6 : f32
    %59 = vector.broadcast %cst_38 : f32 to vector<17x1xf32>
    %60 = arith.addf %56, %59 : vector<17x1xf32>
    %61 = math.rsqrt %60 : vector<17x1xf32>
    %62 = vector.broadcast %61 : vector<17x1xf32> to vector<17x32xf32>
    %63 = arith.mulf %58, %62 : vector<17x32xf32>
    %64 = vector.broadcast %43 : vector<1x32xf32> to vector<17x32xf32>
    %65 = arith.mulf %63, %64 : vector<17x32xf32>
    %66 = vector.broadcast %45 : vector<1x32xf32> to vector<17x32xf32>
    %67 = arith.addf %65, %66 : vector<17x32xf32>
    %68 = arith.truncf %67 : vector<17x32xf32> to vector<17x32xbf16>
    %c0_39 = arith.constant 0 : index
    %c0_40 = arith.constant 0 : index
    %c0_41 = arith.constant 0 : index
    %69 = vector.load %arg9[%c0_39, %c0_40, %c0_41] : memref<2x32x96xbf16, #tpu.memory_space<vmem>>, vector<1x32x96xbf16>
    %70 = vector.shape_cast %69 : vector<1x32x96xbf16> to vector<32x96xbf16>
    %cst_42 = arith.constant dense<0.000000e+00> : vector<17x96xf32>
    %71 = tpu.matmul %68, %70, %cst_42 {dimension_numbers = #tpu.dot_dimension_numbers<[1], [0], [0], [1], [0, 0, 1, 1], [], []>} : vector<17x32xbf16>, vector<32x96xbf16>, vector<17x96xf32> -> vector<17x96xf32>
    %c0_43 = arith.constant 0 : index
    %c0_44 = arith.constant 0 : index
    %c0_45 = arith.constant 0 : index
    %72 = vector.load %arg10[%c0_43, %c0_44, %c0_45] : memref<2x1x96xf32, #tpu.memory_space<vmem>>, vector<1x1x96xf32>
    %73 = vector.shape_cast %72 : vector<1x1x96xf32> to vector<1x96xf32>
    %74 = vector.broadcast %73 : vector<1x96xf32> to vector<17x96xf32>
    %75 = arith.addf %71, %74 : vector<17x96xf32>
    %76 = vector.extract_strided_slice %75 {offsets = [0, 0], sizes = [17, 8], strides = [1, 1]} : vector<17x96xf32> to vector<17x8xf32>
    %77 = vector.extract_strided_slice %75 {offsets = [0, 32], sizes = [17, 8], strides = [1, 1]} : vector<17x96xf32> to vector<17x8xf32>
    %78 = vector.extract_strided_slice %75 {offsets = [0, 64], sizes = [17, 8], strides = [1, 1]} : vector<17x96xf32> to vector<17x8xf32>
    %79 = tpu.transpose %77, [1, 0] : vector<17x8xf32> -> vector<8x17xf32>
    %cst_46 = arith.constant dense<0.000000e+00> : vector<17x17xf32>
    %80 = tpu.matmul %76, %79, %cst_46 {dimension_numbers = #tpu.dot_dimension_numbers<[1], [0], [0], [1], [0, 0, 1, 1], [], []>} : vector<17x8xf32>, vector<8x17xf32>, vector<17x17xf32> -> vector<17x17xf32>
    %cst_47 = arith.constant 0.353553385 : f32
    %81 = vector.broadcast %cst_47 : f32 to vector<17x17xf32>
    %82 = arith.mulf %80, %81 : vector<17x17xf32>
    %cst_48 = arith.constant dense<0xFF800000> : vector<17xf32>
    %83 = vector.multi_reduction <maximumf>, %82, %cst_48 [1] : vector<17x17xf32> to vector<17xf32>
    %84 = vector.shape_cast %83 : vector<17xf32> to vector<17x1xf32>
    %85 = vector.broadcast %84 : vector<17x1xf32> to vector<17x17xf32>
    %86 = arith.subf %82, %85 : vector<17x17xf32>
    %87 = math.exp %86 : vector<17x17xf32>
    %cst_49 = arith.constant dense<0.000000e+00> : vector<17xf32>
    %88 = vector.multi_reduction <add>, %87, %cst_49 [1] : vector<17x17xf32> to vector<17xf32>
    %89 = vector.shape_cast %88 : vector<17xf32> to vector<17x1xf32>
    %90 = tpu.reciprocal %89 {approx = true} : vector<17x1xf32> -> vector<17x1xf32>
    %91 = vector.broadcast %90 : vector<17x1xf32> to vector<17x17xf32>
    %92 = arith.mulf %87, %91 : vector<17x17xf32>
    %cst_50 = arith.constant dense<0.000000e+00> : vector<17x8xf32>
    %93 = tpu.matmul %92, %78, %cst_50 {dimension_numbers = #tpu.dot_dimension_numbers<[1], [0], [0], [1], [0, 0, 1, 1], [], []>} : vector<17x17xf32>, vector<17x8xf32>, vector<17x8xf32> -> vector<17x8xf32>
    %c0_51 = arith.constant 0 : index
    %c0_52 = arith.constant 0 : index
    %94 = vector.load %arg22[%c0_51, %c0_52] : memref<17x32xf32, #tpu.memory_space<vmem>>, vector<17x8xf32>
    tpu.vector_store %arg22[%c0_51, %c0_52], %93 {strides = array<i32>} : memref<17x32xf32, #tpu.memory_space<vmem>>, vector<17x8xf32>,
    %95 = vector.extract_strided_slice %75 {offsets = [0, 8], sizes = [17, 8], strides = [1, 1]} : vector<17x96xf32> to vector<17x8xf32>
    %96 = vector.extract_strided_slice %75 {offsets = [0, 40], sizes = [17, 8], strides = [1, 1]} : vector<17x96xf32> to vector<17x8xf32>
    %97 = vector.extract_strided_slice %75 {offsets = [0, 72], sizes = [17, 8], strides = [1, 1]} : vector<17x96xf32> to vector<17x8xf32>
    %98 = tpu.transpose %96, [1, 0] : vector<17x8xf32> -> vector<8x17xf32>
    %cst_53 = arith.constant dense<0.000000e+00> : vector<17x17xf32>
    %99 = tpu.matmul %95, %98, %cst_53 {dimension_numbers = #tpu.dot_dimension_numbers<[1], [0], [0], [1], [0, 0, 1, 1], [], []>} : vector<17x8xf32>, vector<8x17xf32>, vector<17x17xf32> -> vector<17x17xf32>
    %cst_54 = arith.constant 0.353553385 : f32
    %100 = vector.broadcast %cst_54 : f32 to vector<17x17xf32>
    %101 = arith.mulf %99, %100 : vector<17x17xf32>
    %cst_55 = arith.constant dense<0xFF800000> : vector<17xf32>
    %102 = vector.multi_reduction <maximumf>, %101, %cst_55 [1] : vector<17x17xf32> to vector<17xf32>
    %103 = vector.shape_cast %102 : vector<17xf32> to vector<17x1xf32>
    %104 = vector.broadcast %103 : vector<17x1xf32> to vector<17x17xf32>
    %105 = arith.subf %101, %104 : vector<17x17xf32>
    %106 = math.exp %105 : vector<17x17xf32>
    %cst_56 = arith.constant dense<0.000000e+00> : vector<17xf32>
    %107 = vector.multi_reduction <add>, %106, %cst_56 [1] : vector<17x17xf32> to vector<17xf32>
    %108 = vector.shape_cast %107 : vector<17xf32> to vector<17x1xf32>
    %109 = tpu.reciprocal %108 {approx = true} : vector<17x1xf32> -> vector<17x1xf32>
    %110 = vector.broadcast %109 : vector<17x1xf32> to vector<17x17xf32>
    %111 = arith.mulf %106, %110 : vector<17x17xf32>
    %cst_57 = arith.constant dense<0.000000e+00> : vector<17x8xf32>
    %112 = tpu.matmul %111, %97, %cst_57 {dimension_numbers = #tpu.dot_dimension_numbers<[1], [0], [0], [1], [0, 0, 1, 1], [], []>} : vector<17x17xf32>, vector<17x8xf32>, vector<17x8xf32> -> vector<17x8xf32>
    %c0_58 = arith.constant 0 : index
    %c8 = arith.constant 8 : index
    %113 = vector.load %arg22[%c0_58, %c8] : memref<17x32xf32, #tpu.memory_space<vmem>>, vector<17x8xf32>
    tpu.vector_store %arg22[%c0_58, %c8], %112 {strides = array<i32>} : memref<17x32xf32, #tpu.memory_space<vmem>>, vector<17x8xf32>,
    %114 = vector.extract_strided_slice %75 {offsets = [0, 16], sizes = [17, 8], strides = [1, 1]} : vector<17x96xf32> to vector<17x8xf32>
    %115 = vector.extract_strided_slice %75 {offsets = [0, 48], sizes = [17, 8], strides = [1, 1]} : vector<17x96xf32> to vector<17x8xf32>
    %116 = vector.extract_strided_slice %75 {offsets = [0, 80], sizes = [17, 8], strides = [1, 1]} : vector<17x96xf32> to vector<17x8xf32>
    %117 = tpu.transpose %115, [1, 0] : vector<17x8xf32> -> vector<8x17xf32>
    %cst_59 = arith.constant dense<0.000000e+00> : vector<17x17xf32>
    %118 = tpu.matmul %114, %117, %cst_59 {dimension_numbers = #tpu.dot_dimension_numbers<[1], [0], [0], [1], [0, 0, 1, 1], [], []>} : vector<17x8xf32>, vector<8x17xf32>, vector<17x17xf32> -> vector<17x17xf32>
    %cst_60 = arith.constant 0.353553385 : f32
    %119 = vector.broadcast %cst_60 : f32 to vector<17x17xf32>
    %120 = arith.mulf %118, %119 : vector<17x17xf32>
    %cst_61 = arith.constant dense<0xFF800000> : vector<17xf32>
    %121 = vector.multi_reduction <maximumf>, %120, %cst_61 [1] : vector<17x17xf32> to vector<17xf32>
    %122 = vector.shape_cast %121 : vector<17xf32> to vector<17x1xf32>
    %123 = vector.broadcast %122 : vector<17x1xf32> to vector<17x17xf32>
    %124 = arith.subf %120, %123 : vector<17x17xf32>
    %125 = math.exp %124 : vector<17x17xf32>
    %cst_62 = arith.constant dense<0.000000e+00> : vector<17xf32>
    %126 = vector.multi_reduction <add>, %125, %cst_62 [1] : vector<17x17xf32> to vector<17xf32>
    %127 = vector.shape_cast %126 : vector<17xf32> to vector<17x1xf32>
    %128 = tpu.reciprocal %127 {approx = true} : vector<17x1xf32> -> vector<17x1xf32>
    %129 = vector.broadcast %128 : vector<17x1xf32> to vector<17x17xf32>
    %130 = arith.mulf %125, %129 : vector<17x17xf32>
    %cst_63 = arith.constant dense<0.000000e+00> : vector<17x8xf32>
    %131 = tpu.matmul %130, %116, %cst_63 {dimension_numbers = #tpu.dot_dimension_numbers<[1], [0], [0], [1], [0, 0, 1, 1], [], []>} : vector<17x17xf32>, vector<17x8xf32>, vector<17x8xf32> -> vector<17x8xf32>
    %c0_64 = arith.constant 0 : index
    %c16 = arith.constant 16 : index
    %132 = vector.load %arg22[%c0_64, %c16] : memref<17x32xf32, #tpu.memory_space<vmem>>, vector<17x8xf32>
    tpu.vector_store %arg22[%c0_64, %c16], %131 {strides = array<i32>} : memref<17x32xf32, #tpu.memory_space<vmem>>, vector<17x8xf32>,
    %133 = vector.extract_strided_slice %75 {offsets = [0, 24], sizes = [17, 8], strides = [1, 1]} : vector<17x96xf32> to vector<17x8xf32>
    %134 = vector.extract_strided_slice %75 {offsets = [0, 56], sizes = [17, 8], strides = [1, 1]} : vector<17x96xf32> to vector<17x8xf32>
    %135 = vector.extract_strided_slice %75 {offsets = [0, 88], sizes = [17, 8], strides = [1, 1]} : vector<17x96xf32> to vector<17x8xf32>
    %136 = tpu.transpose %134, [1, 0] : vector<17x8xf32> -> vector<8x17xf32>
    %cst_65 = arith.constant dense<0.000000e+00> : vector<17x17xf32>
    %137 = tpu.matmul %133, %136, %cst_65 {dimension_numbers = #tpu.dot_dimension_numbers<[1], [0], [0], [1], [0, 0, 1, 1], [], []>} : vector<17x8xf32>, vector<8x17xf32>, vector<17x17xf32> -> vector<17x17xf32>
    %cst_66 = arith.constant 0.353553385 : f32
    %138 = vector.broadcast %cst_66 : f32 to vector<17x17xf32>
    %139 = arith.mulf %137, %138 : vector<17x17xf32>
    %cst_67 = arith.constant dense<0xFF800000> : vector<17xf32>
    %140 = vector.multi_reduction <maximumf>, %139, %cst_67 [1] : vector<17x17xf32> to vector<17xf32>
    %141 = vector.shape_cast %140 : vector<17xf32> to vector<17x1xf32>
    %142 = vector.broadcast %141 : vector<17x1xf32> to vector<17x17xf32>
    %143 = arith.subf %139, %142 : vector<17x17xf32>
    %144 = math.exp %143 : vector<17x17xf32>
    %cst_68 = arith.constant dense<0.000000e+00> : vector<17xf32>
    %145 = vector.multi_reduction <add>, %144, %cst_68 [1] : vector<17x17xf32> to vector<17xf32>
    %146 = vector.shape_cast %145 : vector<17xf32> to vector<17x1xf32>
    %147 = tpu.reciprocal %146 {approx = true} : vector<17x1xf32> -> vector<17x1xf32>
    %148 = vector.broadcast %147 : vector<17x1xf32> to vector<17x17xf32>
    %149 = arith.mulf %144, %148 : vector<17x17xf32>
    %cst_69 = arith.constant dense<0.000000e+00> : vector<17x8xf32>
    %150 = tpu.matmul %149, %135, %cst_69 {dimension_numbers = #tpu.dot_dimension_numbers<[1], [0], [0], [1], [0, 0, 1, 1], [], []>} : vector<17x17xf32>, vector<17x8xf32>, vector<17x8xf32> -> vector<17x8xf32>
    %c0_70 = arith.constant 0 : index
    %c24 = arith.constant 24 : index
    %151 = vector.load %arg22[%c0_70, %c24] : memref<17x32xf32, #tpu.memory_space<vmem>>, vector<17x8xf32>
    tpu.vector_store %arg22[%c0_70, %c24], %150 {strides = array<i32>} : memref<17x32xf32, #tpu.memory_space<vmem>>, vector<17x8xf32>,
    %c0_71 = arith.constant 0 : index
    %c0_72 = arith.constant 0 : index
    %152 = vector.load %arg22[%c0_71, %c0_72] : memref<17x32xf32, #tpu.memory_space<vmem>>, vector<17x32xf32>
    %153 = arith.truncf %152 : vector<17x32xf32> to vector<17x32xbf16>
    %c0_73 = arith.constant 0 : index
    %c0_74 = arith.constant 0 : index
    %c0_75 = arith.constant 0 : index
    %154 = vector.load %arg11[%c0_73, %c0_74, %c0_75] : memref<2x32x32xbf16, #tpu.memory_space<vmem>>, vector<1x32x32xbf16>
    %155 = vector.shape_cast %154 : vector<1x32x32xbf16> to vector<32x32xbf16>
    %cst_76 = arith.constant dense<0.000000e+00> : vector<17x32xf32>
    %156 = tpu.matmul %153, %155, %cst_76 {dimension_numbers = #tpu.dot_dimension_numbers<[1], [0], [0], [1], [0, 0, 1, 1], [], []>} : vector<17x32xbf16>, vector<32x32xbf16>, vector<17x32xf32> -> vector<17x32xf32>
    %c0_77 = arith.constant 0 : index
    %c0_78 = arith.constant 0 : index
    %c0_79 = arith.constant 0 : index
    %157 = vector.load %arg12[%c0_77, %c0_78, %c0_79] : memref<2x1x32xf32, #tpu.memory_space<vmem>>, vector<1x1x32xf32>
    %158 = vector.shape_cast %157 : vector<1x1x32xf32> to vector<1x32xf32>
    %159 = vector.broadcast %158 : vector<1x32xf32> to vector<17x32xf32>
    %160 = arith.addf %156, %159 : vector<17x32xf32>
    %161 = arith.addf %38, %160 : vector<17x32xf32>
    %c0_80 = arith.constant 0 : index
    %c0_81 = arith.constant 0 : index
    %c0_82 = arith.constant 0 : index
    %162 = vector.load %arg13[%c0_80, %c0_81, %c0_82] : memref<2x1x32xf32, #tpu.memory_space<vmem>>, vector<1x1x32xf32>
    %163 = vector.shape_cast %162 : vector<1x1x32xf32> to vector<1x32xf32>
    %c0_83 = arith.constant 0 : index
    %c0_84 = arith.constant 0 : index
    %c0_85 = arith.constant 0 : index
    %164 = vector.load %arg14[%c0_83, %c0_84, %c0_85] : memref<2x1x32xf32, #tpu.memory_space<vmem>>, vector<1x1x32xf32>
    %165 = vector.shape_cast %164 : vector<1x1x32xf32> to vector<1x32xf32>
    %cst_86 = arith.constant dense<0.000000e+00> : vector<17xf32>
    %166 = vector.multi_reduction <add>, %161, %cst_86 [1] : vector<17x32xf32> to vector<17xf32>
    %167 = vector.shape_cast %166 : vector<17xf32> to vector<17x1xf32>
    %cst_87 = arith.constant 3.200000e+01 : f32
    %168 = vector.broadcast %cst_87 : f32 to vector<17x1xf32>
    %169 = arith.divf %167, %168 : vector<17x1xf32>
    %170 = vector.broadcast %169 : vector<17x1xf32> to vector<17x32xf32>
    %171 = arith.subf %161, %170 : vector<17x32xf32>
    %172 = arith.mulf %171, %171 : vector<17x32xf32>
    %cst_88 = arith.constant dense<0.000000e+00> : vector<17xf32>
    %173 = vector.multi_reduction <add>, %172, %cst_88 [1] : vector<17x32xf32> to vector<17xf32>
    %174 = vector.shape_cast %173 : vector<17xf32> to vector<17x1xf32>
    %cst_89 = arith.constant 3.200000e+01 : f32
    %175 = vector.broadcast %cst_89 : f32 to vector<17x1xf32>
    %176 = arith.divf %174, %175 : vector<17x1xf32>
    %177 = vector.broadcast %169 : vector<17x1xf32> to vector<17x32xf32>
    %178 = arith.subf %161, %177 : vector<17x32xf32>
    %cst_90 = arith.constant 9.99999974E-6 : f32
    %179 = vector.broadcast %cst_90 : f32 to vector<17x1xf32>
    %180 = arith.addf %176, %179 : vector<17x1xf32>
    %181 = math.rsqrt %180 : vector<17x1xf32>
    %182 = vector.broadcast %181 : vector<17x1xf32> to vector<17x32xf32>
    %183 = arith.mulf %178, %182 : vector<17x32xf32>
    %184 = vector.broadcast %163 : vector<1x32xf32> to vector<17x32xf32>
    %185 = arith.mulf %183, %184 : vector<17x32xf32>
    %186 = vector.broadcast %165 : vector<1x32xf32> to vector<17x32xf32>
    %187 = arith.addf %185, %186 : vector<17x32xf32>
    %188 = arith.truncf %187 : vector<17x32xf32> to vector<17x32xbf16>
    %c0_91 = arith.constant 0 : index
    %c0_92 = arith.constant 0 : index
    %c0_93 = arith.constant 0 : index
    %189 = vector.load %arg15[%c0_91, %c0_92, %c0_93] : memref<2x32x128xbf16, #tpu.memory_space<vmem>>, vector<1x32x128xbf16>
    %190 = vector.shape_cast %189 : vector<1x32x128xbf16> to vector<32x128xbf16>
    %cst_94 = arith.constant dense<0.000000e+00> : vector<17x128xf32>
    %191 = tpu.matmul %188, %190, %cst_94 {dimension_numbers = #tpu.dot_dimension_numbers<[1], [0], [0], [1], [0, 0, 1, 1], [], []>} : vector<17x32xbf16>, vector<32x128xbf16>, vector<17x128xf32> -> vector<17x128xf32>
    %c0_95 = arith.constant 0 : index
    %c0_96 = arith.constant 0 : index
    %c0_97 = arith.constant 0 : index
    %192 = vector.load %arg16[%c0_95, %c0_96, %c0_97] : memref<2x1x128xf32, #tpu.memory_space<vmem>>, vector<1x1x128xf32>
    %193 = vector.shape_cast %192 : vector<1x1x128xf32> to vector<1x128xf32>
    %194 = vector.broadcast %193 : vector<1x128xf32> to vector<17x128xf32>
    %195 = arith.addf %191, %194 : vector<17x128xf32>
    %cst_98 = arith.constant 5.000000e-01 : f32
    %196 = vector.broadcast %cst_98 : f32 to vector<17x128xf32>
    %197 = arith.mulf %196, %195 : vector<17x128xf32>
    %cst_99 = arith.constant 4.471500e-02 : f32
    %198 = vector.broadcast %cst_99 : f32 to vector<17x128xf32>
    %199 = arith.mulf %198, %195 : vector<17x128xf32>
    %200 = arith.mulf %199, %195 : vector<17x128xf32>
    %201 = arith.mulf %200, %195 : vector<17x128xf32>
    %202 = arith.addf %195, %201 : vector<17x128xf32>
    %cst_100 = arith.constant 0.797884583 : f32
    %203 = vector.broadcast %cst_100 : f32 to vector<17x128xf32>
    %204 = arith.mulf %203, %202 : vector<17x128xf32>
    %205 = math.tanh %204 : vector<17x128xf32>
    %cst_101 = arith.constant 1.000000e+00 : f32
    %206 = vector.broadcast %cst_101 : f32 to vector<17x128xf32>
    %207 = arith.addf %206, %205 : vector<17x128xf32>
    %208 = arith.mulf %197, %207 : vector<17x128xf32>
    %209 = arith.truncf %208 : vector<17x128xf32> to vector<17x128xbf16>
    %c0_102 = arith.constant 0 : index
    %c0_103 = arith.constant 0 : index
    %c0_104 = arith.constant 0 : index
    %210 = vector.load %arg17[%c0_102, %c0_103, %c0_104] : memref<2x128x32xbf16, #tpu.memory_space<vmem>>, vector<1x128x32xbf16>
    %211 = vector.shape_cast %210 : vector<1x128x32xbf16> to vector<128x32xbf16>
    %cst_105 = arith.constant dense<0.000000e+00> : vector<17x32xf32>
    %212 = tpu.matmul %209, %211, %cst_105 {dimension_numbers = #tpu.dot_dimension_numbers<[1], [0], [0], [1], [0, 0, 1, 1], [], []>} : vector<17x128xbf16>, vector<128x32xbf16>, vector<17x32xf32> -> vector<17x32xf32>
    %c0_106 = arith.constant 0 : index
    %c0_107 = arith.constant 0 : index
    %c0_108 = arith.constant 0 : index
    %213 = vector.load %arg18[%c0_106, %c0_107, %c0_108] : memref<2x1x32xf32, #tpu.memory_space<vmem>>, vector<1x1x32xf32>
    %214 = vector.shape_cast %213 : vector<1x1x32xf32> to vector<1x32xf32>
    %215 = vector.broadcast %214 : vector<1x32xf32> to vector<17x32xf32>
    %216 = arith.addf %212, %215 : vector<17x32xf32>
    %217 = arith.addf %161, %216 : vector<17x32xf32>
    %c0_109 = arith.constant 0 : index
    %c0_110 = arith.constant 0 : index
    %c0_111 = arith.constant 0 : index
    %218 = vector.load %arg20[%c0_109, %c0_110, %c0_111] : memref<1x17x32xf32, #tpu.memory_space<vmem>>, vector<1x17x32xf32>
    %219 = vector.shape_cast %218 : vector<1x17x32xf32> to vector<17x32xf32>
    %220 = vector.shape_cast %217 : vector<17x32xf32> to vector<1x17x32xf32>
    tpu.vector_store %arg20[%c0_109, %c0_110, %c0_111], %220 {strides = array<i32>} : memref<1x17x32xf32, #tpu.memory_space<vmem>>, vector<1x17x32xf32>,
    %c1_112 = arith.constant 1 : index
    %c0_113 = arith.constant 0 : index
    %c0_114 = arith.constant 0 : index
    %221 = vector.load %arg7[%c1_112, %c0_113, %c0_114] : memref<2x1x32xf32, #tpu.memory_space<vmem>>, vector<1x1x32xf32>
    %222 = vector.shape_cast %221 : vector<1x1x32xf32> to vector<1x32xf32>
    %c1_115 = arith.constant 1 : index
    %c0_116 = arith.constant 0 : index
    %c0_117 = arith.constant 0 : index
    %223 = vector.load %arg8[%c1_115, %c0_116, %c0_117] : memref<2x1x32xf32, #tpu.memory_space<vmem>>, vector<1x1x32xf32>
    %224 = vector.shape_cast %223 : vector<1x1x32xf32> to vector<1x32xf32>
    %cst_118 = arith.constant dense<0.000000e+00> : vector<17xf32>
    %225 = vector.multi_reduction <add>, %217, %cst_118 [1] : vector<17x32xf32> to vector<17xf32>
    %226 = vector.shape_cast %225 : vector<17xf32> to vector<17x1xf32>
    %cst_119 = arith.constant 3.200000e+01 : f32
    %227 = vector.broadcast %cst_119 : f32 to vector<17x1xf32>
    %228 = arith.divf %226, %227 : vector<17x1xf32>
    %229 = vector.broadcast %228 : vector<17x1xf32> to vector<17x32xf32>
    %230 = arith.subf %217, %229 : vector<17x32xf32>
    %231 = arith.mulf %230, %230 : vector<17x32xf32>
    %cst_120 = arith.constant dense<0.000000e+00> : vector<17xf32>
    %232 = vector.multi_reduction <add>, %231, %cst_120 [1] : vector<17x32xf32> to vector<17xf32>
    %233 = vector.shape_cast %232 : vector<17xf32> to vector<17x1xf32>
    %cst_121 = arith.constant 3.200000e+01 : f32
    %234 = vector.broadcast %cst_121 : f32 to vector<17x1xf32>
    %235 = arith.divf %233, %234 : vector<17x1xf32>
    %236 = vector.broadcast %228 : vector<17x1xf32> to vector<17x32xf32>
    %237 = arith.subf %217, %236 : vector<17x32xf32>
    %cst_122 = arith.constant 9.99999974E-6 : f32
    %238 = vector.broadcast %cst_122 : f32 to vector<17x1xf32>
    %239 = arith.addf %235, %238 : vector<17x1xf32>
    %240 = math.rsqrt %239 : vector<17x1xf32>
    %241 = vector.broadcast %240 : vector<17x1xf32> to vector<17x32xf32>
    %242 = arith.mulf %237, %241 : vector<17x32xf32>
    %243 = vector.broadcast %222 : vector<1x32xf32> to vector<17x32xf32>
    %244 = arith.mulf %242, %243 : vector<17x32xf32>
    %245 = vector.broadcast %224 : vector<1x32xf32> to vector<17x32xf32>
    %246 = arith.addf %244, %245 : vector<17x32xf32>
    %247 = arith.truncf %246 : vector<17x32xf32> to vector<17x32xbf16>
    %c1_123 = arith.constant 1 : index
    %c0_124 = arith.constant 0 : index
    %c0_125 = arith.constant 0 : index
    %248 = vector.load %arg9[%c1_123, %c0_124, %c0_125] : memref<2x32x96xbf16, #tpu.memory_space<vmem>>, vector<1x32x96xbf16>
    %249 = vector.shape_cast %248 : vector<1x32x96xbf16> to vector<32x96xbf16>
    %cst_126 = arith.constant dense<0.000000e+00> : vector<17x96xf32>
    %250 = tpu.matmul %247, %249, %cst_126 {dimension_numbers = #tpu.dot_dimension_numbers<[1], [0], [0], [1], [0, 0, 1, 1], [], []>} : vector<17x32xbf16>, vector<32x96xbf16>, vector<17x96xf32> -> vector<17x96xf32>
    %c1_127 = arith.constant 1 : index
    %c0_128 = arith.constant 0 : index
    %c0_129 = arith.constant 0 : index
    %251 = vector.load %arg10[%c1_127, %c0_128, %c0_129] : memref<2x1x96xf32, #tpu.memory_space<vmem>>, vector<1x1x96xf32>
    %252 = vector.shape_cast %251 : vector<1x1x96xf32> to vector<1x96xf32>
    %253 = vector.broadcast %252 : vector<1x96xf32> to vector<17x96xf32>
    %254 = arith.addf %250, %253 : vector<17x96xf32>
    %255 = vector.extract_strided_slice %254 {offsets = [0, 0], sizes = [17, 8], strides = [1, 1]} : vector<17x96xf32> to vector<17x8xf32>
    %256 = vector.extract_strided_slice %254 {offsets = [0, 32], sizes = [17, 8], strides = [1, 1]} : vector<17x96xf32> to vector<17x8xf32>
    %257 = vector.extract_strided_slice %254 {offsets = [0, 64], sizes = [17, 8], strides = [1, 1]} : vector<17x96xf32> to vector<17x8xf32>
    %258 = tpu.transpose %256, [1, 0] : vector<17x8xf32> -> vector<8x17xf32>
    %cst_130 = arith.constant dense<0.000000e+00> : vector<17x17xf32>
    %259 = tpu.matmul %255, %258, %cst_130 {dimension_numbers = #tpu.dot_dimension_numbers<[1], [0], [0], [1], [0, 0, 1, 1], [], []>} : vector<17x8xf32>, vector<8x17xf32>, vector<17x17xf32> -> vector<17x17xf32>
    %cst_131 = arith.constant 0.353553385 : f32
    %260 = vector.broadcast %cst_131 : f32 to vector<17x17xf32>
    %261 = arith.mulf %259, %260 : vector<17x17xf32>
    %cst_132 = arith.constant dense<0xFF800000> : vector<17xf32>
    %262 = vector.multi_reduction <maximumf>, %261, %cst_132 [1] : vector<17x17xf32> to vector<17xf32>
    %263 = vector.shape_cast %262 : vector<17xf32> to vector<17x1xf32>
    %264 = vector.broadcast %263 : vector<17x1xf32> to vector<17x17xf32>
    %265 = arith.subf %261, %264 : vector<17x17xf32>
    %266 = math.exp %265 : vector<17x17xf32>
    %cst_133 = arith.constant dense<0.000000e+00> : vector<17xf32>
    %267 = vector.multi_reduction <add>, %266, %cst_133 [1] : vector<17x17xf32> to vector<17xf32>
    %268 = vector.shape_cast %267 : vector<17xf32> to vector<17x1xf32>
    %269 = tpu.reciprocal %268 {approx = true} : vector<17x1xf32> -> vector<17x1xf32>
    %270 = vector.broadcast %269 : vector<17x1xf32> to vector<17x17xf32>
    %271 = arith.mulf %266, %270 : vector<17x17xf32>
    %cst_134 = arith.constant dense<0.000000e+00> : vector<17x8xf32>
    %272 = tpu.matmul %271, %257, %cst_134 {dimension_numbers = #tpu.dot_dimension_numbers<[1], [0], [0], [1], [0, 0, 1, 1], [], []>} : vector<17x17xf32>, vector<17x8xf32>, vector<17x8xf32> -> vector<17x8xf32>
    %c0_135 = arith.constant 0 : index
    %c0_136 = arith.constant 0 : index
    %273 = vector.load %arg22[%c0_135, %c0_136] : memref<17x32xf32, #tpu.memory_space<vmem>>, vector<17x8xf32>
    tpu.vector_store %arg22[%c0_135, %c0_136], %272 {strides = array<i32>} : memref<17x32xf32, #tpu.memory_space<vmem>>, vector<17x8xf32>,
    %274 = vector.extract_strided_slice %254 {offsets = [0, 8], sizes = [17, 8], strides = [1, 1]} : vector<17x96xf32> to vector<17x8xf32>
    %275 = vector.extract_strided_slice %254 {offsets = [0, 40], sizes = [17, 8], strides = [1, 1]} : vector<17x96xf32> to vector<17x8xf32>
    %276 = vector.extract_strided_slice %254 {offsets = [0, 72], sizes = [17, 8], strides = [1, 1]} : vector<17x96xf32> to vector<17x8xf32>
    %277 = tpu.transpose %275, [1, 0] : vector<17x8xf32> -> vector<8x17xf32>
    %cst_137 = arith.constant dense<0.000000e+00> : vector<17x17xf32>
    %278 = tpu.matmul %274, %277, %cst_137 {dimension_numbers = #tpu.dot_dimension_numbers<[1], [0], [0], [1], [0, 0, 1, 1], [], []>} : vector<17x8xf32>, vector<8x17xf32>, vector<17x17xf32> -> vector<17x17xf32>
    %cst_138 = arith.constant 0.353553385 : f32
    %279 = vector.broadcast %cst_138 : f32 to vector<17x17xf32>
    %280 = arith.mulf %278, %279 : vector<17x17xf32>
    %cst_139 = arith.constant dense<0xFF800000> : vector<17xf32>
    %281 = vector.multi_reduction <maximumf>, %280, %cst_139 [1] : vector<17x17xf32> to vector<17xf32>
    %282 = vector.shape_cast %281 : vector<17xf32> to vector<17x1xf32>
    %283 = vector.broadcast %282 : vector<17x1xf32> to vector<17x17xf32>
    %284 = arith.subf %280, %283 : vector<17x17xf32>
    %285 = math.exp %284 : vector<17x17xf32>
    %cst_140 = arith.constant dense<0.000000e+00> : vector<17xf32>
    %286 = vector.multi_reduction <add>, %285, %cst_140 [1] : vector<17x17xf32> to vector<17xf32>
    %287 = vector.shape_cast %286 : vector<17xf32> to vector<17x1xf32>
    %288 = tpu.reciprocal %287 {approx = true} : vector<17x1xf32> -> vector<17x1xf32>
    %289 = vector.broadcast %288 : vector<17x1xf32> to vector<17x17xf32>
    %290 = arith.mulf %285, %289 : vector<17x17xf32>
    %cst_141 = arith.constant dense<0.000000e+00> : vector<17x8xf32>
    %291 = tpu.matmul %290, %276, %cst_141 {dimension_numbers = #tpu.dot_dimension_numbers<[1], [0], [0], [1], [0, 0, 1, 1], [], []>} : vector<17x17xf32>, vector<17x8xf32>, vector<17x8xf32> -> vector<17x8xf32>
    %c0_142 = arith.constant 0 : index
    %c8_143 = arith.constant 8 : index
    %292 = vector.load %arg22[%c0_142, %c8_143] : memref<17x32xf32, #tpu.memory_space<vmem>>, vector<17x8xf32>
    tpu.vector_store %arg22[%c0_142, %c8_143], %291 {strides = array<i32>} : memref<17x32xf32, #tpu.memory_space<vmem>>, vector<17x8xf32>,
    %293 = vector.extract_strided_slice %254 {offsets = [0, 16], sizes = [17, 8], strides = [1, 1]} : vector<17x96xf32> to vector<17x8xf32>
    %294 = vector.extract_strided_slice %254 {offsets = [0, 48], sizes = [17, 8], strides = [1, 1]} : vector<17x96xf32> to vector<17x8xf32>
    %295 = vector.extract_strided_slice %254 {offsets = [0, 80], sizes = [17, 8], strides = [1, 1]} : vector<17x96xf32> to vector<17x8xf32>
    %296 = tpu.transpose %294, [1, 0] : vector<17x8xf32> -> vector<8x17xf32>
    %cst_144 = arith.constant dense<0.000000e+00> : vector<17x17xf32>
    %297 = tpu.matmul %293, %296, %cst_144 {dimension_numbers = #tpu.dot_dimension_numbers<[1], [0], [0], [1], [0, 0, 1, 1], [], []>} : vector<17x8xf32>, vector<8x17xf32>, vector<17x17xf32> -> vector<17x17xf32>
    %cst_145 = arith.constant 0.353553385 : f32
    %298 = vector.broadcast %cst_145 : f32 to vector<17x17xf32>
    %299 = arith.mulf %297, %298 : vector<17x17xf32>
    %cst_146 = arith.constant dense<0xFF800000> : vector<17xf32>
    %300 = vector.multi_reduction <maximumf>, %299, %cst_146 [1] : vector<17x17xf32> to vector<17xf32>
    %301 = vector.shape_cast %300 : vector<17xf32> to vector<17x1xf32>
    %302 = vector.broadcast %301 : vector<17x1xf32> to vector<17x17xf32>
    %303 = arith.subf %299, %302 : vector<17x17xf32>
    %304 = math.exp %303 : vector<17x17xf32>
    %cst_147 = arith.constant dense<0.000000e+00> : vector<17xf32>
    %305 = vector.multi_reduction <add>, %304, %cst_147 [1] : vector<17x17xf32> to vector<17xf32>
    %306 = vector.shape_cast %305 : vector<17xf32> to vector<17x1xf32>
    %307 = tpu.reciprocal %306 {approx = true} : vector<17x1xf32> -> vector<17x1xf32>
    %308 = vector.broadcast %307 : vector<17x1xf32> to vector<17x17xf32>
    %309 = arith.mulf %304, %308 : vector<17x17xf32>
    %cst_148 = arith.constant dense<0.000000e+00> : vector<17x8xf32>
    %310 = tpu.matmul %309, %295, %cst_148 {dimension_numbers = #tpu.dot_dimension_numbers<[1], [0], [0], [1], [0, 0, 1, 1], [], []>} : vector<17x17xf32>, vector<17x8xf32>, vector<17x8xf32> -> vector<17x8xf32>
    %c0_149 = arith.constant 0 : index
    %c16_150 = arith.constant 16 : index
    %311 = vector.load %arg22[%c0_149, %c16_150] : memref<17x32xf32, #tpu.memory_space<vmem>>, vector<17x8xf32>
    tpu.vector_store %arg22[%c0_149, %c16_150], %310 {strides = array<i32>} : memref<17x32xf32, #tpu.memory_space<vmem>>, vector<17x8xf32>,
    %312 = vector.extract_strided_slice %254 {offsets = [0, 24], sizes = [17, 8], strides = [1, 1]} : vector<17x96xf32> to vector<17x8xf32>
    %313 = vector.extract_strided_slice %254 {offsets = [0, 56], sizes = [17, 8], strides = [1, 1]} : vector<17x96xf32> to vector<17x8xf32>
    %314 = vector.extract_strided_slice %254 {offsets = [0, 88], sizes = [17, 8], strides = [1, 1]} : vector<17x96xf32> to vector<17x8xf32>
    %315 = tpu.transpose %313, [1, 0] : vector<17x8xf32> -> vector<8x17xf32>
    %cst_151 = arith.constant dense<0.000000e+00> : vector<17x17xf32>
    %316 = tpu.matmul %312, %315, %cst_151 {dimension_numbers = #tpu.dot_dimension_numbers<[1], [0], [0], [1], [0, 0, 1, 1], [], []>} : vector<17x8xf32>, vector<8x17xf32>, vector<17x17xf32> -> vector<17x17xf32>
    %cst_152 = arith.constant 0.353553385 : f32
    %317 = vector.broadcast %cst_152 : f32 to vector<17x17xf32>
    %318 = arith.mulf %316, %317 : vector<17x17xf32>
    %cst_153 = arith.constant dense<0xFF800000> : vector<17xf32>
    %319 = vector.multi_reduction <maximumf>, %318, %cst_153 [1] : vector<17x17xf32> to vector<17xf32>
    %320 = vector.shape_cast %319 : vector<17xf32> to vector<17x1xf32>
    %321 = vector.broadcast %320 : vector<17x1xf32> to vector<17x17xf32>
    %322 = arith.subf %318, %321 : vector<17x17xf32>
    %323 = math.exp %322 : vector<17x17xf32>
    %cst_154 = arith.constant dense<0.000000e+00> : vector<17xf32>
    %324 = vector.multi_reduction <add>, %323, %cst_154 [1] : vector<17x17xf32> to vector<17xf32>
    %325 = vector.shape_cast %324 : vector<17xf32> to vector<17x1xf32>
    %326 = tpu.reciprocal %325 {approx = true} : vector<17x1xf32> -> vector<17x1xf32>
    %327 = vector.broadcast %326 : vector<17x1xf32> to vector<17x17xf32>
    %328 = arith.mulf %323, %327 : vector<17x17xf32>
    %cst_155 = arith.constant dense<0.000000e+00> : vector<17x8xf32>
    %329 = tpu.matmul %328, %314, %cst_155 {dimension_numbers = #tpu.dot_dimension_numbers<[1], [0], [0], [1], [0, 0, 1, 1], [], []>} : vector<17x17xf32>, vector<17x8xf32>, vector<17x8xf32> -> vector<17x8xf32>
    %c0_156 = arith.constant 0 : index
    %c24_157 = arith.constant 24 : index
    %330 = vector.load %arg22[%c0_156, %c24_157] : memref<17x32xf32, #tpu.memory_space<vmem>>, vector<17x8xf32>
    tpu.vector_store %arg22[%c0_156, %c24_157], %329 {strides = array<i32>} : memref<17x32xf32, #tpu.memory_space<vmem>>, vector<17x8xf32>,
    %c0_158 = arith.constant 0 : index
    %c0_159 = arith.constant 0 : index
    %331 = vector.load %arg22[%c0_158, %c0_159] : memref<17x32xf32, #tpu.memory_space<vmem>>, vector<17x32xf32>
    %332 = arith.truncf %331 : vector<17x32xf32> to vector<17x32xbf16>
    %c1_160 = arith.constant 1 : index
    %c0_161 = arith.constant 0 : index
    %c0_162 = arith.constant 0 : index
    %333 = vector.load %arg11[%c1_160, %c0_161, %c0_162] : memref<2x32x32xbf16, #tpu.memory_space<vmem>>, vector<1x32x32xbf16>
    %334 = vector.shape_cast %333 : vector<1x32x32xbf16> to vector<32x32xbf16>
    %cst_163 = arith.constant dense<0.000000e+00> : vector<17x32xf32>
    %335 = tpu.matmul %332, %334, %cst_163 {dimension_numbers = #tpu.dot_dimension_numbers<[1], [0], [0], [1], [0, 0, 1, 1], [], []>} : vector<17x32xbf16>, vector<32x32xbf16>, vector<17x32xf32> -> vector<17x32xf32>
    %c1_164 = arith.constant 1 : index
    %c0_165 = arith.constant 0 : index
    %c0_166 = arith.constant 0 : index
    %336 = vector.load %arg12[%c1_164, %c0_165, %c0_166] : memref<2x1x32xf32, #tpu.memory_space<vmem>>, vector<1x1x32xf32>
    %337 = vector.shape_cast %336 : vector<1x1x32xf32> to vector<1x32xf32>
    %338 = vector.broadcast %337 : vector<1x32xf32> to vector<17x32xf32>
    %339 = arith.addf %335, %338 : vector<17x32xf32>
    %340 = arith.addf %217, %339 : vector<17x32xf32>
    %c1_167 = arith.constant 1 : index
    %c0_168 = arith.constant 0 : index
    %c0_169 = arith.constant 0 : index
    %341 = vector.load %arg13[%c1_167, %c0_168, %c0_169] : memref<2x1x32xf32, #tpu.memory_space<vmem>>, vector<1x1x32xf32>
    %342 = vector.shape_cast %341 : vector<1x1x32xf32> to vector<1x32xf32>
    %c1_170 = arith.constant 1 : index
    %c0_171 = arith.constant 0 : index
    %c0_172 = arith.constant 0 : index
    %343 = vector.load %arg14[%c1_170, %c0_171, %c0_172] : memref<2x1x32xf32, #tpu.memory_space<vmem>>, vector<1x1x32xf32>
    %344 = vector.shape_cast %343 : vector<1x1x32xf32> to vector<1x32xf32>
    %cst_173 = arith.constant dense<0.000000e+00> : vector<17xf32>
    %345 = vector.multi_reduction <add>, %340, %cst_173 [1] : vector<17x32xf32> to vector<17xf32>
    %346 = vector.shape_cast %345 : vector<17xf32> to vector<17x1xf32>
    %cst_174 = arith.constant 3.200000e+01 : f32
    %347 = vector.broadcast %cst_174 : f32 to vector<17x1xf32>
    %348 = arith.divf %346, %347 : vector<17x1xf32>
    %349 = vector.broadcast %348 : vector<17x1xf32> to vector<17x32xf32>
    %350 = arith.subf %340, %349 : vector<17x32xf32>
    %351 = arith.mulf %350, %350 : vector<17x32xf32>
    %cst_175 = arith.constant dense<0.000000e+00> : vector<17xf32>
    %352 = vector.multi_reduction <add>, %351, %cst_175 [1] : vector<17x32xf32> to vector<17xf32>
    %353 = vector.shape_cast %352 : vector<17xf32> to vector<17x1xf32>
    %cst_176 = arith.constant 3.200000e+01 : f32
    %354 = vector.broadcast %cst_176 : f32 to vector<17x1xf32>
    %355 = arith.divf %353, %354 : vector<17x1xf32>
    %356 = vector.broadcast %348 : vector<17x1xf32> to vector<17x32xf32>
    %357 = arith.subf %340, %356 : vector<17x32xf32>
    %cst_177 = arith.constant 9.99999974E-6 : f32
    %358 = vector.broadcast %cst_177 : f32 to vector<17x1xf32>
    %359 = arith.addf %355, %358 : vector<17x1xf32>
    %360 = math.rsqrt %359 : vector<17x1xf32>
    %361 = vector.broadcast %360 : vector<17x1xf32> to vector<17x32xf32>
    %362 = arith.mulf %357, %361 : vector<17x32xf32>
    %363 = vector.broadcast %342 : vector<1x32xf32> to vector<17x32xf32>
    %364 = arith.mulf %362, %363 : vector<17x32xf32>
    %365 = vector.broadcast %344 : vector<1x32xf32> to vector<17x32xf32>
    %366 = arith.addf %364, %365 : vector<17x32xf32>
    %367 = arith.truncf %366 : vector<17x32xf32> to vector<17x32xbf16>
    %c1_178 = arith.constant 1 : index
    %c0_179 = arith.constant 0 : index
    %c0_180 = arith.constant 0 : index
    %368 = vector.load %arg15[%c1_178, %c0_179, %c0_180] : memref<2x32x128xbf16, #tpu.memory_space<vmem>>, vector<1x32x128xbf16>
    %369 = vector.shape_cast %368 : vector<1x32x128xbf16> to vector<32x128xbf16>
    %cst_181 = arith.constant dense<0.000000e+00> : vector<17x128xf32>
    %370 = tpu.matmul %367, %369, %cst_181 {dimension_numbers = #tpu.dot_dimension_numbers<[1], [0], [0], [1], [0, 0, 1, 1], [], []>} : vector<17x32xbf16>, vector<32x128xbf16>, vector<17x128xf32> -> vector<17x128xf32>
    %c1_182 = arith.constant 1 : index
    %c0_183 = arith.constant 0 : index
    %c0_184 = arith.constant 0 : index
    %371 = vector.load %arg16[%c1_182, %c0_183, %c0_184] : memref<2x1x128xf32, #tpu.memory_space<vmem>>, vector<1x1x128xf32>
    %372 = vector.shape_cast %371 : vector<1x1x128xf32> to vector<1x128xf32>
    %373 = vector.broadcast %372 : vector<1x128xf32> to vector<17x128xf32>
    %374 = arith.addf %370, %373 : vector<17x128xf32>
    %cst_185 = arith.constant 5.000000e-01 : f32
    %375 = vector.broadcast %cst_185 : f32 to vector<17x128xf32>
    %376 = arith.mulf %375, %374 : vector<17x128xf32>
    %cst_186 = arith.constant 4.471500e-02 : f32
    %377 = vector.broadcast %cst_186 : f32 to vector<17x128xf32>
    %378 = arith.mulf %377, %374 : vector<17x128xf32>
    %379 = arith.mulf %378, %374 : vector<17x128xf32>
    %380 = arith.mulf %379, %374 : vector<17x128xf32>
    %381 = arith.addf %374, %380 : vector<17x128xf32>
    %cst_187 = arith.constant 0.797884583 : f32
    %382 = vector.broadcast %cst_187 : f32 to vector<17x128xf32>
    %383 = arith.mulf %382, %381 : vector<17x128xf32>
    %384 = math.tanh %383 : vector<17x128xf32>
    %cst_188 = arith.constant 1.000000e+00 : f32
    %385 = vector.broadcast %cst_188 : f32 to vector<17x128xf32>
    %386 = arith.addf %385, %384 : vector<17x128xf32>
    %387 = arith.mulf %376, %386 : vector<17x128xf32>
    %388 = arith.truncf %387 : vector<17x128xf32> to vector<17x128xbf16>
    %c1_189 = arith.constant 1 : index
    %c0_190 = arith.constant 0 : index
    %c0_191 = arith.constant 0 : index
    %389 = vector.load %arg17[%c1_189, %c0_190, %c0_191] : memref<2x128x32xbf16, #tpu.memory_space<vmem>>, vector<1x128x32xbf16>
    %390 = vector.shape_cast %389 : vector<1x128x32xbf16> to vector<128x32xbf16>
    %cst_192 = arith.constant dense<0.000000e+00> : vector<17x32xf32>
    %391 = tpu.matmul %388, %390, %cst_192 {dimension_numbers = #tpu.dot_dimension_numbers<[1], [0], [0], [1], [0, 0, 1, 1], [], []>} : vector<17x128xbf16>, vector<128x32xbf16>, vector<17x32xf32> -> vector<17x32xf32>
    %c1_193 = arith.constant 1 : index
    %c0_194 = arith.constant 0 : index
    %c0_195 = arith.constant 0 : index
    %392 = vector.load %arg18[%c1_193, %c0_194, %c0_195] : memref<2x1x32xf32, #tpu.memory_space<vmem>>, vector<1x1x32xf32>
    %393 = vector.shape_cast %392 : vector<1x1x32xf32> to vector<1x32xf32>
    %394 = vector.broadcast %393 : vector<1x32xf32> to vector<17x32xf32>
    %395 = arith.addf %391, %394 : vector<17x32xf32>
    %396 = arith.addf %340, %395 : vector<17x32xf32>
    %c0_196 = arith.constant 0 : index
    %c0_197 = arith.constant 0 : index
    %c0_198 = arith.constant 0 : index
    %397 = vector.load %arg21[%c0_196, %c0_197, %c0_198] : memref<1x17x32xf32, #tpu.memory_space<vmem>>, vector<1x17x32xf32>
    %398 = vector.shape_cast %397 : vector<1x17x32xf32> to vector<17x32xf32>
    %399 = vector.shape_cast %396 : vector<17x32xf32> to vector<1x17x32xf32>
    tpu.vector_store %arg21[%c0_196, %c0_197, %c0_198], %399 {strides = array<i32>} : memref<1x17x32xf32, #tpu.memory_space<vmem>>, vector<1x17x32xf32>,
    return
  }
  func.func @transform_0(%arg0: i32) -> (i32, i32, i32) {
    %c0_i32 = arith.constant 0 : i32
    %c0_i32_0 = arith.constant 0 : i32
    %c0_i32_1 = arith.constant 0 : i32
    return %arg0, %c0_i32, %c0_i32_0 : i32, i32, i32
  }
  func.func @transform_1(%arg0: i32) -> (i32, i32) {
    %c0_i32 = arith.constant 0 : i32
    %c0_i32_0 = arith.constant 0 : i32
    %c0_i32_1 = arith.constant 0 : i32
    return %c0_i32, %c0_i32_0 : i32, i32
  }
  func.func @transform_2(%arg0: i32) -> (i32, i32) {
    %c0_i32 = arith.constant 0 : i32
    %c0_i32_0 = arith.constant 0 : i32
    %c0_i32_1 = arith.constant 0 : i32
    return %c0_i32, %c0_i32_0 : i32, i32
  }
  func.func @transform_3(%arg0: i32) -> (i32, i32) {
    %c0_i32 = arith.constant 0 : i32
    %c0_i32_0 = arith.constant 0 : i32
    %c0_i32_1 = arith.constant 0 : i32
    return %c0_i32, %c0_i32_0 : i32, i32
  }
  func.func @transform_4(%arg0: i32) -> (i32, i32) {
    %c0_i32 = arith.constant 0 : i32
    %c0_i32_0 = arith.constant 0 : i32
    %c0_i32_1 = arith.constant 0 : i32
    return %c0_i32, %c0_i32_0 : i32, i32
  }
  func.func @transform_5(%arg0: i32) -> (i32, i32) {
    %c0_i32 = arith.constant 0 : i32
    %c0_i32_0 = arith.constant 0 : i32
    %c0_i32_1 = arith.constant 0 : i32
    return %c0_i32, %c0_i32_0 : i32, i32
  }
  func.func @transform_6(%arg0: i32) -> (i32, i32, i32) {
    %c0_i32 = arith.constant 0 : i32
    %c0_i32_0 = arith.constant 0 : i32
    %c0_i32_1 = arith.constant 0 : i32
    %c0_i32_2 = arith.constant 0 : i32
    return %c0_i32, %c0_i32_0, %c0_i32_1 : i32, i32, i32
  }
  func.func @transform_7(%arg0: i32) -> (i32, i32, i32) {
    %c0_i32 = arith.constant 0 : i32
    %c0_i32_0 = arith.constant 0 : i32
    %c0_i32_1 = arith.constant 0 : i32
    %c0_i32_2 = arith.constant 0 : i32
    return %c0_i32, %c0_i32_0, %c0_i32_1 : i32, i32, i32
  }
  func.func @transform_8(%arg0: i32) -> (i32, i32, i32) {
    %c0_i32 = arith.constant 0 : i32
    %c0_i32_0 = arith.constant 0 : i32
    %c0_i32_1 = arith.constant 0 : i32
    %c0_i32_2 = arith.constant 0 : i32
    return %c0_i32, %c0_i32_0, %c0_i32_1 : i32, i32, i32
  }
  func.func @transform_9(%arg0: i32) -> (i32, i32, i32) {
    %c0_i32 = arith.constant 0 : i32
    %c0_i32_0 = arith.constant 0 : i32
    %c0_i32_1 = arith.constant 0 : i32
    %c0_i32_2 = arith.constant 0 : i32
    return %c0_i32, %c0_i32_0, %c0_i32_1 : i32, i32, i32
  }
  func.func @transform_10(%arg0: i32) -> (i32, i32, i32) {
    %c0_i32 = arith.constant 0 : i32
    %c0_i32_0 = arith.constant 0 : i32
    %c0_i32_1 = arith.constant 0 : i32
    %c0_i32_2 = arith.constant 0 : i32
    return %c0_i32, %c0_i32_0, %c0_i32_1 : i32, i32, i32
  }
  func.func @transform_11(%arg0: i32) -> (i32, i32, i32) {
    %c0_i32 = arith.constant 0 : i32
    %c0_i32_0 = arith.constant 0 : i32
    %c0_i32_1 = arith.constant 0 : i32
    %c0_i32_2 = arith.constant 0 : i32
    return %c0_i32, %c0_i32_0, %c0_i32_1 : i32, i32, i32
  }
  func.func @transform_12(%arg0: i32) -> (i32, i32, i32) {
    %c0_i32 = arith.constant 0 : i32
    %c0_i32_0 = arith.constant 0 : i32
    %c0_i32_1 = arith.constant 0 : i32
    %c0_i32_2 = arith.constant 0 : i32
    return %c0_i32, %c0_i32_0, %c0_i32_1 : i32, i32, i32
  }
  func.func @transform_13(%arg0: i32) -> (i32, i32, i32) {
    %c0_i32 = arith.constant 0 : i32
    %c0_i32_0 = arith.constant 0 : i32
    %c0_i32_1 = arith.constant 0 : i32
    %c0_i32_2 = arith.constant 0 : i32
    return %c0_i32, %c0_i32_0, %c0_i32_1 : i32, i32, i32
  }
  func.func @transform_14(%arg0: i32) -> (i32, i32, i32) {
    %c0_i32 = arith.constant 0 : i32
    %c0_i32_0 = arith.constant 0 : i32
    %c0_i32_1 = arith.constant 0 : i32
    %c0_i32_2 = arith.constant 0 : i32
    return %c0_i32, %c0_i32_0, %c0_i32_1 : i32, i32, i32
  }
  func.func @transform_15(%arg0: i32) -> (i32, i32, i32) {
    %c0_i32 = arith.constant 0 : i32
    %c0_i32_0 = arith.constant 0 : i32
    %c0_i32_1 = arith.constant 0 : i32
    %c0_i32_2 = arith.constant 0 : i32
    return %c0_i32, %c0_i32_0, %c0_i32_1 : i32, i32, i32
  }
  func.func @transform_16(%arg0: i32) -> (i32, i32, i32) {
    %c0_i32 = arith.constant 0 : i32
    %c0_i32_0 = arith.constant 0 : i32
    %c0_i32_1 = arith.constant 0 : i32
    %c0_i32_2 = arith.constant 0 : i32
    return %c0_i32, %c0_i32_0, %c0_i32_1 : i32, i32, i32
  }
  func.func @transform_17(%arg0: i32) -> (i32, i32, i32) {
    %c0_i32 = arith.constant 0 : i32
    %c0_i32_0 = arith.constant 0 : i32
    %c0_i32_1 = arith.constant 0 : i32
    %c0_i32_2 = arith.constant 0 : i32
    return %c0_i32, %c0_i32_0, %c0_i32_1 : i32, i32, i32
  }
  func.func @transform_18(%arg0: i32) -> (i32, i32, i32) {
    %c0_i32 = arith.constant 0 : i32
    %c0_i32_0 = arith.constant 0 : i32
    %c0_i32_1 = arith.constant 0 : i32
    return %arg0, %c0_i32, %c0_i32_0 : i32, i32, i32
  }
  func.func @transform_19(%arg0: i32) -> (i32, i32, i32) {
    %c0_i32 = arith.constant 0 : i32
    %c0_i32_0 = arith.constant 0 : i32
    %c0_i32_1 = arith.constant 0 : i32
    return %arg0, %c0_i32, %c0_i32_0 : i32, i32, i32
  }
  func.func @transform_20(%arg0: i32) -> (i32, i32, i32) {
    %c0_i32 = arith.constant 0 : i32
    %c0_i32_0 = arith.constant 0 : i32
    %c0_i32_1 = arith.constant 0 : i32
    return %arg0, %c0_i32, %c0_i32_0 : i32, i32, i32
  }
}

</mosaic_0001>

<llo_original>
// kernel: _forward_stack.1
$region0: #{_forward_stack.1}
  #allocation0 [shape = 'u32[]', space=smem, size = 0x4, offset = 0x4, fixed_abs, tag = 'smem constant byte address 0x4 - core index']
  #allocation1 [shape = 'u32[144,128]{1,0:T(1,128)}', space=vmem, size = 0x12000, scoped, tag = 'internal scratch']
  #allocation2 [shape = 'f32[17,32]{1,0:T(8,128)}', space=vmem, size = 0x3000, scoped, tag = 'scratch operand']
  %s0 = inlined_call_operand.vmem [shape: f32[2,16,48], index: 0, kind: input, shape index: {}]
  %s1 = inlined_call_operand.vmem [shape: f32[48,32], index: 1, kind: input, shape index: {}]
  %s2 = inlined_call_operand.vmem [shape: f32[1,32], index: 2, kind: input, shape index: {}]
  %s3 = inlined_call_operand.vmem [shape: f32[17,32], index: 3, kind: input, shape index: {}]
  %s4 = inlined_call_operand.vmem [shape: f32[1,32], index: 4, kind: input, shape index: {}]
  %s5 = inlined_call_operand.vmem [shape: f32[1,32], index: 5, kind: input, shape index: {}]
  %s6 = inlined_call_operand.vmem [shape: f32[2,1,32], index: 6, kind: input, shape index: {}]
  %s7 = inlined_call_operand.vmem [shape: f32[2,1,32], index: 7, kind: input, shape index: {}]
  %s8 = inlined_call_operand.vmem [shape: bf16[2,32,96], index: 8, kind: input, shape index: {}]
  %s9 = inlined_call_operand.vmem [shape: f32[2,1,96], index: 9, kind: input, shape index: {}]
  %s10 = inlined_call_operand.vmem [shape: bf16[2,32,32], index: 10, kind: input, shape index: {}]
  %s11 = inlined_call_operand.vmem [shape: f32[2,1,32], index: 11, kind: input, shape index: {}]
  %s12 = inlined_call_operand.vmem [shape: f32[2,1,32], index: 12, kind: input, shape index: {}]
  %s13 = inlined_call_operand.vmem [shape: f32[2,1,32], index: 13, kind: input, shape index: {}]
  %s14 = inlined_call_operand.vmem [shape: bf16[2,32,128], index: 14, kind: input, shape index: {}]
  %s15 = inlined_call_operand.vmem [shape: f32[2,1,128], index: 15, kind: input, shape index: {}]
  %s16 = inlined_call_operand.vmem [shape: bf16[2,128,32], index: 16, kind: input, shape index: {}]
  %s17 = inlined_call_operand.vmem [shape: f32[2,1,32], index: 17, kind: input, shape index: {}]
  %s18 = inlined_call_operand.vmem [shape: f32[2,17,32], index: 18, kind: output, shape index: {0}]
  %s19 = inlined_call_operand.vmem [shape: f32[2,17,32], index: 19, kind: output, shape index: {1}]
  %s20 = inlined_call_operand.vmem [shape: f32[2,17,32], index: 20, kind: output, shape index: {2}]
  %21 = xla_tuple %s18, %s19, %s20
  %s22 = sld [smem:[#allocation0]]
  $region121: #{_forward_stack.1} parent=0
    _
  %s24 = ssub.s32 1, %s22
  %s25 = scalar_select 0, %s24, %s22
  loop: start=0, step=1, limit=4
  $region2: #{_forward_stack.1} parent=0 // loop_pre_header
    _
  $region3: #{_forward_stack.1} parent=0 // loop_header
    %s27 = sphi 0, %s31
    %p28 = scmp.ge.s32.totalorder %s27, 4
    %s37 = sphi 0, %s39
    %s40 = sphi 0, %s37
    %s41 = sphi 0, %s40
    %s57 = sphi 0, %s41
    %s61 = sphi 0, %s61
    %s63 = sphi 0, %s61
    %s64 = sphi 0, %s63
    %s78 = sphi 0, %s64
    %s82 = sphi 0, %s82
    %s84 = sphi 0, %s82
    %s85 = sphi 0, %s84
    %s99 = sphi 0, %s85
    %s103 = sphi 0, %s103
    %s105 = sphi 0, %s103
    %s106 = sphi 0, %s105
    %s120 = sphi 0, %s106
    %s124 = sphi 0, %s124
    %s126 = sphi 0, %s124
    %s127 = sphi 0, %s126
    %s141 = sphi 0, %s127
    %s145 = sphi 0, %s145
    %s147 = sphi 0, %s145
    %s148 = sphi 0, %s147
    %s162 = sphi 0, %s148
    %s166 = sphi 0, %s166
    %s168 = sphi 0, %s166
    %s169 = sphi 0, %s168
    %s183 = sphi 0, %s169
    %s187 = sphi 0, %s187
    %s189 = sphi 0, %s187
    %s190 = sphi 0, %s189
    %s204 = sphi 0, %s190
    %s208 = sphi 0, %s208
    %s210 = sphi 0, %s208
    %s211 = sphi 0, %s210
    %s225 = sphi 0, %s211
    %s229 = sphi 0, %s229
    %s231 = sphi 0, %s229
    %s232 = sphi 0, %s231
    %s246 = sphi 0, %s232
    %s250 = sphi 0, %s250
    %s252 = sphi 0, %s250
    %s253 = sphi 0, %s252
    %s267 = sphi 0, %s253
    %s271 = sphi 0, %s271
    %s273 = sphi 0, %s271
    %s274 = sphi 0, %s273
    %s288 = sphi 0, %s274
    %s292 = sphi 0, %s292
    %s294 = sphi 0, %s292
    %s295 = sphi 0, %s294
    %s309 = sphi 0, %s295
    %s313 = sphi 0, %s313
    %s315 = sphi 0, %s313
    %s316 = sphi 0, %s315
    %s330 = sphi 0, %s316
    %s334 = sphi 0, %s334
    %s336 = sphi 0, %s334
    %s337 = sphi 0, %s336
    %s351 = sphi 0, %s337
    %s355 = sphi 0, %s355
    %s357 = sphi 0, %s355
    %s358 = sphi 0, %s357
    %s372 = sphi 0, %s358
    %s376 = sphi 0, %s376
    %s378 = sphi 0, %s376
    %s379 = sphi 0, %s378
    %s393 = sphi 0, %s379
    %s397 = sphi 0, %s397
    %s399 = sphi 0, %s397
    %s400 = sphi 0, %s399
    %s414 = sphi 0, %s400
    %s420 = sphi 0, %s422
    %s423 = sphi 0, %s420
    %s424 = sphi 0, %s423
    %s440 = sphi 0, %s424
    %s446 = sphi 0, %s448
    %s449 = sphi 0, %s446
    %s450 = sphi 0, %s449
    %s466 = sphi 0, %s450
    %s472 = sphi 0, %s474
    %s475 = sphi 0, %s472
    %s476 = sphi 0, %s475
    %s492 = sphi 0, %s476
  $region4: #{_forward_stack.1} parent=0 // loop_header_branch
    %30 = sbr.rel (%p28) target = $region8
  $region5: #{_forward_stack.1} parent=0 // loop_body
    %s32 = ssub.s32 %s27, 1
    %s33 = ssub.s32 %s27, 2
    %s34 = sadd.s32 %s27, 1
    %s35 = ssub.s32 %s27, %s34
    %p36 = scmp.eq.s32.totalorder %s35, 0
    %s38 = sadd.s32 %s37, 1
    %s39 = scalar_select %p36, %s37, %s38
    %p42 = pneg %p36
    %p43 = scmp.eq.s32.totalorder %s27, 1
    %p44 = por %p42, %p43
    %p45 = scmp.ne.s32.totalorder %s37, %s40
    %p46 = scmp.eq.s32.totalorder %s27, 0
    %p47 = por %p45, %p46
    %p48 = scmp.ne.s32.totalorder %s37, %s40
    %p49 = scmp.eq.s32.totalorder %s32, 1
    %p50 = por %p48, %p49
    %p51 = scmp.ne.s32.totalorder %s40, %s41
    %p52 = scmp.eq.s32.totalorder %s32, 0
    %p53 = por %p51, %p52
    %p54 = scmp.ne.s32.totalorder %s40, %s41
    %p55 = scmp.eq.s32.totalorder %s33, 1
    %p56 = por %p54, %p55
    %p58 = scmp.ne.s32.totalorder %s41, %s57
    %p59 = scmp.eq.s32.totalorder %s33, 0
    %p60 = por %p58, %p59
    %s62 = sadd.s32 %s61, 1
    %p65 = scmp.eq.s32.totalorder %s27, 1
    %p66 = scmp.ne.s32.totalorder %s61, %s63
    %p67 = scmp.eq.s32.totalorder %s27, 0
    %p68 = por %p66, %p67
    %p69 = scmp.ne.s32.totalorder %s61, %s63
    %p70 = scmp.eq.s32.totalorder %s32, 1
    %p71 = por %p69, %p70
    %p72 = scmp.ne.s32.totalorder %s63, %s64
    %p73 = scmp.eq.s32.totalorder %s32, 0
    %p74 = por %p72, %p73
    %p75 = scmp.ne.s32.totalorder %s63, %s64
    %p76 = scmp.eq.s32.totalorder %s33, 1
    %p77 = por %p75, %p76
    %p79 = scmp.ne.s32.totalorder %s64, %s78
    %p80 = scmp.eq.s32.totalorder %s33, 0
    %p81 = por %p79, %p80
    %s83 = sadd.s32 %s82, 1
    %p86 = scmp.eq.s32.totalorder %s27, 1
    %p87 = scmp.ne.s32.totalorder %s82, %s84
    %p88 = scmp.eq.s32.totalorder %s27, 0
    %p89 = por %p87, %p88
    %p90 = scmp.ne.s32.totalorder %s82, %s84
    %p91 = scmp.eq.s32.totalorder %s32, 1
    %p92 = por %p90, %p91
    %p93 = scmp.ne.s32.totalorder %s84, %s85
    %p94 = scmp.eq.s32.totalorder %s32, 0
    %p95 = por %p93, %p94
    %p96 = scmp.ne.s32.totalorder %s84, %s85
    %p97 = scmp.eq.s32.totalorder %s33, 1
    %p98 = por %p96, %p97
    %p100 = scmp.ne.s32.totalorder %s85, %s99
    %p101 = scmp.eq.s32.totalorder %s33, 0
    %p102 = por %p100, %p101
    %s104 = sadd.s32 %s103, 1
    %p107 = scmp.eq.s32.totalorder %s27, 1
    %p108 = scmp.ne.s32.totalorder %s103, %s105
    %p109 = scmp.eq.s32.totalorder %s27, 0
    %p110 = por %p108, %p109
    %p111 = scmp.ne.s32.totalorder %s103, %s105
    %p112 = scmp.eq.s32.totalorder %s32, 1
    %p113 = por %p111, %p112
    %p114 = scmp.ne.s32.totalorder %s105, %s106
    %p115 = scmp.eq.s32.totalorder %s32, 0
    %p116 = por %p114, %p115
    %p117 = scmp.ne.s32.totalorder %s105, %s106
    %p118 = scmp.eq.s32.totalorder %s33, 1
    %p119 = por %p117, %p118
    %p121 = scmp.ne.s32.totalorder %s106, %s120
    %p122 = scmp.eq.s32.totalorder %s33, 0
    %p123 = por %p121, %p122
    %s125 = sadd.s32 %s124, 1
    %p128 = scmp.eq.s32.totalorder %s27, 1
    %p129 = scmp.ne.s32.totalorder %s124, %s126
    %p130 = scmp.eq.s32.totalorder %s27, 0
    %p131 = por %p129, %p130
    %p132 = scmp.ne.s32.totalorder %s124, %s126
    %p133 = scmp.eq.s32.totalorder %s32, 1
    %p134 = por %p132, %p133
    %p135 = scmp.ne.s32.totalorder %s126, %s127
    %p136 = scmp.eq.s32.totalorder %s32, 0
    %p137 = por %p135, %p136
    %p138 = scmp.ne.s32.totalorder %s126, %s127
    %p139 = scmp.eq.s32.totalorder %s33, 1
    %p140 = por %p138, %p139
    %p142 = scmp.ne.s32.totalorder %s127, %s141
    %p143 = scmp.eq.s32.totalorder %s33, 0
    %p144 = por %p142, %p143
    %s146 = sadd.s32 %s145, 1
    %p149 = scmp.eq.s32.totalorder %s27, 1
    %p150 = scmp.ne.s32.totalorder %s145, %s147
    %p151 = scmp.eq.s32.totalorder %s27, 0
    %p152 = por %p150, %p151
    %p153 = scmp.ne.s32.totalorder %s145, %s147
    %p154 = scmp.eq.s32.totalorder %s32, 1
    %p155 = por %p153, %p154
    %p156 = scmp.ne.s32.totalorder %s147, %s148
    %p157 = scmp.eq.s32.totalorder %s32, 0
    %p158 = por %p156, %p157
    %p159 = scmp.ne.s32.totalorder %s147, %s148
    %p160 = scmp.eq.s32.totalorder %s33, 1
    %p161 = por %p159, %p160
    %p163 = scmp.ne.s32.totalorder %s148, %s162
    %p164 = scmp.eq.s32.totalorder %s33, 0
    %p165 = por %p163, %p164
    %s167 = sadd.s32 %s166, 1
    %p170 = scmp.eq.s32.totalorder %s27, 1
    %p171 = scmp.ne.s32.totalorder %s166, %s168
    %p172 = scmp.eq.s32.totalorder %s27, 0
    %p173 = por %p171, %p172
    %p174 = scmp.ne.s32.totalorder %s166, %s168
    %p175 = scmp.eq.s32.totalorder %s32, 1
    %p176 = por %p174, %p175
    %p177 = scmp.ne.s32.totalorder %s168, %s169
    %p178 = scmp.eq.s32.totalorder %s32, 0
    %p179 = por %p177, %p178
    %p180 = scmp.ne.s32.totalorder %s168, %s169
    %p181 = scmp.eq.s32.totalorder %s33, 1
    %p182 = por %p180, %p181
    %p184 = scmp.ne.s32.totalorder %s169, %s183
    %p185 = scmp.eq.s32.totalorder %s33, 0
    %p186 = por %p184, %p185
    %s188 = sadd.s32 %s187, 1
    %p191 = scmp.eq.s32.totalorder %s27, 1
    %p192 = scmp.ne.s32.totalorder %s187, %s189
    %p193 = scmp.eq.s32.totalorder %s27, 0
    %p194 = por %p192, %p193
    %p195 = scmp.ne.s32.totalorder %s187, %s189
    %p196 = scmp.eq.s32.totalorder %s32, 1
    %p197 = por %p195, %p196
    %p198 = scmp.ne.s32.totalorder %s189, %s190
    %p199 = scmp.eq.s32.totalorder %s32, 0
    %p200 = por %p198, %p199
    %p201 = scmp.ne.s32.totalorder %s189, %s190
    %p202 = scmp.eq.s32.totalorder %s33, 1
    %p203 = por %p201, %p202
    %p205 = scmp.ne.s32.totalorder %s190, %s204
    %p206 = scmp.eq.s32.totalorder %s33, 0
    %p207 = por %p205, %p206
    %s209 = sadd.s32 %s208, 1
    %p212 = scmp.eq.s32.totalorder %s27, 1
    %p213 = scmp.ne.s32.totalorder %s208, %s210
    %p214 = scmp.eq.s32.totalorder %s27, 0
    %p215 = por %p213, %p214
    %p216 = scmp.ne.s32.totalorder %s208, %s210
    %p217 = scmp.eq.s32.totalorder %s32, 1
    %p218 = por %p216, %p217
    %p219 = scmp.ne.s32.totalorder %s210, %s211
    %p220 = scmp.eq.s32.totalorder %s32, 0
    %p221 = por %p219, %p220
    %p222 = scmp.ne.s32.totalorder %s210, %s211
    %p223 = scmp.eq.s32.totalorder %s33, 1
    %p224 = por %p222, %p223
    %p226 = scmp.ne.s32.totalorder %s211, %s225
    %p227 = scmp.eq.s32.totalorder %s33, 0
    %p228 = por %p226, %p227
    %s230 = sadd.s32 %s229, 1
    %p233 = scmp.eq.s32.totalorder %s27, 1
    %p234 = scmp.ne.s32.totalorder %s229, %s231
    %p235 = scmp.eq.s32.totalorder %s27, 0
    %p236 = por %p234, %p235
    %p237 = scmp.ne.s32.totalorder %s229, %s231
    %p238 = scmp.eq.s32.totalorder %s32, 1
    %p239 = por %p237, %p238
    %p240 = scmp.ne.s32.totalorder %s231, %s232
    %p241 = scmp.eq.s32.totalorder %s32, 0
    %p242 = por %p240, %p241
    %p243 = scmp.ne.s32.totalorder %s231, %s232
    %p244 = scmp.eq.s32.totalorder %s33, 1
    %p245 = por %p243, %p244
    %p247 = scmp.ne.s32.totalorder %s232, %s246
    %p248 = scmp.eq.s32.totalorder %s33, 0
    %p249 = por %p247, %p248
    %s251 = sadd.s32 %s250, 1
    %p254 = scmp.eq.s32.totalorder %s27, 1
    %p255 = scmp.ne.s32.totalorder %s250, %s252
    %p256 = scmp.eq.s32.totalorder %s27, 0
    %p257 = por %p255, %p256
    %p258 = scmp.ne.s32.totalorder %s250, %s252
    %p259 = scmp.eq.s32.totalorder %s32, 1
    %p260 = por %p258, %p259
    %p261 = scmp.ne.s32.totalorder %s252, %s253
    %p262 = scmp.eq.s32.totalorder %s32, 0
    %p263 = por %p261, %p262
    %p264 = scmp.ne.s32.totalorder %s252, %s253
    %p265 = scmp.eq.s32.totalorder %s33, 1
    %p266 = por %p264, %p265
    %p268 = scmp.ne.s32.totalorder %s253, %s267
    %p269 = scmp.eq.s32.totalorder %s33, 0
    %p270 = por %p268, %p269
    %s272 = sadd.s32 %s271, 1
    %p275 = scmp.eq.s32.totalorder %s27, 1
    %p276 = scmp.ne.s32.totalorder %s271, %s273
    %p277 = scmp.eq.s32.totalorder %s27, 0
    %p278 = por %p276, %p277
    %p279 = scmp.ne.s32.totalorder %s271, %s273
    %p280 = scmp.eq.s32.totalorder %s32, 1
    %p281 = por %p279, %p280
    %p282 = scmp.ne.s32.totalorder %s273, %s274
    %p283 = scmp.eq.s32.totalorder %s32, 0
    %p284 = por %p282, %p283
    %p285 = scmp.ne.s32.totalorder %s273, %s274
    %p286 = scmp.eq.s32.totalorder %s33, 1
    %p287 = por %p285, %p286
    %p289 = scmp.ne.s32.totalorder %s274, %s288
    %p290 = scmp.eq.s32.totalorder %s33, 0
    %p291 = por %p289, %p290
    %s293 = sadd.s32 %s292, 1
    %p296 = scmp.eq.s32.totalorder %s27, 1
    %p297 = scmp.ne.s32.totalorder %s292, %s294
    %p298 = scmp.eq.s32.totalorder %s27, 0
    %p299 = por %p297, %p298
    %p300 = scmp.ne.s32.totalorder %s292, %s294
    %p301 = scmp.eq.s32.totalorder %s32, 1
    %p302 = por %p300, %p301
    %p303 = scmp.ne.s32.totalorder %s294, %s295
    %p304 = scmp.eq.s32.totalorder %s32, 0
    %p305 = por %p303, %p304
    %p306 = scmp.ne.s32.totalorder %s294, %s295
    %p307 = scmp.eq.s32.totalorder %s33, 1
    %p308 = por %p306, %p307
    %p310 = scmp.ne.s32.totalorder %s295, %s309
    %p311 = scmp.eq.s32.totalorder %s33, 0
    %p312 = por %p310, %p311
    %s314 = sadd.s32 %s313, 1
    %p317 = scmp.eq.s32.totalorder %s27, 1
    %p318 = scmp.ne.s32.totalorder %s313, %s315
    %p319 = scmp.eq.s32.totalorder %s27, 0
    %p320 = por %p318, %p319
    %p321 = scmp.ne.s32.totalorder %s313, %s315
    %p322 = scmp.eq.s32.totalorder %s32, 1
    %p323 = por %p321, %p322
    %p324 = scmp.ne.s32.totalorder %s315, %s316
    %p325 = scmp.eq.s32.totalorder %s32, 0
    %p326 = por %p324, %p325
    %p327 = scmp.ne.s32.totalorder %s315, %s316
    %p328 = scmp.eq.s32.totalorder %s33, 1
    %p329 = por %p327, %p328
    %p331 = scmp.ne.s32.totalorder %s316, %s330
    %p332 = scmp.eq.s32.totalorder %s33, 0
    %p333 = por %p331, %p332
    %s335 = sadd.s32 %s334, 1
    %p338 = scmp.eq.s32.totalorder %s27, 1
    %p339 = scmp.ne.s32.totalorder %s334, %s336
    %p340 = scmp.eq.s32.totalorder %s27, 0
    %p341 = por %p339, %p340
    %p342 = scmp.ne.s32.totalorder %s334, %s336
    %p343 = scmp.eq.s32.totalorder %s32, 1
    %p344 = por %p342, %p343
    %p345 = scmp.ne.s32.totalorder %s336, %s337
    %p346 = scmp.eq.s32.totalorder %s32, 0
    %p347 = por %p345, %p346
    %p348 = scmp.ne.s32.totalorder %s336, %s337
    %p349 = scmp.eq.s32.totalorder %s33, 1
    %p350 = por %p348, %p349
    %p352 = scmp.ne.s32.totalorder %s337, %s351
    %p353 = scmp.eq.s32.totalorder %s33, 0
    %p354 = por %p352, %p353
    %s356 = sadd.s32 %s355, 1
    %p359 = scmp.eq.s32.totalorder %s27, 1
    %p360 = scmp.ne.s32.totalorder %s355, %s357
    %p361 = scmp.eq.s32.totalorder %s27, 0
    %p362 = por %p360, %p361
    %p363 = scmp.ne.s32.totalorder %s355, %s357
    %p364 = scmp.eq.s32.totalorder %s32, 1
    %p365 = por %p363, %p364
    %p366 = scmp.ne.s32.totalorder %s357, %s358
    %p367 = scmp.eq.s32.totalorder %s32, 0
    %p368 = por %p366, %p367
    %p369 = scmp.ne.s32.totalorder %s357, %s358
    %p370 = scmp.eq.s32.totalorder %s33, 1
    %p371 = por %p369, %p370
    %p373 = scmp.ne.s32.totalorder %s358, %s372
    %p374 = scmp.eq.s32.totalorder %s33, 0
    %p375 = por %p373, %p374
    %s377 = sadd.s32 %s376, 1
    %p380 = scmp.eq.s32.totalorder %s27, 1
    %p381 = scmp.ne.s32.totalorder %s376, %s378
    %p382 = scmp.eq.s32.totalorder %s27, 0
    %p383 = por %p381, %p382
    %p384 = scmp.ne.s32.totalorder %s376, %s378
    %p385 = scmp.eq.s32.totalorder %s32, 1
    %p386 = por %p384, %p385
    %p387 = scmp.ne.s32.totalorder %s378, %s379
    %p388 = scmp.eq.s32.totalorder %s32, 0
    %p389 = por %p387, %p388
    %p390 = scmp.ne.s32.totalorder %s378, %s379
    %p391 = scmp.eq.s32.totalorder %s33, 1
    %p392 = por %p390, %p391
    %p394 = scmp.ne.s32.totalorder %s379, %s393
    %p395 = scmp.eq.s32.totalorder %s33, 0
    %p396 = por %p394, %p395
    %s398 = sadd.s32 %s397, 1
    %p401 = scmp.eq.s32.totalorder %s27, 1
    %p402 = scmp.ne.s32.totalorder %s397, %s399
    %p403 = scmp.eq.s32.totalorder %s27, 0
    %p404 = por %p402, %p403
    %p405 = scmp.ne.s32.totalorder %s397, %s399
    %p406 = scmp.eq.s32.totalorder %s32, 1
    %p407 = por %p405, %p406
    %p408 = scmp.ne.s32.totalorder %s399, %s400
    %p409 = scmp.eq.s32.totalorder %s32, 0
    %p410 = por %p408, %p409
    %p411 = scmp.ne.s32.totalorder %s399, %s400
    %p412 = scmp.eq.s32.totalorder %s33, 1
    %p413 = por %p411, %p412
    %p415 = scmp.ne.s32.totalorder %s400, %s414
    %p416 = scmp.eq.s32.totalorder %s33, 0
    %p417 = por %p415, %p416
    %s418 = ssub.s32 %s27, %s34
    %p419 = scmp.eq.s32.totalorder %s418, 0
    %s421 = sadd.s32 %s420, 1
    %s422 = scalar_select %p419, %s420, %s421
    %p425 = pneg %p419
    %p426 = scmp.eq.s32.totalorder %s27, 1
    %p427 = por %p425, %p426
    %p428 = scmp.ne.s32.totalorder %s420, %s423
    %p429 = scmp.eq.s32.totalorder %s27, 0
    %p430 = por %p428, %p429
    %p431 = scmp.ne.s32.totalorder %s420, %s423
    %p432 = scmp.eq.s32.totalorder %s32, 1
    %p433 = por %p431, %p432
    %p434 = scmp.ne.s32.totalorder %s423, %s424
    %p435 = scmp.eq.s32.totalorder %s32, 0
    %p436 = por %p434, %p435
    %p437 = scmp.ne.s32.totalorder %s423, %s424
    %p438 = scmp.eq.s32.totalorder %s33, 1
    %p439 = por %p437, %p438
    %p441 = scmp.ne.s32.totalorder %s424, %s440
    %p442 = scmp.eq.s32.totalorder %s33, 0
    %p443 = por %p441, %p442
    %s444 = ssub.s32 %s27, %s34
    %p445 = scmp.eq.s32.totalorder %s444, 0
    %s447 = sadd.s32 %s446, 1
    %s448 = scalar_select %p445, %s446, %s447
    %p451 = pneg %p445
    %p452 = scmp.eq.s32.totalorder %s27, 1
    %p453 = por %p451, %p452
    %p454 = scmp.ne.s32.totalorder %s446, %s449
    %p455 = scmp.eq.s32.totalorder %s27, 0
    %p456 = por %p454, %p455
    %p457 = scmp.ne.s32.totalorder %s446, %s449
    %p458 = scmp.eq.s32.totalorder %s32, 1
    %p459 = por %p457, %p458
    %p460 = scmp.ne.s32.totalorder %s449, %s450
    %p461 = scmp.eq.s32.totalorder %s32, 0
    %p462 = por %p460, %p461
    %p463 = scmp.ne.s32.totalorder %s449, %s450
    %p464 = scmp.eq.s32.totalorder %s33, 1
    %p465 = por %p463, %p464
    %p467 = scmp.ne.s32.totalorder %s450, %s466
    %p468 = scmp.eq.s32.totalorder %s33, 0
    %p469 = por %p467, %p468
    %s470 = ssub.s32 %s27, %s34
    %p471 = scmp.eq.s32.totalorder %s470, 0
    %s473 = sadd.s32 %s472, 1
    %s474 = scalar_select %p471, %s472, %s473
    %p477 = pneg %p471
    %p478 = scmp.eq.s32.totalorder %s27, 1
    %p479 = por %p477, %p478
    %p480 = scmp.ne.s32.totalorder %s472, %s475
    %p481 = scmp.eq.s32.totalorder %s27, 0
    %p482 = por %p480, %p481
    %p483 = scmp.ne.s32.totalorder %s472, %s475
    %p484 = scmp.eq.s32.totalorder %s32, 1
    %p485 = por %p483, %p484
    %p486 = scmp.ne.s32.totalorder %s475, %s476
    %p487 = scmp.eq.s32.totalorder %s32, 0
    %p488 = por %p486, %p487
    %p489 = scmp.ne.s32.totalorder %s475, %s476
    %p490 = scmp.eq.s32.totalorder %s33, 1
    %p491 = por %p489, %p490
    %p493 = scmp.ne.s32.totalorder %s476, %s492
    %p494 = scmp.eq.s32.totalorder %s33, 0
    %p495 = por %p493, %p494
    %p496 = scmp.le.s32.totalorder 1, %s27
    %p497 = scmp.lt.s32.totalorder %s27, 3
    %p498 = pnand %p496, %p497
    %p499 = pneg %p498
    // Predicated region
    $region9: #{_forward_stack.1} parent=5 // pred_check
      _
    $region10: #{_forward_stack.1} parent=5 // pred_check_branch
      %501 = sbr.rel (%p498) target = $region12
    $region11: #{_forward_stack.1} parent=5 // pred_region
      %s502 = ssub.s32 %s27, 1
      // Predicated region
      $region13: #{_forward_stack.1} parent=11 // pred_check
        %p503 = pneg %p74
      $region14: #{_forward_stack.1} parent=11 // pred_check_branch
        %505 = sbr.rel (%p503) target = $region16
      $region15: #{_forward_stack.1} parent=11 // pred_region
        _
      $region16: #{_forward_stack.1} parent=11 // pred_fallthru
        _
      // Predicated region
      $region17: #{_forward_stack.1} parent=11 // pred_check
        %p506 = pneg %p95
      $region18: #{_forward_stack.1} parent=11 // pred_check_branch
        %508 = sbr.rel (%p506) target = $region20
      $region19: #{_forward_stack.1} parent=11 // pred_region
        _
      $region20: #{_forward_stack.1} parent=11 // pred_fallthru
        _
      // Predicated region
      $region21: #{_forward_stack.1} parent=11 // pred_check
        %p509 = pneg %p116
      $region22: #{_forward_stack.1} parent=11 // pred_check_branch
        %511 = sbr.rel (%p509) target = $region24
      $region23: #{_forward_stack.1} parent=11 // pred_region
        _
      $region24: #{_forward_stack.1} parent=11 // pred_fallthru
        _
      // Predicated region
      $region25: #{_forward_stack.1} parent=11 // pred_check
        %p512 = pneg %p137
      $region26: #{_forward_stack.1} parent=11 // pred_check_branch
        %514 = sbr.rel (%p512) target = $region28
      $region27: #{_forward_stack.1} parent=11 // pred_region
        _
      $region28: #{_forward_stack.1} parent=11 // pred_fallthru
        _
      // Predicated region
      $region29: #{_forward_stack.1} parent=11 // pred_check
        %p515 = pneg %p158
      $region30: #{_forward_stack.1} parent=11 // pred_check_branch
        %517 = sbr.rel (%p515) target = $region32
      $region31: #{_forward_stack.1} parent=11 // pred_region
        _
      $region32: #{_forward_stack.1} parent=11 // pred_fallthru
        _
      // Predicated region
      $region33: #{_forward_stack.1} parent=11 // pred_check
        %p518 = pneg %p179
      $region34: #{_forward_stack.1} parent=11 // pred_check_branch
        %520 = sbr.rel (%p518) target = $region36
      $region35: #{_forward_stack.1} parent=11 // pred_region
        _
      $region36: #{_forward_stack.1} parent=11 // pred_fallthru
        _
      // Predicated region
      $region37: #{_forward_stack.1} parent=11 // pred_check
        %p521 = pneg %p200
      $region38: #{_forward_stack.1} parent=11 // pred_check_branch
        %523 = sbr.rel (%p521) target = $region40
      $region39: #{_forward_stack.1} parent=11 // pred_region
        _
      $region40: #{_forward_stack.1} parent=11 // pred_fallthru
        _
      // Predicated region
      $region41: #{_forward_stack.1} parent=11 // pred_check
        %p524 = pneg %p221
      $region42: #{_forward_stack.1} parent=11 // pred_check_branch
        %526 = sbr.rel (%p524) target = $region44
      $region43: #{_forward_stack.1} parent=11 // pred_region
        _
      $region44: #{_forward_stack.1} parent=11 // pred_fallthru
        _
      // Predicated region
      $region45: #{_forward_stack.1} parent=11 // pred_check
        %p527 = pneg %p242
      $region46: #{_forward_stack.1} parent=11 // pred_check_branch
        %529 = sbr.rel (%p527) target = $region48
      $region47: #{_forward_stack.1} parent=11 // pred_region
        _
      $region48: #{_forward_stack.1} parent=11 // pred_fallthru
        _
      // Predicated region
      $region49: #{_forward_stack.1} parent=11 // pred_check
        %p530 = pneg %p263
      $region50: #{_forward_stack.1} parent=11 // pred_check_branch
        %532 = sbr.rel (%p530) target = $region52
      $region51: #{_forward_stack.1} parent=11 // pred_region
        _
      $region52: #{_forward_stack.1} parent=11 // pred_fallthru
        _
      // Predicated region
      $region53: #{_forward_stack.1} parent=11 // pred_check
        %p533 = pneg %p284
      $region54: #{_forward_stack.1} parent=11 // pred_check_branch
        %535 = sbr.rel (%p533) target = $region56
      $region55: #{_forward_stack.1} parent=11 // pred_region
        _
      $region56: #{_forward_stack.1} parent=11 // pred_fallthru
        _
      // Predicated region
      $region57: #{_forward_stack.1} parent=11 // pred_check
        %p536 = pneg %p305
      $region58: #{_forward_stack.1} parent=11 // pred_check_branch
        %538 = sbr.rel (%p536) target = $region60
      $region59: #{_forward_stack.1} parent=11 // pred_region
        _
      $region60: #{_forward_stack.1} parent=11 // pred_fallthru
        _
      // Predicated region
      $region61: #{_forward_stack.1} parent=11 // pred_check
        %p539 = pneg %p326
      $region62: #{_forward_stack.1} parent=11 // pred_check_branch
        %541 = sbr.rel (%p539) target = $region64
      $region63: #{_forward_stack.1} parent=11 // pred_region
        _
      $region64: #{_forward_stack.1} parent=11 // pred_fallthru
        _
      // Predicated region
      $region65: #{_forward_stack.1} parent=11 // pred_check
        %p542 = pneg %p347
      $region66: #{_forward_stack.1} parent=11 // pred_check_branch
        %544 = sbr.rel (%p542) target = $region68
      $region67: #{_forward_stack.1} parent=11 // pred_region
        _
      $region68: #{_forward_stack.1} parent=11 // pred_fallthru
        _
      // Predicated region
      $region69: #{_forward_stack.1} parent=11 // pred_check
        %p545 = pneg %p368
      $region70: #{_forward_stack.1} parent=11 // pred_check_branch
        %547 = sbr.rel (%p545) target = $region72
      $region71: #{_forward_stack.1} parent=11 // pred_region
        _
      $region72: #{_forward_stack.1} parent=11 // pred_fallthru
        _
      // Predicated region
      $region73: #{_forward_stack.1} parent=11 // pred_check
        %p548 = pneg %p389
      $region74: #{_forward_stack.1} parent=11 // pred_check_branch
        %550 = sbr.rel (%p548) target = $region76
      $region75: #{_forward_stack.1} parent=11 // pred_region
        _
      $region76: #{_forward_stack.1} parent=11 // pred_fallthru
        _
      // Predicated region
      $region77: #{_forward_stack.1} parent=11 // pred_check
        %p551 = pneg %p410
      $region78: #{_forward_stack.1} parent=11 // pred_check_branch
        %553 = sbr.rel (%p551) target = $region80
      $region79: #{_forward_stack.1} parent=11 // pred_region
        _
      $region80: #{_forward_stack.1} parent=11 // pred_fallthru
        _
    $region12: #{_forward_stack.1} parent=5 // pred_fallthru
      _
    %p554 = scmp.lt.s32.totalorder %s27, 2
    // Predicated region
    $region81: #{_forward_stack.1} parent=5 // pred_check
      %p555 = pneg %p554
    $region82: #{_forward_stack.1} parent=5 // pred_check_branch
      %557 = sbr.rel (%p555) target = $region84
    $region83: #{_forward_stack.1} parent=5 // pred_region
      // Predicated region
      $region85: #{_forward_stack.1} parent=83 // pred_check
        %p558 = pneg %p47
      $region86: #{_forward_stack.1} parent=83 // pred_check_branch
        %560 = sbr.rel (%p558) target = $region88
      $region87: #{_forward_stack.1} parent=83 // pred_region
        %p561 = scmp.lt.s32.totalorder %s27, 1
        %s562 = scalar_select %p561, %s27, 1
        %s563 = smul.addr %s562, 2
        %s564 = smul.addr %s563, 8
        %s565 = scalar_lea.vmem %s0, %s564
      $region88: #{_forward_stack.1} parent=83 // pred_fallthru
        _
    $region84: #{_forward_stack.1} parent=5 // pred_fallthru
      _
    %p566 = scmp.le.s32.totalorder 1, %s27
    %p567 = scmp.lt.s32.totalorder %s27, 3
    %p568 = pnand %p566, %p567
    %p569 = pneg %p568
    // Predicated region
    $region89: #{_forward_stack.1} parent=5 // pred_check
      _
    $region90: #{_forward_stack.1} parent=5 // pred_check_branch
      %571 = sbr.rel (%p568) target = $region92
    $region91: #{_forward_stack.1} parent=5 // pred_region
      %s572 = ssub.s32 %s27, 1
      %p573 = scmp.lt.s32.totalorder %s32, 1
      %s574 = scalar_select %p573, %s32, 1
      %s575 = smul.addr %s574, 2
      %s576 = smul.addr %s575, 8
      %s577 = scalar_lea.vmem %s0, %s576
      %p578 = pneg %p53
      %p579 = pneg %p50
      %p580 = pneg %p74
      %p581 = pneg %p71
      %p582 = pneg %p95
      %p583 = pneg %p92
      %p584 = pneg %p116
      %p585 = pneg %p113
      %p586 = pneg %p137
      %p587 = pneg %p134
      %p588 = pneg %p158
      %p589 = pneg %p155
      %p590 = pneg %p179
      %p591 = pneg %p176
      %p592 = pneg %p200
      %p593 = pneg %p197
      %p594 = pneg %p221
      %p595 = pneg %p218
      %p596 = pneg %p242
      %p597 = pneg %p239
      %p598 = pneg %p263
      %p599 = pneg %p260
      %p600 = pneg %p284
      %p601 = pneg %p281
      %p602 = pneg %p305
      %p603 = pneg %p302
      %p604 = pneg %p326
      %p605 = pneg %p323
      %p606 = pneg %p347
      %p607 = pneg %p344
      %p608 = pneg %p368
      %p609 = pneg %p365
      %p610 = pneg %p389
      %p611 = pneg %p386
      %p612 = pneg %p410
      %p613 = pneg %p407
      %p614 = pneg %p436
      %p615 = pneg %p433
      %p616 = scmp.lt.s32.totalorder %s32, 1
      %s617 = scalar_select %p616, %s32, 1
      %s618 = smul.addr %s617, 3
      %s619 = smul.addr %s618, 8
      %s620 = scalar_lea.vmem %s18, %s619
      %p621 = pneg %p462
      %p622 = pneg %p459
      %p623 = scmp.lt.s32.totalorder %s32, 1
      %s624 = scalar_select %p623, %s32, 1
      %s625 = smul.addr %s624, 3
      %s626 = smul.addr %s625, 8
      %s627 = scalar_lea.vmem %s19, %s626
      %p628 = pneg %p488
      %p629 = pneg %p485
      %p630 = scmp.lt.s32.totalorder %s32, 1
      %s631 = scalar_select %p630, %s32, 1
      %s632 = smul.addr %s631, 3
      %s633 = smul.addr %s632, 8
      %s634 = scalar_lea.vmem %s20, %s633
      %p635 = scmp.lt.s32.totalorder %s32, 1
      %s636 = scalar_select %p635, %s32, 1
      %s637 = smul.addr %s636, 2
      %s638 = smul.addr %s637, 8
      %s639 = scalar_lea.vmem %s0, %s638
      %p640 = scmp.lt.s32.totalorder %s32, 1
      %s641 = scalar_select %p640, %s32, 1
      %s642 = smul.addr %s641, 3
      %s643 = smul.addr %s642, 8
      %s644 = scalar_lea.vmem %s18, %s643
      %p645 = scmp.lt.s32.totalorder %s32, 1
      %s646 = scalar_select %p645, %s32, 1
      %s647 = smul.addr %s646, 3
      %s648 = smul.addr %s647, 8
      %s649 = scalar_lea.vmem %s19, %s648
      %p650 = scmp.lt.s32.totalorder %s32, 1
      %s651 = scalar_select %p650, %s32, 1
      %s652 = smul.addr %s651, 3
      %s653 = smul.addr %s652, 8
      %s654 = scalar_lea.vmem %s20, %s653
      %v656 = vld [vmem:[%s639] sm:$0xff]
      %v657 = vld [vmem:[%s639 + $0x8] sm:$0xff]
      %v658 = vld [vmem:[%s1] sm:$0xff]
      %v659 = vld [vmem:[%s1 + $0x8] sm:$0xff]
      %v660 = vld [vmem:[%s1 + $0x10] sm:$0xff]
      %v661 = vld [vmem:[%s1 + $0x18] sm:$0xff]
      %v662 = vld [vmem:[%s1 + $0x20] sm:$0xff]
      %v663 = vld [vmem:[%s1 + $0x28] sm:$0xff]
      %vm664 = vcmask 392192
      %v666 = vsel %vm664, %v656, 0
      %v669 = vsel %vm664, %v657, 0
      %671 = vmatprep.subr.mxu0 0.0
      %672 = vmatpush1.msra.mxu0 %v658
      %673 = vmatprep.subr.mxu0 0.0
      %674 = vmatpush1.msra.mxu0 %v659
      %675 = vmatprep.subr.mxu0 0.0
      %676 = vmatpush1.msra.mxu0 %v660
      %677 = vmatprep.subr.mxu0 0.0
      %678 = vmatpush1.msra.mxu0 %v661
      %679 = vmatprep.subr.mxu0 0.0
      %680 = vmatpush1.msra.mxu0 %v662
      %681 = vmatprep.subr.mxu0 0.0
      %682 = vmatpush1.msra.mxu0 %v663
      %683 = vmatprep.subr.mxu0 0.0
      %684 = vmatpush1.msra.mxu0 0.0
      %685 = vmatprep.subr.mxu0 0.0
      %686 = vmatpush1.msra.mxu0 0.0
      %687 = vmatprep.subr.mxu0 0.0
      %688 = vmatpush1.msra.mxu0 0.0
      %689 = vmatprep.subr.mxu0 0.0
      %690 = vmatpush1.msra.mxu0 0.0
      %691 = vmatprep.subr.mxu0 0.0
      %692 = vmatpush1.msra.mxu0 0.0
      %693 = vmatprep.subr.mxu0 0.0
      %694 = vmatpush1.msra.mxu0 0.0
      %695 = vmatprep.subr.mxu0 0.0
      %696 = vmatpush1.msra.mxu0 0.0
      %697 = vmatprep.subr.mxu0 0.0
      %698 = vmatpush1.msra.mxu0 0.0
      %699 = vmatprep.subr.mxu0 0.0
      %700 = vmatpush1.msra.mxu0 0.0
      %701 = vmatprep.subr.mxu0 0.0
      %702 = vmatpush1.msra.mxu0 0.0
      %703 = vmatprep.subr.mxu0 0.0
      %704 = vmatpush1.msra.mxu0 0.0
      %705 = vmatprep.subr.mxu0 0.0
      %706 = vmatpush1.msra.mxu0 0.0
      %707 = vmatprep.subr.mxu0 0.0
      %708 = vmatpush1.msra.mxu0 0.0
      %709 = vmatprep.subr.mxu0 0.0
      %710 = vmatpush1.msra.mxu0 0.0
      %711 = vmatprep.subr.mxu0 0.0
      %712 = vmatpush1.msra.mxu0 0.0
      %713 = vmatprep.subr.mxu0 0.0
      %714 = vmatpush1.msra.mxu0 0.0
      %715 = vmatprep.subr.mxu0 0.0
      %716 = vmatpush1.msra.mxu0 0.0
      %717 = vmatprep.subr.mxu0 0.0
      %718 = vmatpush1.msra.mxu0 0.0
      %719 = vmatprep.subr.mxu0 0.0
      %720 = vmatpush1.msra.mxu0 0.0
      %721 = vmatprep.subr.mxu0 0.0
      %722 = vmatpush1.msra.mxu0 0.0
      %723 = vmatprep.subr.mxu0 0.0
      %724 = vmatpush1.msra.mxu0 0.0
      %725 = vmatprep.subr.mxu0 0.0
      %726 = vmatpush1.msra.mxu0 0.0
      %727 = vmatprep.subr.mxu0 0.0
      %728 = vmatpush1.msra.mxu0 0.0
      %729 = vmatprep.subr.mxu0 0.0
      %730 = vmatpush1.msra.mxu0 0.0
      %731 = vmatprep.subr.mxu0 0.0
      %732 = vmatpush1.msra.mxu0 0.0
      %733 = vmatprep.subr.mxu0 0.0
      %734 = vmatpush1.msra.mxu0 0.0
      %735 = vmatprep.mubr.f32.mxu0 0.0
      %736 = vmatmul.mubr.f32.gmra.mrb[0].mxu0 %v666
      %v737 = vpop.f32.mrb[0].mxu0
      %v738 = vadd.f32 0.0, %v737
      %v739 = vpop.f32.mrb[0].mxu0
      %740 = vmatprep.mubr.f32.mxu0 0.0
      %741 = vmatmul.mubr.f32.gmra.mrb[0].mxu0 %v669
      %v742 = vpop.f32.mrb[0].mxu0
      %v743 = vadd.f32 0.0, %v742
      %v744 = vpop.f32.mrb[0].mxu0
      %745 = vdwg.mxu0
      %v746 = vld [vmem:[%s2] sm:$0x1]
      %vm747 = vcmask 253952
      %748 = vst.msk [vmem:[%s644] sm:$0x1] %vm747, %v746
      %vm749 = vcmask 261120
      %750 = vst.msk [vmem:[%s644 + $0x1] sm:$0xff] %vm749, %v738
      %751 = vst.msk [vmem:[%s644 + $0x9] sm:$0xff] %vm749, %v743
      %v752 = vld [vmem:[%s644] sm:$0xff]
      %v753 = vld [vmem:[%s644 + $0x8] sm:$0xff]
      %v754 = vld [vmem:[%s644 + $0x10] sm:$0x1]
      %v755 = vld [vmem:[%s3] sm:$0xff]
      %v756 = vld [vmem:[%s3 + $0x8] sm:$0xff]
      %v757 = vld [vmem:[%s3 + $0x10] sm:$0x1]
      %v758 = vadd.f32 %v752, %v755
      %v759 = vadd.f32 %v753, %v756
      %v760 = vadd.f32 %v754, %v757
      %v761 = vld [vmem:[%s4] sm:$0x1]
      %v762 = vld [vmem:[%s5] sm:$0x1]
      %v763 = vsel %vm749, %v758, 0.0
      %764 = vadd.xlane.f32.xlu0 %v763
      %v765 = vpop.xlane.xlu0 %764
      %v766 = vsel %vm749, %v759, 0.0
      %767 = vadd.xlane.f32.xlu0 %v766
      %v768 = vpop.xlane.xlu0 %767
      %v769 = vsel %vm747, %v760, 0.0
      %770 = vadd.xlane.f32.xlu0 %v769
      %v771 = vpop.xlane.xlu0 %770
      %v772 = vrcp.pop 32.0
      %v773 = vmul.f32 %v765, %v772
      %v774 = vmul.f32 %v768, %v772
      %v775 = vmul.f32 %v771, %v772
      %v776 = vsub.f32 %v758, %v773
      %v777 = vsub.f32 %v759, %v774
      %v778 = vsub.f32 %v760, %v775
      %v779 = vmul.f32 %v776, %v776
      %v780 = vmul.f32 %v777, %v777
      %v781 = vmul.f32 %v778, %v778
      %v782 = vsel %vm749, %v779, 0.0
      %783 = vadd.xlane.f32.xlu0 %v782
      %v784 = vpop.xlane.xlu0 %783
      %v785 = vsel %vm749, %v780, 0.0
      %786 = vadd.xlane.f32.xlu0 %v785
      %v787 = vpop.xlane.xlu0 %786
      %v788 = vsel %vm747, %v781, 0.0
      %789 = vadd.xlane.f32.xlu0 %v788
      %v790 = vpop.xlane.xlu0 %789
      %v791 = vmul.f32 %v784, %v772
      %v792 = vmul.f32 %v787, %v772
      %v793 = vmul.f32 %v790, %v772
      %v794 = vadd.f32 %v791, 1e-05
      %v795 = vadd.f32 %v792, 1e-05
      %v796 = vadd.f32 %v793, 1e-05
      %v797 = vrsqrt.pop %v794
      %v798 = vrsqrt.pop %v795
      %v799 = vrsqrt.pop %v796
      %v800 = vmul.f32 %v776, %v797
      %v801 = vmul.f32 %v777, %v798
      %v802 = vmul.f32 %v778, %v799
      %v804 = vlaneseq
      %v805 = vshrl.u32 %v804, 7
      %v806 = vsub.s32 0, %v805
      %v807 = vrot.slane %v761, %v806
      %v809 = vmul.f32 %v800, %v807
      %v810 = vmul.f32 %v801, %v807
      %v811 = vmul.f32 %v802, %v807
      %v813 = vlaneseq
      %v814 = vshrl.u32 %v813, 7
      %v815 = vsub.s32 0, %v814
      %v816 = vrot.slane %v762, %v815
      %v818 = vadd.f32 %v809, %v816
      %v819 = vadd.f32 %v810, %v816
      %v820 = vadd.f32 %v811, %v816
      %821 = vst.msk [vmem:[%s644] sm:$0xff] %vm749, %v818
      %822 = vst.msk [vmem:[%s644 + $0x8] sm:$0xff] %vm749, %v819
      %823 = vst.msk [vmem:[%s644 + $0x10] sm:$0x1] %vm747, %v820
      %v824 = vld [vmem:[%s6] sm:$0x1]
      %v825 = vld [vmem:[%s7] sm:$0x1]
      %v826 = vsel %vm749, %v818, 0.0
      %827 = vadd.xlane.f32.xlu0 %v826
      %v828 = vpop.xlane.xlu0 %827
      %v829 = vsel %vm749, %v819, 0.0
      %830 = vadd.xlane.f32.xlu0 %v829
      %v831 = vpop.xlane.xlu0 %830
      %v832 = vsel %vm747, %v820, 0.0
      %833 = vadd.xlane.f32.xlu0 %v832
      %v834 = vpop.xlane.xlu0 %833
      %v835 = vmul.f32 %v828, %v772
      %v836 = vmul.f32 %v831, %v772
      %v837 = vmul.f32 %v834, %v772
      %v838 = vsub.f32 %v818, %v835
      %v839 = vsub.f32 %v819, %v836
      %v840 = vsub.f32 %v820, %v837
      %v841 = vmul.f32 %v838, %v838
      %v842 = vmul.f32 %v839, %v839
      %v843 = vmul.f32 %v840, %v840
      %v844 = vsel %vm749, %v841, 0.0
      %845 = vadd.xlane.f32.xlu0 %v844
      %v846 = vpop.xlane.xlu0 %845
      %v847 = vsel %vm749, %v842, 0.0
      %848 = vadd.xlane.f32.xlu0 %v847
      %v849 = vpop.xlane.xlu0 %848
      %v850 = vsel %vm747, %v843, 0.0
      %851 = vadd.xlane.f32.xlu0 %v850
      %v852 = vpop.xlane.xlu0 %851
      %v853 = vmul.f32 %v846, %v772
      %v854 = vmul.f32 %v849, %v772
      %v855 = vmul.f32 %v852, %v772
      %v856 = vadd.f32 %v853, 1e-05
      %v857 = vadd.f32 %v854, 1e-05
      %v858 = vadd.f32 %v855, 1e-05
      %v859 = vrsqrt.pop %v856
      %v860 = vrsqrt.pop %v857
      %v861 = vrsqrt.pop %v858
      %v862 = vmul.f32 %v838, %v859
      %v863 = vmul.f32 %v839, %v860
      %v864 = vmul.f32 %v840, %v861
      %v866 = vlaneseq
      %v867 = vshrl.u32 %v866, 7
      %v868 = vsub.s32 0, %v867
      %v869 = vrot.slane %v824, %v868
      %v871 = vmul.f32 %v862, %v869
      %v872 = vmul.f32 %v863, %v869
      %v873 = vmul.f32 %v864, %v869
      %v875 = vlaneseq
      %v876 = vshrl.u32 %v875, 7
      %v877 = vsub.s32 0, %v876
      %v878 = vrot.slane %v825, %v877
      %v880 = vadd.f32 %v871, %v878
      %v881 = vadd.f32 %v872, %v878
      %v882 = vadd.f32 %v873, %v878
      %v883 = vpack.c.bf16 %v881, %v880
      %v884 = vpack.c.bf16 %v882, %v882
      %v885 = vld [vmem:[%s8] sm:$0xf]
      %v886 = vld [vmem:[%s8 + $0x4] sm:$0xf]
      %v887 = vld [vmem:[%s8 + $0x8] sm:$0xf]
      %v888 = vld [vmem:[%s8 + $0xc] sm:$0xf]
      %v889 = vld [vmem:[%s9] sm:$0x1]
      %v891 = vlaneseq
      %v892 = vshrl.u32 %v891, 7
      %v893 = vsub.s32 0, %v892
      %v894 = vrot.slane %v889, %v893
      %v900 = vunpack.c.l.b16 %v885
      %v901 = vunpack.c.l.b16 %v886
      %v902 = vunpack.c.l.b16 %v887
      %v903 = vunpack.c.l.b16 %v888
      %v904 = vpack.c.b16 %v901, %v900
      %v905 = vpack.c.b16 %v903, %v902
      %v909 = vsel %vm749, %v883, 0
      %v912 = vsel %vm749, %v884, 0
      %914 = vmatprep.subr.bf16.mxu0 0
      %915 = vmatpush1.bf16.msra.mxu0 %v904
      %916 = vmatprep.subr.bf16.mxu0 0
      %917 = vmatpush1.bf16.msra.mxu0 %v905
      %918 = vmatprep.subr.bf16.mxu0 0
      %919 = vmatpush1.bf16.msra.mxu0 0
      %920 = vmatprep.subr.bf16.mxu0 0
      %921 = vmatpush1.bf16.msra.mxu0 0
      %922 = vmatprep.subr.bf16.mxu0 0
      %923 = vmatpush1.bf16.msra.mxu0 0
      %924 = vmatprep.subr.bf16.mxu0 0
      %925 = vmatpush1.bf16.msra.mxu0 0
      %926 = vmatprep.subr.bf16.mxu0 0
      %927 = vmatpush1.bf16.msra.mxu0 0
      %928 = vmatprep.subr.bf16.mxu0 0
      %929 = vmatpush1.bf16.msra.mxu0 0
      %930 = vmatprep.subr.bf16.mxu0 0
      %931 = vmatpush1.bf16.msra.mxu0 0
      %932 = vmatprep.subr.bf16.mxu0 0
      %933 = vmatpush1.bf16.msra.mxu0 0
      %934 = vmatprep.subr.bf16.mxu0 0
      %935 = vmatpush1.bf16.msra.mxu0 0
      %936 = vmatprep.subr.bf16.mxu0 0
      %937 = vmatpush1.bf16.msra.mxu0 0
      %938 = vmatprep.subr.bf16.mxu0 0
      %939 = vmatpush1.bf16.msra.mxu0 0
      %940 = vmatprep.subr.bf16.mxu0 0
      %941 = vmatpush1.bf16.msra.mxu0 0
      %942 = vmatprep.subr.bf16.mxu0 0
      %943 = vmatpush1.bf16.msra.mxu0 0
      %944 = vmatprep.subr.bf16.mxu0 0
      %945 = vmatpush1.bf16.msra.mxu0 0
      %946 = vmatprep.mubr.bf16.mxu0 0
      %947 = vmatmul.mubr.bf16.gmra.mrb[0].mxu0 %v909
      %v948 = vpop.f32.mrb[0].mxu0
      %v949 = vadd.f32 %v894, %v948
      %v950 = vpop.f32.mrb[0].mxu0
      %v951 = vpop.f32.mrb[0].mxu0
      %v952 = vadd.f32 %v894, %v951
      %v953 = vpop.f32.mrb[0].mxu0
      %954 = vmatprep.mubr.bf16.mxu0 0
      %955 = vmatmul.mubr.bf16.gmra.mrb[0].mxu0 %v912
      %v956 = vpop.f32.mrb[0].mxu0
      %v957 = vadd.f32 %v894, %v956
      %v958 = vpop.f32.mrb[0].mxu0
      %v959 = vpop.f32.mrb[0].mxu0
      %v960 = vpop.f32.mrb[0].mxu0
      %961 = vdwg.mxu0
      %965 = vrot.lane.b32.xlu0 %v949, 96
      %v966 = vpop.permute.xlu0 %965
      %967 = vrot.lane.b32.xlu0 %v952, 96
      %v968 = vpop.permute.xlu0 %967
      %969 = vrot.lane.b32.xlu0 %v957, 96
      %v970 = vpop.permute.xlu0 %969
      %vm971 = vcmask 64512
      %v972 = vsel %vm971, %v949, 0
      %v974 = vsel %vm971, %v952, 0
      %v976 = vsel %vm971, %v957, 0
      %v978 = vsel %vm971, %v966, 0
      %v980 = vsel %vm971, %v968, 0
      %v982 = vsel %vm971, %v970, 0
      %984 = vmatprep.subr.mxu0 0.0
      %985 = vmatpush1.xpose.msra.mxu0 %v978
      %986 = vmatprep.subr.mxu0 0.0
      %987 = vmatpush1.xpose.msra.mxu0 %v980
      %988 = vmatprep.subr.mxu0 0.0
      %989 = vmatpush1.xpose.msra.mxu0 %v982
      %990 = vmatprep.subr.mxu0 0.0
      %991 = vmatpush1.xpose.msra.mxu0 0.0
      %992 = vmatprep.subr.mxu0 0.0
      %993 = vmatpush1.xpose.msra.mxu0 0.0
      %994 = vmatprep.subr.mxu0 0.0
      %995 = vmatpush1.xpose.msra.mxu0 0.0
      %996 = vmatprep.subr.mxu0 0.0
      %997 = vmatpush1.xpose.msra.mxu0 0.0
      %998 = vmatprep.subr.mxu0 0.0
      %999 = vmatpush1.xpose.msra.mxu0 0.0
      %1000 = vmatprep.subr.mxu0 0.0
      %1001 = vmatpush1.xpose.msra.mxu0 0.0
      %1002 = vmatprep.subr.mxu0 0.0
      %1003 = vmatpush1.xpose.msra.mxu0 0.0
      %1004 = vmatprep.subr.mxu0 0.0
      %1005 = vmatpush1.xpose.msra.mxu0 0.0
      %1006 = vmatprep.subr.mxu0 0.0
      %1007 = vmatpush1.xpose.msra.mxu0 0.0
      %1008 = vmatprep.subr.mxu0 0.0
      %1009 = vmatpush1.xpose.msra.mxu0 0.0
      %1010 = vmatprep.subr.mxu0 0.0
      %1011 = vmatpush1.xpose.msra.mxu0 0.0
      %1012 = vmatprep.subr.mxu0 0.0
      %1013 = vmatpush1.xpose.msra.mxu0 0.0
      %1014 = vmatprep.subr.mxu0 0.0
      %1015 = vmatpush1.xpose.msra.mxu0 0.0
      %1016 = vmatprep.subr.mxu0 0.0
      %1017 = vmatpush1.xpose.msra.mxu0 0.0
      %1018 = vmatprep.subr.mxu0 0.0
      %1019 = vmatpush1.xpose.msra.mxu0 0.0
      %1020 = vmatprep.subr.mxu0 0.0
      %1021 = vmatpush1.xpose.msra.mxu0 0.0
      %1022 = vmatprep.subr.mxu0 0.0
      %1023 = vmatpush1.xpose.msra.mxu0 0.0
      %1024 = vmatprep.subr.mxu0 0.0
      %1025 = vmatpush1.xpose.msra.mxu0 0.0
      %1026 = vmatprep.subr.mxu0 0.0
      %1027 = vmatpush1.xpose.msra.mxu0 0.0
      %1028 = vmatprep.subr.mxu0 0.0
      %1029 = vmatpush1.xpose.msra.mxu0 0.0
      %1030 = vmatprep.subr.mxu0 0.0
      %1031 = vmatpush1.xpose.msra.mxu0 0.0
      %1032 = vmatprep.subr.mxu0 0.0
      %1033 = vmatpush1.xpose.msra.mxu0 0.0
      %1034 = vmatprep.subr.mxu0 0.0
      %1035 = vmatpush1.xpose.msra.mxu0 0.0
      %1036 = vmatprep.subr.mxu0 0.0
      %1037 = vmatpush1.xpose.msra.mxu0 0.0
      %1038 = vmatprep.subr.mxu0 0.0
      %1039 = vmatpush1.xpose.msra.mxu0 0.0
      %1040 = vmatprep.subr.mxu0 0.0
      %1041 = vmatpush1.xpose.msra.mxu0 0.0
      %1042 = vmatprep.subr.mxu0 0.0
      %1043 = vmatpush1.xpose.msra.mxu0 0.0
      %1044 = vmatprep.subr.mxu0 0.0
      %1045 = vmatpush1.xpose.msra.mxu0 0.0
      %1046 = vmatprep.subr.mxu0 0.0
      %1047 = vmatpush1.xpose.msra.mxu0 0.0
      %1048 = vmatprep.mubr.f32.mxu0 0.0
      %1049 = vmatmul.mubr.f32.gmra.mrb[0].mxu0 %v972
      %v1050 = vpop.f32.mrb[0].mxu0
      %v1051 = vadd.f32 0.0, %v1050
      %v1052 = vpop.f32.mrb[0].mxu0
      %1053 = vmatprep.mubr.f32.mxu0 0.0
      %1054 = vmatmul.mubr.f32.gmra.mrb[0].mxu0 %v974
      %v1055 = vpop.f32.mrb[0].mxu0
      %v1056 = vadd.f32 0.0, %v1055
      %v1057 = vpop.f32.mrb[0].mxu0
      %1058 = vmatprep.mubr.f32.mxu0 0.0
      %1059 = vmatmul.mubr.f32.gmra.mrb[0].mxu0 %v976
      %v1060 = vpop.f32.mrb[0].mxu0
      %v1061 = vadd.f32 0.0, %v1060
      %v1062 = vpop.f32.mrb[0].mxu0
      %1063 = vdwg.mxu0
      %v1064 = vmul.f32 %v1051, 0.35355338
      %v1065 = vmul.f32 %v1056, 0.35355338
      %v1066 = vmul.f32 %v1061, 0.35355338
      %vm1067 = vcmask 138240
      %v1068 = vsel %vm1067, %v1064, -inf
      %1069 = vmax.xlane.f32.xlu0 %v1068
      %v1070 = vpop.xlane.xlu0 %1069
      %v1071 = vsel %vm1067, %v1065, -inf
      %1072 = vmax.xlane.f32.xlu0 %v1071
      %v1073 = vpop.xlane.xlu0 %1072
      %vm1074 = vcmask 131072
      %v1075 = vsel %vm1074, %v1066, -inf
      %1076 = vmax.xlane.f32.xlu0 %v1075
      %v1077 = vpop.xlane.xlu0 %1076
      %v1078 = vsub.f32 %v1064, %v1070
      %v1079 = vsub.f32 %v1065, %v1073
      %v1080 = vsub.f32 %v1066, %v1077
      %v1081 = vmul.f32 %v1078, 1.442695
      %v1082 = vpow.pop %v1081
      %v1083 = vmul.f32 %v1079, 1.442695
      %v1084 = vpow.pop %v1083
      %v1085 = vmul.f32 %v1080, 1.442695
      %v1086 = vpow.pop %v1085
      %v1087 = vsel %vm1067, %v1082, 0.0
      %1088 = vadd.xlane.f32.xlu0 %v1087
      %v1089 = vpop.xlane.xlu0 %1088
      %v1090 = vsel %vm1067, %v1084, 0.0
      %1091 = vadd.xlane.f32.xlu0 %v1090
      %v1092 = vpop.xlane.xlu0 %1091
      %v1093 = vsel %vm1074, %v1086, 0.0
      %1094 = vadd.xlane.f32.xlu0 %v1093
      %v1095 = vpop.xlane.xlu0 %1094
      %v1096 = vrcp.pop %v1089
      %v1097 = vrcp.pop %v1092
      %v1098 = vrcp.pop %v1095
      %v1099 = vmul.f32 %v1082, %v1096
      %v1100 = vmul.f32 %v1084, %v1097
      %v1101 = vmul.f32 %v1086, %v1098
      %1102 = vrot.lane.b32.xlu0 %v949, 64
      %v1103 = vpop.permute.xlu0 %1102
      %1104 = vrot.lane.b32.xlu0 %v952, 64
      %v1105 = vpop.permute.xlu0 %1104
      %1106 = vrot.lane.b32.xlu0 %v957, 64
      %v1107 = vpop.permute.xlu0 %1106
      %v1111 = vsel %vm1067, %v1099, 0
      %v1114 = vsel %vm1067, %v1100, 0
      %v1117 = vsel %vm1067, %v1101, 0
      %vm1119 = vcmask 1040384
      %v1120 = vsel %vm1119, %v1107, 0
      %1122 = vmatprep.subr.mxu0 0.0
      %1123 = vmatpush1.msra.mxu0 %v1103
      %1124 = vmatprep.subr.mxu0 0.0
      %1125 = vmatpush1.msra.mxu0 %v1105
      %1126 = vmatprep.subr.mxu0 0.0
      %1127 = vmatpush1.msra.mxu0 %v1120
      %1128 = vmatprep.subr.mxu0 0.0
      %1129 = vmatpush1.msra.mxu0 0.0
      %1130 = vmatprep.subr.mxu0 0.0
      %1131 = vmatpush1.msra.mxu0 0.0
      %1132 = vmatprep.subr.mxu0 0.0
      %1133 = vmatpush1.msra.mxu0 0.0
      %1134 = vmatprep.subr.mxu0 0.0
      %1135 = vmatpush1.msra.mxu0 0.0
      %1136 = vmatprep.subr.mxu0 0.0
      %1137 = vmatpush1.msra.mxu0 0.0
      %1138 = vmatprep.subr.mxu0 0.0
      %1139 = vmatpush1.msra.mxu0 0.0
      %1140 = vmatprep.subr.mxu0 0.0
      %1141 = vmatpush1.msra.mxu0 0.0
      %1142 = vmatprep.subr.mxu0 0.0
      %1143 = vmatpush1.msra.mxu0 0.0
      %1144 = vmatprep.subr.mxu0 0.0
      %1145 = vmatpush1.msra.mxu0 0.0
      %1146 = vmatprep.subr.mxu0 0.0
      %1147 = vmatpush1.msra.mxu0 0.0
      %1148 = vmatprep.subr.mxu0 0.0
      %1149 = vmatpush1.msra.mxu0 0.0
      %1150 = vmatprep.subr.mxu0 0.0
      %1151 = vmatpush1.msra.mxu0 0.0
      %1152 = vmatprep.subr.mxu0 0.0
      %1153 = vmatpush1.msra.mxu0 0.0
      %1154 = vmatprep.subr.mxu0 0.0
      %1155 = vmatpush1.msra.mxu0 0.0
      %1156 = vmatprep.subr.mxu0 0.0
      %1157 = vmatpush1.msra.mxu0 0.0
      %1158 = vmatprep.subr.mxu0 0.0
      %1159 = vmatpush1.msra.mxu0 0.0
      %1160 = vmatprep.subr.mxu0 0.0
      %1161 = vmatpush1.msra.mxu0 0.0
      %1162 = vmatprep.subr.mxu0 0.0
      %1163 = vmatpush1.msra.mxu0 0.0
      %1164 = vmatprep.subr.mxu0 0.0
      %1165 = vmatpush1.msra.mxu0 0.0
      %1166 = vmatprep.subr.mxu0 0.0
      %1167 = vmatpush1.msra.mxu0 0.0
      %1168 = vmatprep.subr.mxu0 0.0
      %1169 = vmatpush1.msra.mxu0 0.0
      %1170 = vmatprep.subr.mxu0 0.0
      %1171 = vmatpush1.msra.mxu0 0.0
      %1172 = vmatprep.subr.mxu0 0.0
      %1173 = vmatpush1.msra.mxu0 0.0
      %1174 = vmatprep.subr.mxu0 0.0
      %1175 = vmatpush1.msra.mxu0 0.0
      %1176 = vmatprep.subr.mxu0 0.0
      %1177 = vmatpush1.msra.mxu0 0.0
      %1178 = vmatprep.subr.mxu0 0.0
      %1179 = vmatpush1.msra.mxu0 0.0
      %1180 = vmatprep.subr.mxu0 0.0
      %1181 = vmatpush1.msra.mxu0 0.0
      %1182 = vmatprep.subr.mxu0 0.0
      %1183 = vmatpush1.msra.mxu0 0.0
      %1184 = vmatprep.subr.mxu0 0.0
      %1185 = vmatpush1.msra.mxu0 0.0
      %1186 = vmatprep.mubr.f32.mxu0 0.0
      %1187 = vmatmul.mubr.f32.gmra.mrb[0].mxu0 %v1111
      %v1188 = vpop.f32.mrb[0].mxu0
      %v1189 = vadd.f32 0.0, %v1188
      %v1190 = vpop.f32.mrb[0].mxu0
      %1191 = vmatprep.mubr.f32.mxu0 0.0
      %1192 = vmatmul.mubr.f32.gmra.mrb[0].mxu0 %v1114
      %v1193 = vpop.f32.mrb[0].mxu0
      %v1194 = vadd.f32 0.0, %v1193
      %v1195 = vpop.f32.mrb[0].mxu0
      %1196 = vmatprep.mubr.f32.mxu0 0.0
      %1197 = vmatmul.mubr.f32.gmra.mrb[0].mxu0 %v1117
      %v1198 = vpop.f32.mrb[0].mxu0
      %v1199 = vadd.f32 0.0, %v1198
      %v1200 = vpop.f32.mrb[0].mxu0
      %1201 = vdwg.mxu0
      %1202 = vst.msk [vmem:[#allocation2] sm:$0xff] %vm971, %v1189
      %1203 = vst.msk [vmem:[#allocation2 + $0x8] sm:$0xff] %vm971, %v1194
      %vm1204 = vcmask 57344
      %1205 = vst.msk [vmem:[#allocation2 + $0x10] sm:$0x1] %vm1204, %v1199
      %1206 = vrot.lane.b32.xlu0 %v949, 120
      %v1207 = vpop.permute.xlu0 %1206
      %1208 = vrot.lane.b32.xlu0 %v952, 120
      %v1209 = vpop.permute.xlu0 %1208
      %1210 = vrot.lane.b32.xlu0 %v957, 120
      %v1211 = vpop.permute.xlu0 %1210
      %1212 = vrot.lane.b32.xlu0 %v949, 88
      %v1213 = vpop.permute.xlu0 %1212
      %1214 = vrot.lane.b32.xlu0 %v952, 88
      %v1215 = vpop.permute.xlu0 %1214
      %1216 = vrot.lane.b32.xlu0 %v957, 88
      %v1217 = vpop.permute.xlu0 %1216
      %v1218 = vsel %vm971, %v1207, 0
      %v1220 = vsel %vm971, %v1209, 0
      %v1222 = vsel %vm971, %v1211, 0
      %v1224 = vsel %vm971, %v1213, 0
      %v1226 = vsel %vm971, %v1215, 0
      %v1228 = vsel %vm971, %v1217, 0
      %1230 = vmatprep.subr.mxu0 0.0
      %1231 = vmatpush1.xpose.msra.mxu0 %v1224
      %1232 = vmatprep.subr.mxu0 0.0
      %1233 = vmatpush1.xpose.msra.mxu0 %v1226
      %1234 = vmatprep.subr.mxu0 0.0
      %1235 = vmatpush1.xpose.msra.mxu0 %v1228
      %1236 = vmatprep.subr.mxu0 0.0
      %1237 = vmatpush1.xpose.msra.mxu0 0.0
      %1238 = vmatprep.subr.mxu0 0.0
      %1239 = vmatpush1.xpose.msra.mxu0 0.0
      %1240 = vmatprep.subr.mxu0 0.0
      %1241 = vmatpush1.xpose.msra.mxu0 0.0
      %1242 = vmatprep.subr.mxu0 0.0
      %1243 = vmatpush1.xpose.msra.mxu0 0.0
      %1244 = vmatprep.subr.mxu0 0.0
      %1245 = vmatpush1.xpose.msra.mxu0 0.0
      %1246 = vmatprep.subr.mxu0 0.0
      %1247 = vmatpush1.xpose.msra.mxu0 0.0
      %1248 = vmatprep.subr.mxu0 0.0
      %1249 = vmatpush1.xpose.msra.mxu0 0.0
      %1250 = vmatprep.subr.mxu0 0.0
      %1251 = vmatpush1.xpose.msra.mxu0 0.0
      %1252 = vmatprep.subr.mxu0 0.0
      %1253 = vmatpush1.xpose.msra.mxu0 0.0
      %1254 = vmatprep.subr.mxu0 0.0
      %1255 = vmatpush1.xpose.msra.mxu0 0.0
      %1256 = vmatprep.subr.mxu0 0.0
      %1257 = vmatpush1.xpose.msra.mxu0 0.0
      %1258 = vmatprep.subr.mxu0 0.0
      %1259 = vmatpush1.xpose.msra.mxu0 0.0
      %1260 = vmatprep.subr.mxu0 0.0
      %1261 = vmatpush1.xpose.msra.mxu0 0.0
      %1262 = vmatprep.subr.mxu0 0.0
      %1263 = vmatpush1.xpose.msra.mxu0 0.0
      %1264 = vmatprep.subr.mxu0 0.0
      %1265 = vmatpush1.xpose.msra.mxu0 0.0
      %1266 = vmatprep.subr.mxu0 0.0
      %1267 = vmatpush1.xpose.msra.mxu0 0.0
      %1268 = vmatprep.subr.mxu0 0.0
      %1269 = vmatpush1.xpose.msra.mxu0 0.0
      %1270 = vmatprep.subr.mxu0 0.0
      %1271 = vmatpush1.xpose.msra.mxu0 0.0
      %1272 = vmatprep.subr.mxu0 0.0
      %1273 = vmatpush1.xpose.msra.mxu0 0.0
      %1274 = vmatprep.subr.mxu0 0.0
      %1275 = vmatpush1.xpose.msra.mxu0 0.0
      %1276 = vmatprep.subr.mxu0 0.0
      %1277 = vmatpush1.xpose.msra.mxu0 0.0
      %1278 = vmatprep.subr.mxu0 0.0
      %1279 = vmatpush1.xpose.msra.mxu0 0.0
      %1280 = vmatprep.subr.mxu0 0.0
      %1281 = vmatpush1.xpose.msra.mxu0 0.0
      %1282 = vmatprep.subr.mxu0 0.0
      %1283 = vmatpush1.xpose.msra.mxu0 0.0
      %1284 = vmatprep.subr.mxu0 0.0
      %1285 = vmatpush1.xpose.msra.mxu0 0.0
      %1286 = vmatprep.subr.mxu0 0.0
      %1287 = vmatpush1.xpose.msra.mxu0 0.0
      %1288 = vmatprep.subr.mxu0 0.0
      %1289 = vmatpush1.xpose.msra.mxu0 0.0
      %1290 = vmatprep.subr.mxu0 0.0
      %1291 = vmatpush1.xpose.msra.mxu0 0.0
      %1292 = vmatprep.subr.mxu0 0.0
      %1293 = vmatpush1.xpose.msra.mxu0 0.0
      %1294 = vmatprep.mubr.f32.mxu0 0.0
      %1295 = vmatmul.mubr.f32.gmra.mrb[0].mxu0 %v1218
      %v1296 = vpop.f32.mrb[0].mxu0
      %v1297 = vadd.f32 0.0, %v1296
      %v1298 = vpop.f32.mrb[0].mxu0
      %1299 = vmatprep.mubr.f32.mxu0 0.0
      %1300 = vmatmul.mubr.f32.gmra.mrb[0].mxu0 %v1220
      %v1301 = vpop.f32.mrb[0].mxu0
      %v1302 = vadd.f32 0.0, %v1301
      %v1303 = vpop.f32.mrb[0].mxu0
      %1304 = vmatprep.mubr.f32.mxu0 0.0
      %1305 = vmatmul.mubr.f32.gmra.mrb[0].mxu0 %v1222
      %v1306 = vpop.f32.mrb[0].mxu0
      %v1307 = vadd.f32 0.0, %v1306
      %v1308 = vpop.f32.mrb[0].mxu0
      %1309 = vdwg.mxu0
      %v1310 = vmul.f32 %v1297, 0.35355338
      %v1311 = vmul.f32 %v1302, 0.35355338
      %v1312 = vmul.f32 %v1307, 0.35355338
      %v1313 = vsel %vm1067, %v1310, -inf
      %1314 = vmax.xlane.f32.xlu0 %v1313
      %v1315 = vpop.xlane.xlu0 %1314
      %v1316 = vsel %vm1067, %v1311, -inf
      %1317 = vmax.xlane.f32.xlu0 %v1316
      %v1318 = vpop.xlane.xlu0 %1317
      %v1319 = vsel %vm1074, %v1312, -inf
      %1320 = vmax.xlane.f32.xlu0 %v1319
      %v1321 = vpop.xlane.xlu0 %1320
      %v1322 = vsub.f32 %v1310, %v1315
      %v1323 = vsub.f32 %v1311, %v1318
      %v1324 = vsub.f32 %v1312, %v1321
      %v1325 = vmul.f32 %v1322, 1.442695
      %v1326 = vpow.pop %v1325
      %v1327 = vmul.f32 %v1323, 1.442695
      %v1328 = vpow.pop %v1327
      %v1329 = vmul.f32 %v1324, 1.442695
      %v1330 = vpow.pop %v1329
      %v1331 = vsel %vm1067, %v1326, 0.0
      %1332 = vadd.xlane.f32.xlu0 %v1331
      %v1333 = vpop.xlane.xlu0 %1332
      %v1334 = vsel %vm1067, %v1328, 0.0
      %1335 = vadd.xlane.f32.xlu0 %v1334
      %v1336 = vpop.xlane.xlu0 %1335
      %v1337 = vsel %vm1074, %v1330, 0.0
      %1338 = vadd.xlane.f32.xlu0 %v1337
      %v1339 = vpop.xlane.xlu0 %1338
      %v1340 = vrcp.pop %v1333
      %v1341 = vrcp.pop %v1336
      %v1342 = vrcp.pop %v1339
      %v1343 = vmul.f32 %v1326, %v1340
      %v1344 = vmul.f32 %v1328, %v1341
      %v1345 = vmul.f32 %v1330, %v1342
      %1346 = vrot.lane.b32.xlu0 %v949, 56
      %v1347 = vpop.permute.xlu0 %1346
      %1348 = vrot.lane.b32.xlu0 %v952, 56
      %v1349 = vpop.permute.xlu0 %1348
      %1350 = vrot.lane.b32.xlu0 %v957, 56
      %v1351 = vpop.permute.xlu0 %1350
      %v1355 = vsel %vm1067, %v1343, 0
      %v1358 = vsel %vm1067, %v1344, 0
      %v1361 = vsel %vm1067, %v1345, 0
      %v1363 = vsel %vm1119, %v1351, 0
      %1365 = vmatprep.subr.mxu0 0.0
      %1366 = vmatpush1.msra.mxu0 %v1347
      %1367 = vmatprep.subr.mxu0 0.0
      %1368 = vmatpush1.msra.mxu0 %v1349
      %1369 = vmatprep.subr.mxu0 0.0
      %1370 = vmatpush1.msra.mxu0 %v1363
      %1371 = vmatprep.subr.mxu0 0.0
      %1372 = vmatpush1.msra.mxu0 0.0
      %1373 = vmatprep.subr.mxu0 0.0
      %1374 = vmatpush1.msra.mxu0 0.0
      %1375 = vmatprep.subr.mxu0 0.0
      %1376 = vmatpush1.msra.mxu0 0.0
      %1377 = vmatprep.subr.mxu0 0.0
      %1378 = vmatpush1.msra.mxu0 0.0
      %1379 = vmatprep.subr.mxu0 0.0
      %1380 = vmatpush1.msra.mxu0 0.0
      %1381 = vmatprep.subr.mxu0 0.0
      %1382 = vmatpush1.msra.mxu0 0.0
      %1383 = vmatprep.subr.mxu0 0.0
      %1384 = vmatpush1.msra.mxu0 0.0
      %1385 = vmatprep.subr.mxu0 0.0
      %1386 = vmatpush1.msra.mxu0 0.0
      %1387 = vmatprep.subr.mxu0 0.0
      %1388 = vmatpush1.msra.mxu0 0.0
      %1389 = vmatprep.subr.mxu0 0.0
      %1390 = vmatpush1.msra.mxu0 0.0
      %1391 = vmatprep.subr.mxu0 0.0
      %1392 = vmatpush1.msra.mxu0 0.0
      %1393 = vmatprep.subr.mxu0 0.0
      %1394 = vmatpush1.msra.mxu0 0.0
      %1395 = vmatprep.subr.mxu0 0.0
      %1396 = vmatpush1.msra.mxu0 0.0
      %1397 = vmatprep.subr.mxu0 0.0
      %1398 = vmatpush1.msra.mxu0 0.0
      %1399 = vmatprep.subr.mxu0 0.0
      %1400 = vmatpush1.msra.mxu0 0.0
      %1401 = vmatprep.subr.mxu0 0.0
      %1402 = vmatpush1.msra.mxu0 0.0
      %1403 = vmatprep.subr.mxu0 0.0
      %1404 = vmatpush1.msra.mxu0 0.0
      %1405 = vmatprep.subr.mxu0 0.0
      %1406 = vmatpush1.msra.mxu0 0.0
      %1407 = vmatprep.subr.mxu0 0.0
      %1408 = vmatpush1.msra.mxu0 0.0
      %1409 = vmatprep.subr.mxu0 0.0
      %1410 = vmatpush1.msra.mxu0 0.0
      %1411 = vmatprep.subr.mxu0 0.0
      %1412 = vmatpush1.msra.mxu0 0.0
      %1413 = vmatprep.subr.mxu0 0.0
      %1414 = vmatpush1.msra.mxu0 0.0
      %1415 = vmatprep.subr.mxu0 0.0
      %1416 = vmatpush1.msra.mxu0 0.0
      %1417 = vmatprep.subr.mxu0 0.0
      %1418 = vmatpush1.msra.mxu0 0.0
      %1419 = vmatprep.subr.mxu0 0.0
      %1420 = vmatpush1.msra.mxu0 0.0
      %1421 = vmatprep.subr.mxu0 0.0
      %1422 = vmatpush1.msra.mxu0 0.0
      %1423 = vmatprep.subr.mxu0 0.0
      %1424 = vmatpush1.msra.mxu0 0.0
      %1425 = vmatprep.subr.mxu0 0.0
      %1426 = vmatpush1.msra.mxu0 0.0
      %1427 = vmatprep.subr.mxu0 0.0
      %1428 = vmatpush1.msra.mxu0 0.0
      %1429 = vmatprep.mubr.f32.mxu0 0.0
      %1430 = vmatmul.mubr.f32.gmra.mrb[0].mxu0 %v1355
      %v1431 = vpop.f32.mrb[0].mxu0
      %v1432 = vadd.f32 0.0, %v1431
      %v1433 = vpop.f32.mrb[0].mxu0
      %1434 = vmatprep.mubr.f32.mxu0 0.0
      %1435 = vmatmul.mubr.f32.gmra.mrb[0].mxu0 %v1358
      %v1436 = vpop.f32.mrb[0].mxu0
      %v1437 = vadd.f32 0.0, %v1436
      %v1438 = vpop.f32.mrb[0].mxu0
      %1439 = vmatprep.mubr.f32.mxu0 0.0
      %1440 = vmatmul.mubr.f32.gmra.mrb[0].mxu0 %v1361
      %v1441 = vpop.f32.mrb[0].mxu0
      %v1442 = vadd.f32 0.0, %v1441
      %v1443 = vpop.f32.mrb[0].mxu0
      %1444 = vdwg.mxu0
      %1448 = vrot.lane.b32.xlu0 %v1432, 8
      %v1449 = vpop.permute.xlu0 %1448
      %1450 = vrot.lane.b32.xlu0 %v1437, 8
      %v1451 = vpop.permute.xlu0 %1450
      %1452 = vrot.lane.b32.xlu0 %v1442, 8
      %v1453 = vpop.permute.xlu0 %1452
      %vm1457 = vcmask 130112
      %1458 = vst.msk [vmem:[#allocation2] sm:$0xff] %vm1457, %v1449
      %1459 = vst.msk [vmem:[#allocation2 + $0x8] sm:$0xff] %vm1457, %v1451
      %vm1460 = vcmask 122944
      %1461 = vst.msk [vmem:[#allocation2 + $0x10] sm:$0x1] %vm1460, %v1453
      %1462 = vrot.lane.b32.xlu0 %v949, 112
      %v1463 = vpop.permute.xlu0 %1462
      %1464 = vrot.lane.b32.xlu0 %v952, 112
      %v1465 = vpop.permute.xlu0 %1464
      %1466 = vrot.lane.b32.xlu0 %v957, 112
      %v1467 = vpop.permute.xlu0 %1466
      %1468 = vrot.lane.b32.xlu0 %v949, 80
      %v1469 = vpop.permute.xlu0 %1468
      %1470 = vrot.lane.b32.xlu0 %v952, 80
      %v1471 = vpop.permute.xlu0 %1470
      %1472 = vrot.lane.b32.xlu0 %v957, 80
      %v1473 = vpop.permute.xlu0 %1472
      %v1474 = vsel %vm971, %v1463, 0
      %v1476 = vsel %vm971, %v1465, 0
      %v1478 = vsel %vm971, %v1467, 0
      %v1480 = vsel %vm971, %v1469, 0
      %v1482 = vsel %vm971, %v1471, 0
      %v1484 = vsel %vm971, %v1473, 0
      %1486 = vmatprep.subr.mxu0 0.0
      %1487 = vmatpush1.xpose.msra.mxu0 %v1480
      %1488 = vmatprep.subr.mxu0 0.0
      %1489 = vmatpush1.xpose.msra.mxu0 %v1482
      %1490 = vmatprep.subr.mxu0 0.0
      %1491 = vmatpush1.xpose.msra.mxu0 %v1484
      %1492 = vmatprep.subr.mxu0 0.0
      %1493 = vmatpush1.xpose.msra.mxu0 0.0
      %1494 = vmatprep.subr.mxu0 0.0
      %1495 = vmatpush1.xpose.msra.mxu0 0.0
      %1496 = vmatprep.subr.mxu0 0.0
      %1497 = vmatpush1.xpose.msra.mxu0 0.0
      %1498 = vmatprep.subr.mxu0 0.0
      %1499 = vmatpush1.xpose.msra.mxu0 0.0
      %1500 = vmatprep.subr.mxu0 0.0
      %1501 = vmatpush1.xpose.msra.mxu0 0.0
      %1502 = vmatprep.subr.mxu0 0.0
      %1503 = vmatpush1.xpose.msra.mxu0 0.0
      %1504 = vmatprep.subr.mxu0 0.0
      %1505 = vmatpush1.xpose.msra.mxu0 0.0
      %1506 = vmatprep.subr.mxu0 0.0
      %1507 = vmatpush1.xpose.msra.mxu0 0.0
      %1508 = vmatprep.subr.mxu0 0.0
      %1509 = vmatpush1.xpose.msra.mxu0 0.0
      %1510 = vmatprep.subr.mxu0 0.0
      %1511 = vmatpush1.xpose.msra.mxu0 0.0
      %1512 = vmatprep.subr.mxu0 0.0
      %1513 = vmatpush1.xpose.msra.mxu0 0.0
      %1514 = vmatprep.subr.mxu0 0.0
      %1515 = vmatpush1.xpose.msra.mxu0 0.0
      %1516 = vmatprep.subr.mxu0 0.0
      %1517 = vmatpush1.xpose.msra.mxu0 0.0
      %1518 = vmatprep.subr.mxu0 0.0
      %1519 = vmatpush1.xpose.msra.mxu0 0.0
      %1520 = vmatprep.subr.mxu0 0.0
      %1521 = vmatpush1.xpose.msra.mxu0 0.0
      %1522 = vmatprep.subr.mxu0 0.0
      %1523 = vmatpush1.xpose.msra.mxu0 0.0
      %1524 = vmatprep.subr.mxu0 0.0
      %1525 = vmatpush1.xpose.msra.mxu0 0.0
      %1526 = vmatprep.subr.mxu0 0.0
      %1527 = vmatpush1.xpose.msra.mxu0 0.0
      %1528 = vmatprep.subr.mxu0 0.0
      %1529 = vmatpush1.xpose.msra.mxu0 0.0
      %1530 = vmatprep.subr.mxu0 0.0
      %1531 = vmatpush1.xpose.msra.mxu0 0.0
      %1532 = vmatprep.subr.mxu0 0.0
      %1533 = vmatpush1.xpose.msra.mxu0 0.0
      %1534 = vmatprep.subr.mxu0 0.0
      %1535 = vmatpush1.xpose.msra.mxu0 0.0
      %1536 = vmatprep.subr.mxu0 0.0
      %1537 = vmatpush1.xpose.msra.mxu0 0.0
      %1538 = vmatprep.subr.mxu0 0.0
      %1539 = vmatpush1.xpose.msra.mxu0 0.0
      %1540 = vmatprep.subr.mxu0 0.0
      %1541 = vmatpush1.xpose.msra.mxu0 0.0
      %1542 = vmatprep.subr.mxu0 0.0
      %1543 = vmatpush1.xpose.msra.mxu0 0.0
      %1544 = vmatprep.subr.mxu0 0.0
      %1545 = vmatpush1.xpose.msra.mxu0 0.0
      %1546 = vmatprep.subr.mxu0 0.0
      %1547 = vmatpush1.xpose.msra.mxu0 0.0
      %1548 = vmatprep.subr.mxu0 0.0
      %1549 = vmatpush1.xpose.msra.mxu0 0.0
      %1550 = vmatprep.mubr.f32.mxu0 0.0
      %1551 = vmatmul.mubr.f32.gmra.mrb[0].mxu0 %v1474
      %v1552 = vpop.f32.mrb[0].mxu0
      %v1553 = vadd.f32 0.0, %v1552
      %v1554 = vpop.f32.mrb[0].mxu0
      %1555 = vmatprep.mubr.f32.mxu0 0.0
      %1556 = vmatmul.mubr.f32.gmra.mrb[0].mxu0 %v1476
      %v1557 = vpop.f32.mrb[0].mxu0
      %v1558 = vadd.f32 0.0, %v1557
      %v1559 = vpop.f32.mrb[0].mxu0
      %1560 = vmatprep.mubr.f32.mxu0 0.0
      %1561 = vmatmul.mubr.f32.gmra.mrb[0].mxu0 %v1478
      %v1562 = vpop.f32.mrb[0].mxu0
      %v1563 = vadd.f32 0.0, %v1562
      %v1564 = vpop.f32.mrb[0].mxu0
      %1565 = vdwg.mxu0
      %v1566 = vmul.f32 %v1553, 0.35355338
      %v1567 = vmul.f32 %v1558, 0.35355338
      %v1568 = vmul.f32 %v1563, 0.35355338
      %v1569 = vsel %vm1067, %v1566, -inf
      %1570 = vmax.xlane.f32.xlu0 %v1569
      %v1571 = vpop.xlane.xlu0 %1570
      %v1572 = vsel %vm1067, %v1567, -inf
      %1573 = vmax.xlane.f32.xlu0 %v1572
      %v1574 = vpop.xlane.xlu0 %1573
      %v1575 = vsel %vm1074, %v1568, -inf
      %1576 = vmax.xlane.f32.xlu0 %v1575
      %v1577 = vpop.xlane.xlu0 %1576
      %v1578 = vsub.f32 %v1566, %v1571
      %v1579 = vsub.f32 %v1567, %v1574
      %v1580 = vsub.f32 %v1568, %v1577
      %v1581 = vmul.f32 %v1578, 1.442695
      %v1582 = vpow.pop %v1581
      %v1583 = vmul.f32 %v1579, 1.442695
      %v1584 = vpow.pop %v1583
      %v1585 = vmul.f32 %v1580, 1.442695
      %v1586 = vpow.pop %v1585
      %v1587 = vsel %vm1067, %v1582, 0.0
      %1588 = vadd.xlane.f32.xlu0 %v1587
      %v1589 = vpop.xlane.xlu0 %1588
      %v1590 = vsel %vm1067, %v1584, 0.0
      %1591 = vadd.xlane.f32.xlu0 %v1590
      %v1592 = vpop.xlane.xlu0 %1591
      %v1593 = vsel %vm1074, %v1586, 0.0
      %1594 = vadd.xlane.f32.xlu0 %v1593
      %v1595 = vpop.xlane.xlu0 %1594
      %v1596 = vrcp.pop %v1589
      %v1597 = vrcp.pop %v1592
      %v1598 = vrcp.pop %v1595
      %v1599 = vmul.f32 %v1582, %v1596
      %v1600 = vmul.f32 %v1584, %v1597
      %v1601 = vmul.f32 %v1586, %v1598
      %1602 = vrot.lane.b32.xlu0 %v949, 48
      %v1603 = vpop.permute.xlu0 %1602
      %1604 = vrot.lane.b32.xlu0 %v952, 48
      %v1605 = vpop.permute.xlu0 %1604
      %1606 = vrot.lane.b32.xlu0 %v957, 48
      %v1607 = vpop.permute.xlu0 %1606
      %v1611 = vsel %vm1067, %v1599, 0
      %v1614 = vsel %vm1067, %v1600, 0
      %v1617 = vsel %vm1067, %v1601, 0
      %v1619 = vsel %vm1119, %v1607, 0
      %1621 = vmatprep.subr.mxu0 0.0
      %1622 = vmatpush1.msra.mxu0 %v1603
      %1623 = vmatprep.subr.mxu0 0.0
      %1624 = vmatpush1.msra.mxu0 %v1605
      %1625 = vmatprep.subr.mxu0 0.0
      %1626 = vmatpush1.msra.mxu0 %v1619
      %1627 = vmatprep.subr.mxu0 0.0
      %1628 = vmatpush1.msra.mxu0 0.0
      %1629 = vmatprep.subr.mxu0 0.0
      %1630 = vmatpush1.msra.mxu0 0.0
      %1631 = vmatprep.subr.mxu0 0.0
      %1632 = vmatpush1.msra.mxu0 0.0
      %1633 = vmatprep.subr.mxu0 0.0
      %1634 = vmatpush1.msra.mxu0 0.0
      %1635 = vmatprep.subr.mxu0 0.0
      %1636 = vmatpush1.msra.mxu0 0.0
      %1637 = vmatprep.subr.mxu0 0.0
      %1638 = vmatpush1.msra.mxu0 0.0
      %1639 = vmatprep.subr.mxu0 0.0
      %1640 = vmatpush1.msra.mxu0 0.0
      %1641 = vmatprep.subr.mxu0 0.0
      %1642 = vmatpush1.msra.mxu0 0.0
      %1643 = vmatprep.subr.mxu0 0.0
      %1644 = vmatpush1.msra.mxu0 0.0
      %1645 = vmatprep.subr.mxu0 0.0
      %1646 = vmatpush1.msra.mxu0 0.0
      %1647 = vmatprep.subr.mxu0 0.0
      %1648 = vmatpush1.msra.mxu0 0.0
      %1649 = vmatprep.subr.mxu0 0.0
      %1650 = vmatpush1.msra.mxu0 0.0
      %1651 = vmatprep.subr.mxu0 0.0
      %1652 = vmatpush1.msra.mxu0 0.0
      %1653 = vmatprep.subr.mxu0 0.0
      %1654 = vmatpush1.msra.mxu0 0.0
      %1655 = vmatprep.subr.mxu0 0.0
      %1656 = vmatpush1.msra.mxu0 0.0
      %1657 = vmatprep.subr.mxu0 0.0
      %1658 = vmatpush1.msra.mxu0 0.0
      %1659 = vmatprep.subr.mxu0 0.0
      %1660 = vmatpush1.msra.mxu0 0.0
      %1661 = vmatprep.subr.mxu0 0.0
      %1662 = vmatpush1.msra.mxu0 0.0
      %1663 = vmatprep.subr.mxu0 0.0
      %1664 = vmatpush1.msra.mxu0 0.0
      %1665 = vmatprep.subr.mxu0 0.0
      %1666 = vmatpush1.msra.mxu0 0.0
      %1667 = vmatprep.subr.mxu0 0.0
      %1668 = vmatpush1.msra.mxu0 0.0
      %1669 = vmatprep.subr.mxu0 0.0
      %1670 = vmatpush1.msra.mxu0 0.0
      %1671 = vmatprep.subr.mxu0 0.0
      %1672 = vmatpush1.msra.mxu0 0.0
      %1673 = vmatprep.subr.mxu0 0.0
      %1674 = vmatpush1.msra.mxu0 0.0
      %1675 = vmatprep.subr.mxu0 0.0
      %1676 = vmatpush1.msra.mxu0 0.0
      %1677 = vmatprep.subr.mxu0 0.0
      %1678 = vmatpush1.msra.mxu0 0.0
      %1679 = vmatprep.subr.mxu0 0.0
      %1680 = vmatpush1.msra.mxu0 0.0
      %1681 = vmatprep.subr.mxu0 0.0
      %1682 = vmatpush1.msra.mxu0 0.0
      %1683 = vmatprep.subr.mxu0 0.0
      %1684 = vmatpush1.msra.mxu0 0.0
      %1685 = vmatprep.mubr.f32.mxu0 0.0
      %1686 = vmatmul.mubr.f32.gmra.mrb[0].mxu0 %v1611
      %v1687 = vpop.f32.mrb[0].mxu0
      %v1688 = vadd.f32 0.0, %v1687
      %v1689 = vpop.f32.mrb[0].mxu0
      %1690 = vmatprep.mubr.f32.mxu0 0.0
      %1691 = vmatmul.mubr.f32.gmra.mrb[0].mxu0 %v1614
      %v1692 = vpop.f32.mrb[0].mxu0
      %v1693 = vadd.f32 0.0, %v1692
      %v1694 = vpop.f32.mrb[0].mxu0
      %1695 = vmatprep.mubr.f32.mxu0 0.0
      %1696 = vmatmul.mubr.f32.gmra.mrb[0].mxu0 %v1617
      %v1697 = vpop.f32.mrb[0].mxu0
      %v1698 = vadd.f32 0.0, %v1697
      %v1699 = vpop.f32.mrb[0].mxu0
      %1700 = vdwg.mxu0
      %1704 = vrot.lane.b32.xlu0 %v1688, 16
      %v1705 = vpop.permute.xlu0 %1704
      %1706 = vrot.lane.b32.xlu0 %v1693, 16
      %v1707 = vpop.permute.xlu0 %1706
      %1708 = vrot.lane.b32.xlu0 %v1698, 16
      %v1709 = vpop.permute.xlu0 %1708
      %vm1713 = vcmask 195712
      %1714 = vst.msk [vmem:[#allocation2] sm:$0xff] %vm1713, %v1705
      %1715 = vst.msk [vmem:[#allocation2 + $0x8] sm:$0xff] %vm1713, %v1707
      %vm1716 = vcmask 188544
      %1717 = vst.msk [vmem:[#allocation2 + $0x10] sm:$0x1] %vm1716, %v1709
      %1718 = vrot.lane.b32.xlu0 %v949, 104
      %v1719 = vpop.permute.xlu0 %1718
      %1720 = vrot.lane.b32.xlu0 %v952, 104
      %v1721 = vpop.permute.xlu0 %1720
      %1722 = vrot.lane.b32.xlu0 %v957, 104
      %v1723 = vpop.permute.xlu0 %1722
      %1724 = vrot.lane.b32.xlu0 %v949, 72
      %v1725 = vpop.permute.xlu0 %1724
      %1726 = vrot.lane.b32.xlu0 %v952, 72
      %v1727 = vpop.permute.xlu0 %1726
      %1728 = vrot.lane.b32.xlu0 %v957, 72
      %v1729 = vpop.permute.xlu0 %1728
      %v1730 = vsel %vm971, %v1719, 0
      %v1732 = vsel %vm971, %v1721, 0
      %v1734 = vsel %vm971, %v1723, 0
      %v1736 = vsel %vm971, %v1725, 0
      %v1738 = vsel %vm971, %v1727, 0
      %v1740 = vsel %vm971, %v1729, 0
      %1742 = vmatprep.subr.mxu0 0.0
      %1743 = vmatpush1.xpose.msra.mxu0 %v1736
      %1744 = vmatprep.subr.mxu0 0.0
      %1745 = vmatpush1.xpose.msra.mxu0 %v1738
      %1746 = vmatprep.subr.mxu0 0.0
      %1747 = vmatpush1.xpose.msra.mxu0 %v1740
      %1748 = vmatprep.subr.mxu0 0.0
      %1749 = vmatpush1.xpose.msra.mxu0 0.0
      %1750 = vmatprep.subr.mxu0 0.0
      %1751 = vmatpush1.xpose.msra.mxu0 0.0
      %1752 = vmatprep.subr.mxu0 0.0
      %1753 = vmatpush1.xpose.msra.mxu0 0.0
      %1754 = vmatprep.subr.mxu0 0.0
      %1755 = vmatpush1.xpose.msra.mxu0 0.0
      %1756 = vmatprep.subr.mxu0 0.0
      %1757 = vmatpush1.xpose.msra.mxu0 0.0
      %1758 = vmatprep.subr.mxu0 0.0
      %1759 = vmatpush1.xpose.msra.mxu0 0.0
      %1760 = vmatprep.subr.mxu0 0.0
      %1761 = vmatpush1.xpose.msra.mxu0 0.0
      %1762 = vmatprep.subr.mxu0 0.0
      %1763 = vmatpush1.xpose.msra.mxu0 0.0
      %1764 = vmatprep.subr.mxu0 0.0
      %1765 = vmatpush1.xpose.msra.mxu0 0.0
      %1766 = vmatprep.subr.mxu0 0.0
      %1767 = vmatpush1.xpose.msra.mxu0 0.0
      %1768 = vmatprep.subr.mxu0 0.0
      %1769 = vmatpush1.xpose.msra.mxu0 0.0
      %1770 = vmatprep.subr.mxu0 0.0
      %1771 = vmatpush1.xpose.msra.mxu0 0.0
      %1772 = vmatprep.subr.mxu0 0.0
      %1773 = vmatpush1.xpose.msra.mxu0 0.0
      %1774 = vmatprep.subr.mxu0 0.0
      %1775 = vmatpush1.xpose.msra.mxu0 0.0
      %1776 = vmatprep.subr.mxu0 0.0
      %1777 = vmatpush1.xpose.msra.mxu0 0.0
      %1778 = vmatprep.subr.mxu0 0.0
      %1779 = vmatpush1.xpose.msra.mxu0 0.0
      %1780 = vmatprep.subr.mxu0 0.0
      %1781 = vmatpush1.xpose.msra.mxu0 0.0
      %1782 = vmatprep.subr.mxu0 0.0
      %1783 = vmatpush1.xpose.msra.mxu0 0.0
      %1784 = vmatprep.subr.mxu0 0.0
      %1785 = vmatpush1.xpose.msra.mxu0 0.0
      %1786 = vmatprep.subr.mxu0 0.0
      %1787 = vmatpush1.xpose.msra.mxu0 0.0
      %1788 = vmatprep.subr.mxu0 0.0
      %1789 = vmatpush1.xpose.msra.mxu0 0.0
      %1790 = vmatprep.subr.mxu0 0.0
      %1791 = vmatpush1.xpose.msra.mxu0 0.0
      %1792 = vmatprep.subr.mxu0 0.0
      %1793 = vmatpush1.xpose.msra.mxu0 0.0
      %1794 = vmatprep.subr.mxu0 0.0
      %1795 = vmatpush1.xpose.msra.mxu0 0.0
      %1796 = vmatprep.subr.mxu0 0.0
      %1797 = vmatpush1.xpose.msra.mxu0 0.0
      %1798 = vmatprep.subr.mxu0 0.0
      %1799 = vmatpush1.xpose.msra.mxu0 0.0
      %1800 = vmatprep.subr.mxu0 0.0
      %1801 = vmatpush1.xpose.msra.mxu0 0.0
      %1802 = vmatprep.subr.mxu0 0.0
      %1803 = vmatpush1.xpose.msra.mxu0 0.0
      %1804 = vmatprep.subr.mxu0 0.0
      %1805 = vmatpush1.xpose.msra.mxu0 0.0
      %1806 = vmatprep.mubr.f32.mxu0 0.0
      %1807 = vmatmul.mubr.f32.gmra.mrb[0].mxu0 %v1730
      %v1808 = vpop.f32.mrb[0].mxu0
      %v1809 = vadd.f32 0.0, %v1808
      %v1810 = vpop.f32.mrb[0].mxu0
      %1811 = vmatprep.mubr.f32.mxu0 0.0
      %1812 = vmatmul.mubr.f32.gmra.mrb[0].mxu0 %v1732
      %v1813 = vpop.f32.mrb[0].mxu0
      %v1814 = vadd.f32 0.0, %v1813
      %v1815 = vpop.f32.mrb[0].mxu0
      %1816 = vmatprep.mubr.f32.mxu0 0.0
      %1817 = vmatmul.mubr.f32.gmra.mrb[0].mxu0 %v1734
      %v1818 = vpop.f32.mrb[0].mxu0
      %v1819 = vadd.f32 0.0, %v1818
      %v1820 = vpop.f32.mrb[0].mxu0
      %1821 = vdwg.mxu0
      %v1822 = vmul.f32 %v1809, 0.35355338
      %v1823 = vmul.f32 %v1814, 0.35355338
      %v1824 = vmul.f32 %v1819, 0.35355338
      %v1825 = vsel %vm1067, %v1822, -inf
      %1826 = vmax.xlane.f32.xlu0 %v1825
      %v1827 = vpop.xlane.xlu0 %1826
      %v1828 = vsel %vm1067, %v1823, -inf
      %1829 = vmax.xlane.f32.xlu0 %v1828
      %v1830 = vpop.xlane.xlu0 %1829
      %v1831 = vsel %vm1074, %v1824, -inf
      %1832 = vmax.xlane.f32.xlu0 %v1831
      %v1833 = vpop.xlane.xlu0 %1832
      %v1834 = vsub.f32 %v1822, %v1827
      %v1835 = vsub.f32 %v1823, %v1830
      %v1836 = vsub.f32 %v1824, %v1833
      %v1837 = vmul.f32 %v1834, 1.442695
      %v1838 = vpow.pop %v1837
      %v1839 = vmul.f32 %v1835, 1.442695
      %v1840 = vpow.pop %v1839
      %v1841 = vmul.f32 %v1836, 1.442695
      %v1842 = vpow.pop %v1841
      %v1843 = vsel %vm1067, %v1838, 0.0
      %1844 = vadd.xlane.f32.xlu0 %v1843
      %v1845 = vpop.xlane.xlu0 %1844
      %v1846 = vsel %vm1067, %v1840, 0.0
      %1847 = vadd.xlane.f32.xlu0 %v1846
      %v1848 = vpop.xlane.xlu0 %1847
      %v1849 = vsel %vm1074, %v1842, 0.0
      %1850 = vadd.xlane.f32.xlu0 %v1849
      %v1851 = vpop.xlane.xlu0 %1850
      %v1852 = vrcp.pop %v1845
      %v1853 = vrcp.pop %v1848
      %v1854 = vrcp.pop %v1851
      %v1855 = vmul.f32 %v1838, %v1852
      %v1856 = vmul.f32 %v1840, %v1853
      %v1857 = vmul.f32 %v1842, %v1854
      %1858 = vrot.lane.b32.xlu0 %v949, 40
      %v1859 = vpop.permute.xlu0 %1858
      %1860 = vrot.lane.b32.xlu0 %v952, 40
      %v1861 = vpop.permute.xlu0 %1860
      %1862 = vrot.lane.b32.xlu0 %v957, 40
      %v1863 = vpop.permute.xlu0 %1862
      %v1867 = vsel %vm1067, %v1855, 0
      %v1870 = vsel %vm1067, %v1856, 0
      %v1873 = vsel %vm1067, %v1857, 0
      %v1875 = vsel %vm1119, %v1863, 0
      %1877 = vmatprep.subr.mxu0 0.0
      %1878 = vmatpush1.msra.mxu0 %v1859
      %1879 = vmatprep.subr.mxu0 0.0
      %1880 = vmatpush1.msra.mxu0 %v1861
      %1881 = vmatprep.subr.mxu0 0.0
      %1882 = vmatpush1.msra.mxu0 %v1875
      %1883 = vmatprep.subr.mxu0 0.0
      %1884 = vmatpush1.msra.mxu0 0.0
      %1885 = vmatprep.subr.mxu0 0.0
      %1886 = vmatpush1.msra.mxu0 0.0
      %1887 = vmatprep.subr.mxu0 0.0
      %1888 = vmatpush1.msra.mxu0 0.0
      %1889 = vmatprep.subr.mxu0 0.0
      %1890 = vmatpush1.msra.mxu0 0.0
      %1891 = vmatprep.subr.mxu0 0.0
      %1892 = vmatpush1.msra.mxu0 0.0
      %1893 = vmatprep.subr.mxu0 0.0
      %1894 = vmatpush1.msra.mxu0 0.0
      %1895 = vmatprep.subr.mxu0 0.0
      %1896 = vmatpush1.msra.mxu0 0.0
      %1897 = vmatprep.subr.mxu0 0.0
      %1898 = vmatpush1.msra.mxu0 0.0
      %1899 = vmatprep.subr.mxu0 0.0
      %1900 = vmatpush1.msra.mxu0 0.0
      %1901 = vmatprep.subr.mxu0 0.0
      %1902 = vmatpush1.msra.mxu0 0.0
      %1903 = vmatprep.subr.mxu0 0.0
      %1904 = vmatpush1.msra.mxu0 0.0
      %1905 = vmatprep.subr.mxu0 0.0
      %1906 = vmatpush1.msra.mxu0 0.0
      %1907 = vmatprep.subr.mxu0 0.0
      %1908 = vmatpush1.msra.mxu0 0.0
      %1909 = vmatprep.subr.mxu0 0.0
      %1910 = vmatpush1.msra.mxu0 0.0
      %1911 = vmatprep.subr.mxu0 0.0
      %1912 = vmatpush1.msra.mxu0 0.0
      %1913 = vmatprep.subr.mxu0 0.0
      %1914 = vmatpush1.msra.mxu0 0.0
      %1915 = vmatprep.subr.mxu0 0.0
      %1916 = vmatpush1.msra.mxu0 0.0
      %1917 = vmatprep.subr.mxu0 0.0
      %1918 = vmatpush1.msra.mxu0 0.0
      %1919 = vmatprep.subr.mxu0 0.0
      %1920 = vmatpush1.msra.mxu0 0.0
      %1921 = vmatprep.subr.mxu0 0.0
      %1922 = vmatpush1.msra.mxu0 0.0
      %1923 = vmatprep.subr.mxu0 0.0
      %1924 = vmatpush1.msra.mxu0 0.0
      %1925 = vmatprep.subr.mxu0 0.0
      %1926 = vmatpush1.msra.mxu0 0.0
      %1927 = vmatprep.subr.mxu0 0.0
      %1928 = vmatpush1.msra.mxu0 0.0
      %1929 = vmatprep.subr.mxu0 0.0
      %1930 = vmatpush1.msra.mxu0 0.0
      %1931 = vmatprep.subr.mxu0 0.0
      %1932 = vmatpush1.msra.mxu0 0.0
      %1933 = vmatprep.subr.mxu0 0.0
      %1934 = vmatpush1.msra.mxu0 0.0
      %1935 = vmatprep.subr.mxu0 0.0
      %1936 = vmatpush1.msra.mxu0 0.0
      %1937 = vmatprep.subr.mxu0 0.0
      %1938 = vmatpush1.msra.mxu0 0.0
      %1939 = vmatprep.subr.mxu0 0.0
      %1940 = vmatpush1.msra.mxu0 0.0
      %1941 = vmatprep.mubr.f32.mxu0 0.0
      %1942 = vmatmul.mubr.f32.gmra.mrb[0].mxu0 %v1867
      %v1943 = vpop.f32.mrb[0].mxu0
      %v1944 = vadd.f32 0.0, %v1943
      %v1945 = vpop.f32.mrb[0].mxu0
      %1946 = vmatprep.mubr.f32.mxu0 0.0
      %1947 = vmatmul.mubr.f32.gmra.mrb[0].mxu0 %v1870
      %v1948 = vpop.f32.mrb[0].mxu0
      %v1949 = vadd.f32 0.0, %v1948
      %v1950 = vpop.f32.mrb[0].mxu0
      %1951 = vmatprep.mubr.f32.mxu0 0.0
      %1952 = vmatmul.mubr.f32.gmra.mrb[0].mxu0 %v1873
      %v1953 = vpop.f32.mrb[0].mxu0
      %v1954 = vadd.f32 0.0, %v1953
      %v1955 = vpop.f32.mrb[0].mxu0
      %1956 = vdwg.mxu0
      %1960 = vrot.lane.b32.xlu0 %v1944, 24
      %v1961 = vpop.permute.xlu0 %1960
      %1962 = vrot.lane.b32.xlu0 %v1949, 24
      %v1963 = vpop.permute.xlu0 %1962
      %1964 = vrot.lane.b32.xlu0 %v1954, 24
      %v1965 = vpop.permute.xlu0 %1964
      %vm1969 = vcmask 261312
      %1970 = vst.msk [vmem:[#allocation2] sm:$0xff] %vm1969, %v1961
      %1971 = vst.msk [vmem:[#allocation2 + $0x8] sm:$0xff] %vm1969, %v1963
      %vm1972 = vcmask 254144
      %1973 = vst.msk [vmem:[#allocation2 + $0x10] sm:$0x1] %vm1972, %v1965
      %v1974 = vld [vmem:[#allocation2] sm:$0xff]
      %v1975 = vld [vmem:[#allocation2 + $0x8] sm:$0xff]
      %v1976 = vld [vmem:[#allocation2 + $0x10] sm:$0x1]
      %v1977 = vpack.c.bf16 %v1975, %v1974
      %v1978 = vpack.c.bf16 %v1976, %v1976
      %v1979 = vld [vmem:[%s10] sm:$0xf]
      %v1980 = vld [vmem:[%s10 + $0x4] sm:$0xf]
      %v1981 = vld [vmem:[%s10 + $0x8] sm:$0xf]
      %v1982 = vld [vmem:[%s10 + $0xc] sm:$0xf]
      %v1983 = vld [vmem:[%s11] sm:$0x1]
      %v1985 = vlaneseq
      %v1986 = vshrl.u32 %v1985, 7
      %v1987 = vsub.s32 0, %v1986
      %v1988 = vrot.slane %v1983, %v1987
      %v1994 = vunpack.c.l.b16 %v1979
      %v1995 = vunpack.c.l.b16 %v1980
      %v1996 = vunpack.c.l.b16 %v1981
      %v1997 = vunpack.c.l.b16 %v1982
      %v1998 = vpack.c.b16 %v1995, %v1994
      %v1999 = vpack.c.b16 %v1997, %v1996
      %v2003 = vsel %vm749, %v1977, 0
      %v2006 = vsel %vm749, %v1978, 0
      %2008 = vmatprep.subr.bf16.mxu0 0
      %2009 = vmatpush1.bf16.msra.mxu0 %v1998
      %2010 = vmatprep.subr.bf16.mxu0 0
      %2011 = vmatpush1.bf16.msra.mxu0 %v1999
      %2012 = vmatprep.subr.bf16.mxu0 0
      %2013 = vmatpush1.bf16.msra.mxu0 0
      %2014 = vmatprep.subr.bf16.mxu0 0
      %2015 = vmatpush1.bf16.msra.mxu0 0
      %2016 = vmatprep.subr.bf16.mxu0 0
      %2017 = vmatpush1.bf16.msra.mxu0 0
      %2018 = vmatprep.subr.bf16.mxu0 0
      %2019 = vmatpush1.bf16.msra.mxu0 0
      %2020 = vmatprep.subr.bf16.mxu0 0
      %2021 = vmatpush1.bf16.msra.mxu0 0
      %2022 = vmatprep.subr.bf16.mxu0 0
      %2023 = vmatpush1.bf16.msra.mxu0 0
      %2024 = vmatprep.subr.bf16.mxu0 0
      %2025 = vmatpush1.bf16.msra.mxu0 0
      %2026 = vmatprep.subr.bf16.mxu0 0
      %2027 = vmatpush1.bf16.msra.mxu0 0
      %2028 = vmatprep.subr.bf16.mxu0 0
      %2029 = vmatpush1.bf16.msra.mxu0 0
      %2030 = vmatprep.subr.bf16.mxu0 0
      %2031 = vmatpush1.bf16.msra.mxu0 0
      %2032 = vmatprep.subr.bf16.mxu0 0
      %2033 = vmatpush1.bf16.msra.mxu0 0
      %2034 = vmatprep.subr.bf16.mxu0 0
      %2035 = vmatpush1.bf16.msra.mxu0 0
      %2036 = vmatprep.subr.bf16.mxu0 0
      %2037 = vmatpush1.bf16.msra.mxu0 0
      %2038 = vmatprep.subr.bf16.mxu0 0
      %2039 = vmatpush1.bf16.msra.mxu0 0
      %2040 = vmatprep.mubr.bf16.mxu0 0
      %2041 = vmatmul.mubr.bf16.gmra.mrb[0].mxu0 %v2003
      %v2042 = vpop.f32.mrb[0].mxu0
      %v2043 = vadd.f32 %v1988, %v2042
      %v2044 = vpop.f32.mrb[0].mxu0
      %v2045 = vpop.f32.mrb[0].mxu0
      %v2046 = vadd.f32 %v1988, %v2045
      %v2047 = vpop.f32.mrb[0].mxu0
      %2048 = vmatprep.mubr.bf16.mxu0 0
      %2049 = vmatmul.mubr.bf16.gmra.mrb[0].mxu0 %v2006
      %v2050 = vpop.f32.mrb[0].mxu0
      %v2051 = vadd.f32 %v1988, %v2050
      %v2052 = vpop.f32.mrb[0].mxu0
      %v2053 = vpop.f32.mrb[0].mxu0
      %v2054 = vpop.f32.mrb[0].mxu0
      %2055 = vdwg.mxu0
      %v2056 = vadd.f32 %v818, %v2043
      %v2057 = vadd.f32 %v819, %v2046
      %v2058 = vadd.f32 %v820, %v2051
      %v2059 = vld [vmem:[%s12] sm:$0x1]
      %v2060 = vld [vmem:[%s13] sm:$0x1]
      %v2061 = vsel %vm749, %v2056, 0.0
      %2062 = vadd.xlane.f32.xlu0 %v2061
      %v2063 = vpop.xlane.xlu0 %2062
      %v2064 = vsel %vm749, %v2057, 0.0
      %2065 = vadd.xlane.f32.xlu0 %v2064
      %v2066 = vpop.xlane.xlu0 %2065
      %v2067 = vsel %vm747, %v2058, 0.0
      %2068 = vadd.xlane.f32.xlu0 %v2067
      %v2069 = vpop.xlane.xlu0 %2068
      %v2070 = vmul.f32 %v2063, %v772
      %v2071 = vmul.f32 %v2066, %v772
      %v2072 = vmul.f32 %v2069, %v772
      %v2073 = vsub.f32 %v2056, %v2070
      %v2074 = vsub.f32 %v2057, %v2071
      %v2075 = vsub.f32 %v2058, %v2072
      %v2076 = vmul.f32 %v2073, %v2073
      %v2077 = vmul.f32 %v2074, %v2074
      %v2078 = vmul.f32 %v2075, %v2075
      %v2079 = vsel %vm749, %v2076, 0.0
      %2080 = vadd.xlane.f32.xlu0 %v2079
      %v2081 = vpop.xlane.xlu0 %2080
      %v2082 = vsel %vm749, %v2077, 0.0
      %2083 = vadd.xlane.f32.xlu0 %v2082
      %v2084 = vpop.xlane.xlu0 %2083
      %v2085 = vsel %vm747, %v2078, 0.0
      %2086 = vadd.xlane.f32.xlu0 %v2085
      %v2087 = vpop.xlane.xlu0 %2086
      %v2088 = vmul.f32 %v2081, %v772
      %v2089 = vmul.f32 %v2084, %v772
      %v2090 = vmul.f32 %v2087, %v772
      %v2091 = vadd.f32 %v2088, 1e-05
      %v2092 = vadd.f32 %v2089, 1e-05
      %v2093 = vadd.f32 %v2090, 1e-05
      %v2094 = vrsqrt.pop %v2091
      %v2095 = vrsqrt.pop %v2092
      %v2096 = vrsqrt.pop %v2093
      %v2097 = vmul.f32 %v2073, %v2094
      %v2098 = vmul.f32 %v2074, %v2095
      %v2099 = vmul.f32 %v2075, %v2096
      %v2101 = vlaneseq
      %v2102 = vshrl.u32 %v2101, 7
      %v2103 = vsub.s32 0, %v2102
      %v2104 = vrot.slane %v2059, %v2103
      %v2106 = vmul.f32 %v2097, %v2104
      %v2107 = vmul.f32 %v2098, %v2104
      %v2108 = vmul.f32 %v2099, %v2104
      %v2110 = vlaneseq
      %v2111 = vshrl.u32 %v2110, 7
      %v2112 = vsub.s32 0, %v2111
      %v2113 = vrot.slane %v2060, %v2112
      %v2115 = vadd.f32 %v2106, %v2113
      %v2116 = vadd.f32 %v2107, %v2113
      %v2117 = vadd.f32 %v2108, %v2113
      %v2118 = vpack.c.bf16 %v2116, %v2115
      %v2119 = vpack.c.bf16 %v2117, %v2117
      %v2120 = vld [vmem:[%s14] sm:$0xf]
      %v2121 = vld [vmem:[%s14 + $0x4] sm:$0xf]
      %v2122 = vld [vmem:[%s14 + $0x8] sm:$0xf]
      %v2123 = vld [vmem:[%s14 + $0xc] sm:$0xf]
      %v2124 = vld [vmem:[%s15] sm:$0x1]
      %v2126 = vlaneseq
      %v2127 = vshrl.u32 %v2126, 7
      %v2128 = vsub.s32 0, %v2127
      %v2129 = vrot.slane %v2124, %v2128
      %v2135 = vunpack.c.l.b16 %v2120
      %v2136 = vunpack.c.l.b16 %v2121
      %v2137 = vunpack.c.l.b16 %v2122
      %v2138 = vunpack.c.l.b16 %v2123
      %v2139 = vpack.c.b16 %v2136, %v2135
      %v2140 = vpack.c.b16 %v2138, %v2137
      %v2144 = vsel %vm749, %v2118, 0
      %v2147 = vsel %vm749, %v2119, 0
      %2149 = vmatprep.subr.bf16.mxu0 0
      %2150 = vmatpush1.bf16.msra.mxu0 %v2139
      %2151 = vmatprep.subr.bf16.mxu0 0
      %2152 = vmatpush1.bf16.msra.mxu0 %v2140
      %2153 = vmatprep.subr.bf16.mxu0 0
      %2154 = vmatpush1.bf16.msra.mxu0 0
      %2155 = vmatprep.subr.bf16.mxu0 0
      %2156 = vmatpush1.bf16.msra.mxu0 0
      %2157 = vmatprep.subr.bf16.mxu0 0
      %2158 = vmatpush1.bf16.msra.mxu0 0
      %2159 = vmatprep.subr.bf16.mxu0 0
      %2160 = vmatpush1.bf16.msra.mxu0 0
      %2161 = vmatprep.subr.bf16.mxu0 0
      %2162 = vmatpush1.bf16.msra.mxu0 0
      %2163 = vmatprep.subr.bf16.mxu0 0
      %2164 = vmatpush1.bf16.msra.mxu0 0
      %2165 = vmatprep.subr.bf16.mxu0 0
      %2166 = vmatpush1.bf16.msra.mxu0 0
      %2167 = vmatprep.subr.bf16.mxu0 0
      %2168 = vmatpush1.bf16.msra.mxu0 0
      %2169 = vmatprep.subr.bf16.mxu0 0
      %2170 = vmatpush1.bf16.msra.mxu0 0
      %2171 = vmatprep.subr.bf16.mxu0 0
      %2172 = vmatpush1.bf16.msra.mxu0 0
      %2173 = vmatprep.subr.bf16.mxu0 0
      %2174 = vmatpush1.bf16.msra.mxu0 0
      %2175 = vmatprep.subr.bf16.mxu0 0
      %2176 = vmatpush1.bf16.msra.mxu0 0
      %2177 = vmatprep.subr.bf16.mxu0 0
      %2178 = vmatpush1.bf16.msra.mxu0 0
      %2179 = vmatprep.subr.bf16.mxu0 0
      %2180 = vmatpush1.bf16.msra.mxu0 0
      %2181 = vmatprep.mubr.bf16.mxu0 0
      %2182 = vmatmul.mubr.bf16.gmra.mrb[0].mxu0 %v2144
      %v2183 = vpop.f32.mrb[0].mxu0
      %v2184 = vadd.f32 %v2129, %v2183
      %v2185 = vpop.f32.mrb[0].mxu0
      %v2186 = vpop.f32.mrb[0].mxu0
      %v2187 = vadd.f32 %v2129, %v2186
      %v2188 = vpop.f32.mrb[0].mxu0
      %2189 = vmatprep.mubr.bf16.mxu0 0
      %2190 = vmatmul.mubr.bf16.gmra.mrb[0].mxu0 %v2147
      %v2191 = vpop.f32.mrb[0].mxu0
      %v2192 = vadd.f32 %v2129, %v2191
      %v2193 = vpop.f32.mrb[0].mxu0
      %v2194 = vpop.f32.mrb[0].mxu0
      %v2195 = vpop.f32.mrb[0].mxu0
      %2196 = vdwg.mxu0
      %v2197 = vmul.f32 %v2184, 0.5
      %v2198 = vmul.f32 %v2187, 0.5
      %v2199 = vmul.f32 %v2192, 0.5
      %v2200 = vmul.f32 %v2184, 0.044715
      %v2201 = vmul.f32 %v2187, 0.044715
      %v2202 = vmul.f32 %v2192, 0.044715
      %v2203 = vmul.f32 %v2200, %v2184
      %v2204 = vmul.f32 %v2201, %v2187
      %v2205 = vmul.f32 %v2202, %v2192
      %v2206 = vmul.f32 %v2203, %v2184
      %v2207 = vmul.f32 %v2204, %v2187
      %v2208 = vmul.f32 %v2205, %v2192
      %v2209 = vadd.f32 %v2184, %v2206
      %v2210 = vadd.f32 %v2187, %v2207
      %v2211 = vadd.f32 %v2192, %v2208
      %v2212 = vmul.f32 %v2209, 0.7978846
      %v2213 = vmul.f32 %v2210, 0.7978846
      %v2214 = vmul.f32 %v2211, 0.7978846
      %v2215 = vtanh.pop %v2212
      %v2216 = vtanh.pop %v2213
      %v2217 = vtanh.pop %v2214
      %v2218 = vadd.f32 %v2215, 1.0
      %v2219 = vadd.f32 %v2216, 1.0
      %v2220 = vadd.f32 %v2217, 1.0
      %v2221 = vmul.f32 %v2197, %v2218
      %v2222 = vmul.f32 %v2198, %v2219
      %v2223 = vmul.f32 %v2199, %v2220
      %v2224 = vpack.c.bf16 %v2222, %v2221
      %v2225 = vpack.c.bf16 %v2223, %v2223
      %v2226 = vld [vmem:[%s16] sm:$0xf]
      %v2227 = vld [vmem:[%s16 + $0x4] sm:$0xf]
      %v2228 = vld [vmem:[%s16 + $0x8] sm:$0xf]
      %v2229 = vld [vmem:[%s16 + $0xc] sm:$0xf]
      %v2230 = vld [vmem:[%s16 + $0x10] sm:$0xf]
      %v2231 = vld [vmem:[%s16 + $0x14] sm:$0xf]
      %v2232 = vld [vmem:[%s16 + $0x18] sm:$0xf]
      %v2233 = vld [vmem:[%s16 + $0x1c] sm:$0xf]
      %v2234 = vld [vmem:[%s16 + $0x20] sm:$0xf]
      %v2235 = vld [vmem:[%s16 + $0x24] sm:$0xf]
      %v2236 = vld [vmem:[%s16 + $0x28] sm:$0xf]
      %v2237 = vld [vmem:[%s16 + $0x2c] sm:$0xf]
      %v2238 = vld [vmem:[%s16 + $0x30] sm:$0xf]
      %v2239 = vld [vmem:[%s16 + $0x34] sm:$0xf]
      %v2240 = vld [vmem:[%s16 + $0x38] sm:$0xf]
      %v2241 = vld [vmem:[%s16 + $0x3c] sm:$0xf]
      %v2242 = vld [vmem:[%s17] sm:$0x1]
      %v2244 = vlaneseq
      %v2245 = vshrl.u32 %v2244, 7
      %v2246 = vsub.s32 0, %v2245
      %v2247 = vrot.slane %v2242, %v2246
      %v2265 = vunpack.c.l.b16 %v2226
      %v2266 = vunpack.c.l.b16 %v2227
      %v2267 = vunpack.c.l.b16 %v2228
      %v2268 = vunpack.c.l.b16 %v2229
      %v2269 = vunpack.c.l.b16 %v2230
      %v2270 = vunpack.c.l.b16 %v2231
      %v2271 = vunpack.c.l.b16 %v2232
      %v2272 = vunpack.c.l.b16 %v2233
      %v2273 = vunpack.c.l.b16 %v2234
      %v2274 = vunpack.c.l.b16 %v2235
      %v2275 = vunpack.c.l.b16 %v2236
      %v2276 = vunpack.c.l.b16 %v2237
      %v2277 = vunpack.c.l.b16 %v2238
      %v2278 = vunpack.c.l.b16 %v2239
      %v2279 = vunpack.c.l.b16 %v2240
      %v2280 = vunpack.c.l.b16 %v2241
      %v2281 = vpack.c.b16 %v2266, %v2265
      %v2282 = vpack.c.b16 %v2268, %v2267
      %v2283 = vpack.c.b16 %v2270, %v2269
      %v2284 = vpack.c.b16 %v2272, %v2271
      %v2285 = vpack.c.b16 %v2274, %v2273
      %v2286 = vpack.c.b16 %v2276, %v2275
      %v2287 = vpack.c.b16 %v2278, %v2277
      %v2288 = vpack.c.b16 %v2280, %v2279
      %2297 = vmatprep.subr.bf16.mxu0 0
      %2298 = vmatpush1.bf16.msra.mxu0 %v2281
      %2299 = vmatprep.subr.bf16.mxu0 0
      %2300 = vmatpush1.bf16.msra.mxu0 %v2282
      %2301 = vmatprep.subr.bf16.mxu0 0
      %2302 = vmatpush1.bf16.msra.mxu0 %v2283
      %2303 = vmatprep.subr.bf16.mxu0 0
      %2304 = vmatpush1.bf16.msra.mxu0 %v2284
      %2305 = vmatprep.subr.bf16.mxu0 0
      %2306 = vmatpush1.bf16.msra.mxu0 %v2285
      %2307 = vmatprep.subr.bf16.mxu0 0
      %2308 = vmatpush1.bf16.msra.mxu0 %v2286
      %2309 = vmatprep.subr.bf16.mxu0 0
      %2310 = vmatpush1.bf16.msra.mxu0 %v2287
      %2311 = vmatprep.subr.bf16.mxu0 0
      %2312 = vmatpush1.bf16.msra.mxu0 %v2288
      %2313 = vmatprep.subr.bf16.mxu0 0
      %2314 = vmatpush1.bf16.msra.mxu0 0
      %2315 = vmatprep.subr.bf16.mxu0 0
      %2316 = vmatpush1.bf16.msra.mxu0 0
      %2317 = vmatprep.subr.bf16.mxu0 0
      %2318 = vmatpush1.bf16.msra.mxu0 0
      %2319 = vmatprep.subr.bf16.mxu0 0
      %2320 = vmatpush1.bf16.msra.mxu0 0
      %2321 = vmatprep.subr.bf16.mxu0 0
      %2322 = vmatpush1.bf16.msra.mxu0 0
      %2323 = vmatprep.subr.bf16.mxu0 0
      %2324 = vmatpush1.bf16.msra.mxu0 0
      %2325 = vmatprep.subr.bf16.mxu0 0
      %2326 = vmatpush1.bf16.msra.mxu0 0
      %2327 = vmatprep.subr.bf16.mxu0 0
      %2328 = vmatpush1.bf16.msra.mxu0 0
      %2329 = vmatprep.mubr.bf16.mxu0 0
      %2330 = vmatmul.mubr.bf16.gmra.mrb[0].mxu0 %v2224
      %v2331 = vpop.f32.mrb[0].mxu0
      %v2332 = vadd.f32 %v2247, %v2331
      %v2333 = vpop.f32.mrb[0].mxu0
      %v2334 = vpop.f32.mrb[0].mxu0
      %v2335 = vadd.f32 %v2247, %v2334
      %v2336 = vpop.f32.mrb[0].mxu0
      %2337 = vmatprep.mubr.bf16.mxu0 0
      %2338 = vmatmul.mubr.bf16.gmra.mrb[0].mxu0 %v2225
      %v2339 = vpop.f32.mrb[0].mxu0
      %v2340 = vadd.f32 %v2247, %v2339
      %v2341 = vpop.f32.mrb[0].mxu0
      %v2342 = vpop.f32.mrb[0].mxu0
      %v2343 = vpop.f32.mrb[0].mxu0
      %2344 = vdwg.mxu0
      %v2345 = vadd.f32 %v2056, %v2332
      %v2346 = vadd.f32 %v2057, %v2335
      %v2347 = vadd.f32 %v2058, %v2340
      %2348 = vst.msk [vmem:[%s649] sm:$0xff] %vm749, %v2345
      %2349 = vst.msk [vmem:[%s649 + $0x8] sm:$0xff] %vm749, %v2346
      %2350 = vst.msk [vmem:[%s649 + $0x10] sm:$0x1] %vm747, %v2347
      %s2351 = scalar_lea.vmem %s6, 1
      %v2352 = vld [vmem:[%s2351] sm:$0x1]
      %s2353 = scalar_lea.vmem %s7, 1
      %v2354 = vld [vmem:[%s2353] sm:$0x1]
      %v2355 = vsel %vm749, %v2345, 0.0
      %2356 = vadd.xlane.f32.xlu0 %v2355
      %v2357 = vpop.xlane.xlu0 %2356
      %v2358 = vsel %vm749, %v2346, 0.0
      %2359 = vadd.xlane.f32.xlu0 %v2358
      %v2360 = vpop.xlane.xlu0 %2359
      %v2361 = vsel %vm747, %v2347, 0.0
      %2362 = vadd.xlane.f32.xlu0 %v2361
      %v2363 = vpop.xlane.xlu0 %2362
      %v2364 = vmul.f32 %v2357, %v772
      %v2365 = vmul.f32 %v2360, %v772
      %v2366 = vmul.f32 %v2363, %v772
      %v2367 = vsub.f32 %v2345, %v2364
      %v2368 = vsub.f32 %v2346, %v2365
      %v2369 = vsub.f32 %v2347, %v2366
      %v2370 = vmul.f32 %v2367, %v2367
      %v2371 = vmul.f32 %v2368, %v2368
      %v2372 = vmul.f32 %v2369, %v2369
      %v2373 = vsel %vm749, %v2370, 0.0
      %2374 = vadd.xlane.f32.xlu0 %v2373
      %v2375 = vpop.xlane.xlu0 %2374
      %v2376 = vsel %vm749, %v2371, 0.0
      %2377 = vadd.xlane.f32.xlu0 %v2376
      %v2378 = vpop.xlane.xlu0 %2377
      %v2379 = vsel %vm747, %v2372, 0.0
      %2380 = vadd.xlane.f32.xlu0 %v2379
      %v2381 = vpop.xlane.xlu0 %2380
      %v2382 = vmul.f32 %v2375, %v772
      %v2383 = vmul.f32 %v2378, %v772
      %v2384 = vmul.f32 %v2381, %v772
      %v2385 = vadd.f32 %v2382, 1e-05
      %v2386 = vadd.f32 %v2383, 1e-05
      %v2387 = vadd.f32 %v2384, 1e-05
      %v2388 = vrsqrt.pop %v2385
      %v2389 = vrsqrt.pop %v2386
      %v2390 = vrsqrt.pop %v2387
      %v2391 = vmul.f32 %v2367, %v2388
      %v2392 = vmul.f32 %v2368, %v2389
      %v2393 = vmul.f32 %v2369, %v2390
      %v2395 = vlaneseq
      %v2396 = vshrl.u32 %v2395, 7
      %v2397 = vsub.s32 0, %v2396
      %v2398 = vrot.slane %v2352, %v2397
      %v2400 = vmul.f32 %v2391, %v2398
      %v2401 = vmul.f32 %v2392, %v2398
      %v2402 = vmul.f32 %v2393, %v2398
      %v2404 = vlaneseq
      %v2405 = vshrl.u32 %v2404, 7
      %v2406 = vsub.s32 0, %v2405
      %v2407 = vrot.slane %v2354, %v2406
      %v2409 = vadd.f32 %v2400, %v2407
      %v2410 = vadd.f32 %v2401, %v2407
      %v2411 = vadd.f32 %v2402, %v2407
      %v2412 = vpack.c.bf16 %v2410, %v2409
      %v2413 = vpack.c.bf16 %v2411, %v2411
      %s2414 = scalar_lea.vmem %s8, 16
      %v2415 = vld [vmem:[%s2414] sm:$0xf]
      %v2416 = vld [vmem:[%s2414 + $0x4] sm:$0xf]
      %v2417 = vld [vmem:[%s2414 + $0x8] sm:$0xf]
      %v2418 = vld [vmem:[%s2414 + $0xc] sm:$0xf]
      %s2419 = scalar_lea.vmem %s9, 1
      %v2420 = vld [vmem:[%s2419] sm:$0x1]
      %v2422 = vlaneseq
      %v2423 = vshrl.u32 %v2422, 7
      %v2424 = vsub.s32 0, %v2423
      %v2425 = vrot.slane %v2420, %v2424
      %v2431 = vunpack.c.l.b16 %v2415
      %v2432 = vunpack.c.l.b16 %v2416
      %v2433 = vunpack.c.l.b16 %v2417
      %v2434 = vunpack.c.l.b16 %v2418
      %v2435 = vpack.c.b16 %v2432, %v2431
      %v2436 = vpack.c.b16 %v2434, %v2433
      %v2440 = vsel %vm749, %v2412, 0
      %v2443 = vsel %vm749, %v2413, 0
      %2445 = vmatprep.subr.bf16.mxu0 0
      %2446 = vmatpush1.bf16.msra.mxu0 %v2435
      %2447 = vmatprep.subr.bf16.mxu0 0
      %2448 = vmatpush1.bf16.msra.mxu0 %v2436
      %2449 = vmatprep.subr.bf16.mxu0 0
      %2450 = vmatpush1.bf16.msra.mxu0 0
      %2451 = vmatprep.subr.bf16.mxu0 0
      %2452 = vmatpush1.bf16.msra.mxu0 0
      %2453 = vmatprep.subr.bf16.mxu0 0
      %2454 = vmatpush1.bf16.msra.mxu0 0
      %2455 = vmatprep.subr.bf16.mxu0 0
      %2456 = vmatpush1.bf16.msra.mxu0 0
      %2457 = vmatprep.subr.bf16.mxu0 0
      %2458 = vmatpush1.bf16.msra.mxu0 0
      %2459 = vmatprep.subr.bf16.mxu0 0
      %2460 = vmatpush1.bf16.msra.mxu0 0
      %2461 = vmatprep.subr.bf16.mxu0 0
      %2462 = vmatpush1.bf16.msra.mxu0 0
      %2463 = vmatprep.subr.bf16.mxu0 0
      %2464 = vmatpush1.bf16.msra.mxu0 0
      %2465 = vmatprep.subr.bf16.mxu0 0
      %2466 = vmatpush1.bf16.msra.mxu0 0
      %2467 = vmatprep.subr.bf16.mxu0 0
      %2468 = vmatpush1.bf16.msra.mxu0 0
      %2469 = vmatprep.subr.bf16.mxu0 0
      %2470 = vmatpush1.bf16.msra.mxu0 0
      %2471 = vmatprep.subr.bf16.mxu0 0
      %2472 = vmatpush1.bf16.msra.mxu0 0
      %2473 = vmatprep.subr.bf16.mxu0 0
      %2474 = vmatpush1.bf16.msra.mxu0 0
      %2475 = vmatprep.subr.bf16.mxu0 0
      %2476 = vmatpush1.bf16.msra.mxu0 0
      %2477 = vmatprep.mubr.bf16.mxu0 0
      %2478 = vmatmul.mubr.bf16.gmra.mrb[0].mxu0 %v2440
      %v2479 = vpop.f32.mrb[0].mxu0
      %v2480 = vadd.f32 %v2425, %v2479
      %v2481 = vpop.f32.mrb[0].mxu0
      %v2482 = vpop.f32.mrb[0].mxu0
      %v2483 = vadd.f32 %v2425, %v2482
      %v2484 = vpop.f32.mrb[0].mxu0
      %2485 = vmatprep.mubr.bf16.mxu0 0
      %2486 = vmatmul.mubr.bf16.gmra.mrb[0].mxu0 %v2443
      %v2487 = vpop.f32.mrb[0].mxu0
      %v2488 = vadd.f32 %v2425, %v2487
      %v2489 = vpop.f32.mrb[0].mxu0
      %v2490 = vpop.f32.mrb[0].mxu0
      %v2491 = vpop.f32.mrb[0].mxu0
      %2492 = vdwg.mxu0
      %2496 = vrot.lane.b32.xlu0 %v2480, 96
      %v2497 = vpop.permute.xlu0 %2496
      %2498 = vrot.lane.b32.xlu0 %v2483, 96
      %v2499 = vpop.permute.xlu0 %2498
      %2500 = vrot.lane.b32.xlu0 %v2488, 96
      %v2501 = vpop.permute.xlu0 %2500
      %v2502 = vsel %vm971, %v2480, 0
      %v2504 = vsel %vm971, %v2483, 0
      %v2506 = vsel %vm971, %v2488, 0
      %v2508 = vsel %vm971, %v2497, 0
      %v2510 = vsel %vm971, %v2499, 0
      %v2512 = vsel %vm971, %v2501, 0
      %2514 = vmatprep.subr.mxu0 0.0
      %2515 = vmatpush1.xpose.msra.mxu0 %v2508
      %2516 = vmatprep.subr.mxu0 0.0
      %2517 = vmatpush1.xpose.msra.mxu0 %v2510
      %2518 = vmatprep.subr.mxu0 0.0
      %2519 = vmatpush1.xpose.msra.mxu0 %v2512
      %2520 = vmatprep.subr.mxu0 0.0
      %2521 = vmatpush1.xpose.msra.mxu0 0.0
      %2522 = vmatprep.subr.mxu0 0.0
      %2523 = vmatpush1.xpose.msra.mxu0 0.0
      %2524 = vmatprep.subr.mxu0 0.0
      %2525 = vmatpush1.xpose.msra.mxu0 0.0
      %2526 = vmatprep.subr.mxu0 0.0
      %2527 = vmatpush1.xpose.msra.mxu0 0.0
      %2528 = vmatprep.subr.mxu0 0.0
      %2529 = vmatpush1.xpose.msra.mxu0 0.0
      %2530 = vmatprep.subr.mxu0 0.0
      %2531 = vmatpush1.xpose.msra.mxu0 0.0
      %2532 = vmatprep.subr.mxu0 0.0
      %2533 = vmatpush1.xpose.msra.mxu0 0.0
      %2534 = vmatprep.subr.mxu0 0.0
      %2535 = vmatpush1.xpose.msra.mxu0 0.0
      %2536 = vmatprep.subr.mxu0 0.0
      %2537 = vmatpush1.xpose.msra.mxu0 0.0
      %2538 = vmatprep.subr.mxu0 0.0
      %2539 = vmatpush1.xpose.msra.mxu0 0.0
      %2540 = vmatprep.subr.mxu0 0.0
      %2541 = vmatpush1.xpose.msra.mxu0 0.0
      %2542 = vmatprep.subr.mxu0 0.0
      %2543 = vmatpush1.xpose.msra.mxu0 0.0
      %2544 = vmatprep.subr.mxu0 0.0
      %2545 = vmatpush1.xpose.msra.mxu0 0.0
      %2546 = vmatprep.subr.mxu0 0.0
      %2547 = vmatpush1.xpose.msra.mxu0 0.0
      %2548 = vmatprep.subr.mxu0 0.0
      %2549 = vmatpush1.xpose.msra.mxu0 0.0
      %2550 = vmatprep.subr.mxu0 0.0
      %2551 = vmatpush1.xpose.msra.mxu0 0.0
      %2552 = vmatprep.subr.mxu0 0.0
      %2553 = vmatpush1.xpose.msra.mxu0 0.0
      %2554 = vmatprep.subr.mxu0 0.0
      %2555 = vmatpush1.xpose.msra.mxu0 0.0
      %2556 = vmatprep.subr.mxu0 0.0
      %2557 = vmatpush1.xpose.msra.mxu0 0.0
      %2558 = vmatprep.subr.mxu0 0.0
      %2559 = vmatpush1.xpose.msra.mxu0 0.0
      %2560 = vmatprep.subr.mxu0 0.0
      %2561 = vmatpush1.xpose.msra.mxu0 0.0
      %2562 = vmatprep.subr.mxu0 0.0
      %2563 = vmatpush1.xpose.msra.mxu0 0.0
      %2564 = vmatprep.subr.mxu0 0.0
      %2565 = vmatpush1.xpose.msra.mxu0 0.0
      %2566 = vmatprep.subr.mxu0 0.0
      %2567 = vmatpush1.xpose.msra.mxu0 0.0
      %2568 = vmatprep.subr.mxu0 0.0
      %2569 = vmatpush1.xpose.msra.mxu0 0.0
      %2570 = vmatprep.subr.mxu0 0.0
      %2571 = vmatpush1.xpose.msra.mxu0 0.0
      %2572 = vmatprep.subr.mxu0 0.0
      %2573 = vmatpush1.xpose.msra.mxu0 0.0
      %2574 = vmatprep.subr.mxu0 0.0
      %2575 = vmatpush1.xpose.msra.mxu0 0.0
      %2576 = vmatprep.subr.mxu0 0.0
      %2577 = vmatpush1.xpose.msra.mxu0 0.0
      %2578 = vmatprep.mubr.f32.mxu0 0.0
      %2579 = vmatmul.mubr.f32.gmra.mrb[0].mxu0 %v2502
      %v2580 = vpop.f32.mrb[0].mxu0
      %v2581 = vadd.f32 0.0, %v2580
      %v2582 = vpop.f32.mrb[0].mxu0
      %2583 = vmatprep.mubr.f32.mxu0 0.0
      %2584 = vmatmul.mubr.f32.gmra.mrb[0].mxu0 %v2504
      %v2585 = vpop.f32.mrb[0].mxu0
      %v2586 = vadd.f32 0.0, %v2585
      %v2587 = vpop.f32.mrb[0].mxu0
      %2588 = vmatprep.mubr.f32.mxu0 0.0
      %2589 = vmatmul.mubr.f32.gmra.mrb[0].mxu0 %v2506
      %v2590 = vpop.f32.mrb[0].mxu0
      %v2591 = vadd.f32 0.0, %v2590
      %v2592 = vpop.f32.mrb[0].mxu0
      %2593 = vdwg.mxu0
      %v2594 = vmul.f32 %v2581, 0.35355338
      %v2595 = vmul.f32 %v2586, 0.35355338
      %v2596 = vmul.f32 %v2591, 0.35355338
      %v2597 = vsel %vm1067, %v2594, -inf
      %2598 = vmax.xlane.f32.xlu0 %v2597
      %v2599 = vpop.xlane.xlu0 %2598
      %v2600 = vsel %vm1067, %v2595, -inf
      %2601 = vmax.xlane.f32.xlu0 %v2600
      %v2602 = vpop.xlane.xlu0 %2601
      %v2603 = vsel %vm1074, %v2596, -inf
      %2604 = vmax.xlane.f32.xlu0 %v2603
      %v2605 = vpop.xlane.xlu0 %2604
      %v2606 = vsub.f32 %v2594, %v2599
      %v2607 = vsub.f32 %v2595, %v2602
      %v2608 = vsub.f32 %v2596, %v2605
      %v2609 = vmul.f32 %v2606, 1.442695
      %v2610 = vpow.pop %v2609
      %v2611 = vmul.f32 %v2607, 1.442695
      %v2612 = vpow.pop %v2611
      %v2613 = vmul.f32 %v2608, 1.442695
      %v2614 = vpow.pop %v2613
      %v2615 = vsel %vm1067, %v2610, 0.0
      %2616 = vadd.xlane.f32.xlu0 %v2615
      %v2617 = vpop.xlane.xlu0 %2616
      %v2618 = vsel %vm1067, %v2612, 0.0
      %2619 = vadd.xlane.f32.xlu0 %v2618
      %v2620 = vpop.xlane.xlu0 %2619
      %v2621 = vsel %vm1074, %v2614, 0.0
      %2622 = vadd.xlane.f32.xlu0 %v2621
      %v2623 = vpop.xlane.xlu0 %2622
      %v2624 = vrcp.pop %v2617
      %v2625 = vrcp.pop %v2620
      %v2626 = vrcp.pop %v2623
      %v2627 = vmul.f32 %v2610, %v2624
      %v2628 = vmul.f32 %v2612, %v2625
      %v2629 = vmul.f32 %v2614, %v2626
      %2630 = vrot.lane.b32.xlu0 %v2480, 64
      %v2631 = vpop.permute.xlu0 %2630
      %2632 = vrot.lane.b32.xlu0 %v2483, 64
      %v2633 = vpop.permute.xlu0 %2632
      %2634 = vrot.lane.b32.xlu0 %v2488, 64
      %v2635 = vpop.permute.xlu0 %2634
      %v2639 = vsel %vm1067, %v2627, 0
      %v2642 = vsel %vm1067, %v2628, 0
      %v2645 = vsel %vm1067, %v2629, 0
      %v2647 = vsel %vm1119, %v2635, 0
      %2649 = vmatprep.subr.mxu0 0.0
      %2650 = vmatpush1.msra.mxu0 %v2631
      %2651 = vmatprep.subr.mxu0 0.0
      %2652 = vmatpush1.msra.mxu0 %v2633
      %2653 = vmatprep.subr.mxu0 0.0
      %2654 = vmatpush1.msra.mxu0 %v2647
      %2655 = vmatprep.subr.mxu0 0.0
      %2656 = vmatpush1.msra.mxu0 0.0
      %2657 = vmatprep.subr.mxu0 0.0
      %2658 = vmatpush1.msra.mxu0 0.0
      %2659 = vmatprep.subr.mxu0 0.0
      %2660 = vmatpush1.msra.mxu0 0.0
      %2661 = vmatprep.subr.mxu0 0.0
      %2662 = vmatpush1.msra.mxu0 0.0
      %2663 = vmatprep.subr.mxu0 0.0
      %2664 = vmatpush1.msra.mxu0 0.0
      %2665 = vmatprep.subr.mxu0 0.0
      %2666 = vmatpush1.msra.mxu0 0.0
      %2667 = vmatprep.subr.mxu0 0.0
      %2668 = vmatpush1.msra.mxu0 0.0
      %2669 = vmatprep.subr.mxu0 0.0
      %2670 = vmatpush1.msra.mxu0 0.0
      %2671 = vmatprep.subr.mxu0 0.0
      %2672 = vmatpush1.msra.mxu0 0.0
      %2673 = vmatprep.subr.mxu0 0.0
      %2674 = vmatpush1.msra.mxu0 0.0
      %2675 = vmatprep.subr.mxu0 0.0
      %2676 = vmatpush1.msra.mxu0 0.0
      %2677 = vmatprep.subr.mxu0 0.0
      %2678 = vmatpush1.msra.mxu0 0.0
      %2679 = vmatprep.subr.mxu0 0.0
      %2680 = vmatpush1.msra.mxu0 0.0
      %2681 = vmatprep.subr.mxu0 0.0
      %2682 = vmatpush1.msra.mxu0 0.0
      %2683 = vmatprep.subr.mxu0 0.0
      %2684 = vmatpush1.msra.mxu0 0.0
      %2685 = vmatprep.subr.mxu0 0.0
      %2686 = vmatpush1.msra.mxu0 0.0
      %2687 = vmatprep.subr.mxu0 0.0
      %2688 = vmatpush1.msra.mxu0 0.0
      %2689 = vmatprep.subr.mxu0 0.0
      %2690 = vmatpush1.msra.mxu0 0.0
      %2691 = vmatprep.subr.mxu0 0.0
      %2692 = vmatpush1.msra.mxu0 0.0
      %2693 = vmatprep.subr.mxu0 0.0
      %2694 = vmatpush1.msra.mxu0 0.0
      %2695 = vmatprep.subr.mxu0 0.0
      %2696 = vmatpush1.msra.mxu0 0.0
      %2697 = vmatprep.subr.mxu0 0.0
      %2698 = vmatpush1.msra.mxu0 0.0
      %2699 = vmatprep.subr.mxu0 0.0
      %2700 = vmatpush1.msra.mxu0 0.0
      %2701 = vmatprep.subr.mxu0 0.0
      %2702 = vmatpush1.msra.mxu0 0.0
      %2703 = vmatprep.subr.mxu0 0.0
      %2704 = vmatpush1.msra.mxu0 0.0
      %2705 = vmatprep.subr.mxu0 0.0
      %2706 = vmatpush1.msra.mxu0 0.0
      %2707 = vmatprep.subr.mxu0 0.0
      %2708 = vmatpush1.msra.mxu0 0.0
      %2709 = vmatprep.subr.mxu0 0.0
      %2710 = vmatpush1.msra.mxu0 0.0
      %2711 = vmatprep.subr.mxu0 0.0
      %2712 = vmatpush1.msra.mxu0 0.0
      %2713 = vmatprep.mubr.f32.mxu0 0.0
      %2714 = vmatmul.mubr.f32.gmra.mrb[0].mxu0 %v2639
      %v2715 = vpop.f32.mrb[0].mxu0
      %v2716 = vadd.f32 0.0, %v2715
      %v2717 = vpop.f32.mrb[0].mxu0
      %2718 = vmatprep.mubr.f32.mxu0 0.0
      %2719 = vmatmul.mubr.f32.gmra.mrb[0].mxu0 %v2642
      %v2720 = vpop.f32.mrb[0].mxu0
      %v2721 = vadd.f32 0.0, %v2720
      %v2722 = vpop.f32.mrb[0].mxu0
      %2723 = vmatprep.mubr.f32.mxu0 0.0
      %2724 = vmatmul.mubr.f32.gmra.mrb[0].mxu0 %v2645
      %v2725 = vpop.f32.mrb[0].mxu0
      %v2726 = vadd.f32 0.0, %v2725
      %v2727 = vpop.f32.mrb[0].mxu0
      %2728 = vdwg.mxu0
      %2729 = vst.msk [vmem:[#allocation2] sm:$0xff] %vm971, %v2716
      %2730 = vst.msk [vmem:[#allocation2 + $0x8] sm:$0xff] %vm971, %v2721
      %2731 = vst.msk [vmem:[#allocation2 + $0x10] sm:$0x1] %vm1204, %v2726
      %2732 = vrot.lane.b32.xlu0 %v2480, 120
      %v2733 = vpop.permute.xlu0 %2732
      %2734 = vrot.lane.b32.xlu0 %v2483, 120
      %v2735 = vpop.permute.xlu0 %2734
      %2736 = vrot.lane.b32.xlu0 %v2488, 120
      %v2737 = vpop.permute.xlu0 %2736
      %2738 = vrot.lane.b32.xlu0 %v2480, 88
      %v2739 = vpop.permute.xlu0 %2738
      %2740 = vrot.lane.b32.xlu0 %v2483, 88
      %v2741 = vpop.permute.xlu0 %2740
      %2742 = vrot.lane.b32.xlu0 %v2488, 88
      %v2743 = vpop.permute.xlu0 %2742
      %v2744 = vsel %vm971, %v2733, 0
      %v2746 = vsel %vm971, %v2735, 0
      %v2748 = vsel %vm971, %v2737, 0
      %v2750 = vsel %vm971, %v2739, 0
      %v2752 = vsel %vm971, %v2741, 0
      %v2754 = vsel %vm971, %v2743, 0
      %2756 = vmatprep.subr.mxu0 0.0
      %2757 = vmatpush1.xpose.msra.mxu0 %v2750
      %2758 = vmatprep.subr.mxu0 0.0
      %2759 = vmatpush1.xpose.msra.mxu0 %v2752
      %2760 = vmatprep.subr.mxu0 0.0
      %2761 = vmatpush1.xpose.msra.mxu0 %v2754
      %2762 = vmatprep.subr.mxu0 0.0
      %2763 = vmatpush1.xpose.msra.mxu0 0.0
      %2764 = vmatprep.subr.mxu0 0.0
      %2765 = vmatpush1.xpose.msra.mxu0 0.0
      %2766 = vmatprep.subr.mxu0 0.0
      %2767 = vmatpush1.xpose.msra.mxu0 0.0
      %2768 = vmatprep.subr.mxu0 0.0
      %2769 = vmatpush1.xpose.msra.mxu0 0.0
      %2770 = vmatprep.subr.mxu0 0.0
      %2771 = vmatpush1.xpose.msra.mxu0 0.0
      %2772 = vmatprep.subr.mxu0 0.0
      %2773 = vmatpush1.xpose.msra.mxu0 0.0
      %2774 = vmatprep.subr.mxu0 0.0
      %2775 = vmatpush1.xpose.msra.mxu0 0.0
      %2776 = vmatprep.subr.mxu0 0.0
      %2777 = vmatpush1.xpose.msra.mxu0 0.0
      %2778 = vmatprep.subr.mxu0 0.0
      %2779 = vmatpush1.xpose.msra.mxu0 0.0
      %2780 = vmatprep.subr.mxu0 0.0
      %2781 = vmatpush1.xpose.msra.mxu0 0.0
      %2782 = vmatprep.subr.mxu0 0.0
      %2783 = vmatpush1.xpose.msra.mxu0 0.0
      %2784 = vmatprep.subr.mxu0 0.0
      %2785 = vmatpush1.xpose.msra.mxu0 0.0
      %2786 = vmatprep.subr.mxu0 0.0
      %2787 = vmatpush1.xpose.msra.mxu0 0.0
      %2788 = vmatprep.subr.mxu0 0.0
      %2789 = vmatpush1.xpose.msra.mxu0 0.0
      %2790 = vmatprep.subr.mxu0 0.0
      %2791 = vmatpush1.xpose.msra.mxu0 0.0
      %2792 = vmatprep.subr.mxu0 0.0
      %2793 = vmatpush1.xpose.msra.mxu0 0.0
      %2794 = vmatprep.subr.mxu0 0.0
      %2795 = vmatpush1.xpose.msra.mxu0 0.0
      %2796 = vmatprep.subr.mxu0 0.0
      %2797 = vmatpush1.xpose.msra.mxu0 0.0
      %2798 = vmatprep.subr.mxu0 0.0
      %2799 = vmatpush1.xpose.msra.mxu0 0.0
      %2800 = vmatprep.subr.mxu0 0.0
      %2801 = vmatpush1.xpose.msra.mxu0 0.0
      %2802 = vmatprep.subr.mxu0 0.0
      %2803 = vmatpush1.xpose.msra.mxu0 0.0
      %2804 = vmatprep.subr.mxu0 0.0
      %2805 = vmatpush1.xpose.msra.mxu0 0.0
      %2806 = vmatprep.subr.mxu0 0.0
      %2807 = vmatpush1.xpose.msra.mxu0 0.0
      %2808 = vmatprep.subr.mxu0 0.0
      %2809 = vmatpush1.xpose.msra.mxu0 0.0
      %2810 = vmatprep.subr.mxu0 0.0
      %2811 = vmatpush1.xpose.msra.mxu0 0.0
      %2812 = vmatprep.subr.mxu0 0.0
      %2813 = vmatpush1.xpose.msra.mxu0 0.0
      %2814 = vmatprep.subr.mxu0 0.0
      %2815 = vmatpush1.xpose.msra.mxu0 0.0
      %2816 = vmatprep.subr.mxu0 0.0
      %2817 = vmatpush1.xpose.msra.mxu0 0.0
      %2818 = vmatprep.subr.mxu0 0.0
      %2819 = vmatpush1.xpose.msra.mxu0 0.0
      %2820 = vmatprep.mubr.f32.mxu0 0.0
      %2821 = vmatmul.mubr.f32.gmra.mrb[0].mxu0 %v2744
      %v2822 = vpop.f32.mrb[0].mxu0
      %v2823 = vadd.f32 0.0, %v2822
      %v2824 = vpop.f32.mrb[0].mxu0
      %2825 = vmatprep.mubr.f32.mxu0 0.0
      %2826 = vmatmul.mubr.f32.gmra.mrb[0].mxu0 %v2746
      %v2827 = vpop.f32.mrb[0].mxu0
      %v2828 = vadd.f32 0.0, %v2827
      %v2829 = vpop.f32.mrb[0].mxu0
      %2830 = vmatprep.mubr.f32.mxu0 0.0
      %2831 = vmatmul.mubr.f32.gmra.mrb[0].mxu0 %v2748
      %v2832 = vpop.f32.mrb[0].mxu0
      %v2833 = vadd.f32 0.0, %v2832
      %v2834 = vpop.f32.mrb[0].mxu0
      %2835 = vdwg.mxu0
      %v2836 = vmul.f32 %v2823, 0.35355338
      %v2837 = vmul.f32 %v2828, 0.35355338
      %v2838 = vmul.f32 %v2833, 0.35355338
      %v2839 = vsel %vm1067, %v2836, -inf
      %2840 = vmax.xlane.f32.xlu0 %v2839
      %v2841 = vpop.xlane.xlu0 %2840
      %v2842 = vsel %vm1067, %v2837, -inf
      %2843 = vmax.xlane.f32.xlu0 %v2842
      %v2844 = vpop.xlane.xlu0 %2843
      %v2845 = vsel %vm1074, %v2838, -inf
      %2846 = vmax.xlane.f32.xlu0 %v2845
      %v2847 = vpop.xlane.xlu0 %2846
      %v2848 = vsub.f32 %v2836, %v2841
      %v2849 = vsub.f32 %v2837, %v2844
      %v2850 = vsub.f32 %v2838, %v2847
      %v2851 = vmul.f32 %v2848, 1.442695
      %v2852 = vpow.pop %v2851
      %v2853 = vmul.f32 %v2849, 1.442695
      %v2854 = vpow.pop %v2853
      %v2855 = vmul.f32 %v2850, 1.442695
      %v2856 = vpow.pop %v2855
      %v2857 = vsel %vm1067, %v2852, 0.0
      %2858 = vadd.xlane.f32.xlu0 %v2857
      %v2859 = vpop.xlane.xlu0 %2858
      %v2860 = vsel %vm1067, %v2854, 0.0
      %2861 = vadd.xlane.f32.xlu0 %v2860
      %v2862 = vpop.xlane.xlu0 %2861
      %v2863 = vsel %vm1074, %v2856, 0.0
      %2864 = vadd.xlane.f32.xlu0 %v2863
      %v2865 = vpop.xlane.xlu0 %2864
      %v2866 = vrcp.pop %v2859
      %v2867 = vrcp.pop %v2862
      %v2868 = vrcp.pop %v2865
      %v2869 = vmul.f32 %v2852, %v2866
      %v2870 = vmul.f32 %v2854, %v2867
      %v2871 = vmul.f32 %v2856, %v2868
      %2872 = vrot.lane.b32.xlu0 %v2480, 56
      %v2873 = vpop.permute.xlu0 %2872
      %2874 = vrot.lane.b32.xlu0 %v2483, 56
      %v2875 = vpop.permute.xlu0 %2874
      %2876 = vrot.lane.b32.xlu0 %v2488, 56
      %v2877 = vpop.permute.xlu0 %2876
      %v2881 = vsel %vm1067, %v2869, 0
      %v2884 = vsel %vm1067, %v2870, 0
      %v2887 = vsel %vm1067, %v2871, 0
      %v2889 = vsel %vm1119, %v2877, 0
      %2891 = vmatprep.subr.mxu0 0.0
      %2892 = vmatpush1.msra.mxu0 %v2873
      %2893 = vmatprep.subr.mxu0 0.0
      %2894 = vmatpush1.msra.mxu0 %v2875
      %2895 = vmatprep.subr.mxu0 0.0
      %2896 = vmatpush1.msra.mxu0 %v2889
      %2897 = vmatprep.subr.mxu0 0.0
      %2898 = vmatpush1.msra.mxu0 0.0
      %2899 = vmatprep.subr.mxu0 0.0
      %2900 = vmatpush1.msra.mxu0 0.0
      %2901 = vmatprep.subr.mxu0 0.0
      %2902 = vmatpush1.msra.mxu0 0.0
      %2903 = vmatprep.subr.mxu0 0.0
      %2904 = vmatpush1.msra.mxu0 0.0
      %2905 = vmatprep.subr.mxu0 0.0
      %2906 = vmatpush1.msra.mxu0 0.0
      %2907 = vmatprep.subr.mxu0 0.0
      %2908 = vmatpush1.msra.mxu0 0.0
      %2909 = vmatprep.subr.mxu0 0.0
      %2910 = vmatpush1.msra.mxu0 0.0
      %2911 = vmatprep.subr.mxu0 0.0
      %2912 = vmatpush1.msra.mxu0 0.0
      %2913 = vmatprep.subr.mxu0 0.0
      %2914 = vmatpush1.msra.mxu0 0.0
      %2915 = vmatprep.subr.mxu0 0.0
      %2916 = vmatpush1.msra.mxu0 0.0
      %2917 = vmatprep.subr.mxu0 0.0
      %2918 = vmatpush1.msra.mxu0 0.0
      %2919 = vmatprep.subr.mxu0 0.0
      %2920 = vmatpush1.msra.mxu0 0.0
      %2921 = vmatprep.subr.mxu0 0.0
      %2922 = vmatpush1.msra.mxu0 0.0
      %2923 = vmatprep.subr.mxu0 0.0
      %2924 = vmatpush1.msra.mxu0 0.0
      %2925 = vmatprep.subr.mxu0 0.0
      %2926 = vmatpush1.msra.mxu0 0.0
      %2927 = vmatprep.subr.mxu0 0.0
      %2928 = vmatpush1.msra.mxu0 0.0
      %2929 = vmatprep.subr.mxu0 0.0
      %2930 = vmatpush1.msra.mxu0 0.0
      %2931 = vmatprep.subr.mxu0 0.0
      %2932 = vmatpush1.msra.mxu0 0.0
      %2933 = vmatprep.subr.mxu0 0.0
      %2934 = vmatpush1.msra.mxu0 0.0
      %2935 = vmatprep.subr.mxu0 0.0
      %2936 = vmatpush1.msra.mxu0 0.0
      %2937 = vmatprep.subr.mxu0 0.0
      %2938 = vmatpush1.msra.mxu0 0.0
      %2939 = vmatprep.subr.mxu0 0.0
      %2940 = vmatpush1.msra.mxu0 0.0
      %2941 = vmatprep.subr.mxu0 0.0
      %2942 = vmatpush1.msra.mxu0 0.0
      %2943 = vmatprep.subr.mxu0 0.0
      %2944 = vmatpush1.msra.mxu0 0.0
      %2945 = vmatprep.subr.mxu0 0.0
      %2946 = vmatpush1.msra.mxu0 0.0
      %2947 = vmatprep.subr.mxu0 0.0
      %2948 = vmatpush1.msra.mxu0 0.0
      %2949 = vmatprep.subr.mxu0 0.0
      %2950 = vmatpush1.msra.mxu0 0.0
      %2951 = vmatprep.subr.mxu0 0.0
      %2952 = vmatpush1.msra.mxu0 0.0
      %2953 = vmatprep.subr.mxu0 0.0
      %2954 = vmatpush1.msra.mxu0 0.0
      %2955 = vmatprep.mubr.f32.mxu0 0.0
      %2956 = vmatmul.mubr.f32.gmra.mrb[0].mxu0 %v2881
      %v2957 = vpop.f32.mrb[0].mxu0
      %v2958 = vadd.f32 0.0, %v2957
      %v2959 = vpop.f32.mrb[0].mxu0
      %2960 = vmatprep.mubr.f32.mxu0 0.0
      %2961 = vmatmul.mubr.f32.gmra.mrb[0].mxu0 %v2884
      %v2962 = vpop.f32.mrb[0].mxu0
      %v2963 = vadd.f32 0.0, %v2962
      %v2964 = vpop.f32.mrb[0].mxu0
      %2965 = vmatprep.mubr.f32.mxu0 0.0
      %2966 = vmatmul.mubr.f32.gmra.mrb[0].mxu0 %v2887
      %v2967 = vpop.f32.mrb[0].mxu0
      %v2968 = vadd.f32 0.0, %v2967
      %v2969 = vpop.f32.mrb[0].mxu0
      %2970 = vdwg.mxu0
      %2974 = vrot.lane.b32.xlu0 %v2958, 8
      %v2975 = vpop.permute.xlu0 %2974
      %2976 = vrot.lane.b32.xlu0 %v2963, 8
      %v2977 = vpop.permute.xlu0 %2976
      %2978 = vrot.lane.b32.xlu0 %v2968, 8
      %v2979 = vpop.permute.xlu0 %2978
      %2983 = vst.msk [vmem:[#allocation2] sm:$0xff] %vm1457, %v2975
      %2984 = vst.msk [vmem:[#allocation2 + $0x8] sm:$0xff] %vm1457, %v2977
      %2985 = vst.msk [vmem:[#allocation2 + $0x10] sm:$0x1] %vm1460, %v2979
      %2986 = vrot.lane.b32.xlu0 %v2480, 112
      %v2987 = vpop.permute.xlu0 %2986
      %2988 = vrot.lane.b32.xlu0 %v2483, 112
      %v2989 = vpop.permute.xlu0 %2988
      %2990 = vrot.lane.b32.xlu0 %v2488, 112
      %v2991 = vpop.permute.xlu0 %2990
      %2992 = vrot.lane.b32.xlu0 %v2480, 80
      %v2993 = vpop.permute.xlu0 %2992
      %2994 = vrot.lane.b32.xlu0 %v2483, 80
      %v2995 = vpop.permute.xlu0 %2994
      %2996 = vrot.lane.b32.xlu0 %v2488, 80
      %v2997 = vpop.permute.xlu0 %2996
      %v2998 = vsel %vm971, %v2987, 0
      %v3000 = vsel %vm971, %v2989, 0
      %v3002 = vsel %vm971, %v2991, 0
      %v3004 = vsel %vm971, %v2993, 0
      %v3006 = vsel %vm971, %v2995, 0
      %v3008 = vsel %vm971, %v2997, 0
      %3010 = vmatprep.subr.mxu0 0.0
      %3011 = vmatpush1.xpose.msra.mxu0 %v3004
      %3012 = vmatprep.subr.mxu0 0.0
      %3013 = vmatpush1.xpose.msra.mxu0 %v3006
      %3014 = vmatprep.subr.mxu0 0.0
      %3015 = vmatpush1.xpose.msra.mxu0 %v3008
      %3016 = vmatprep.subr.mxu0 0.0
      %3017 = vmatpush1.xpose.msra.mxu0 0.0
      %3018 = vmatprep.subr.mxu0 0.0
      %3019 = vmatpush1.xpose.msra.mxu0 0.0
      %3020 = vmatprep.subr.mxu0 0.0
      %3021 = vmatpush1.xpose.msra.mxu0 0.0
      %3022 = vmatprep.subr.mxu0 0.0
      %3023 = vmatpush1.xpose.msra.mxu0 0.0
      %3024 = vmatprep.subr.mxu0 0.0
      %3025 = vmatpush1.xpose.msra.mxu0 0.0
      %3026 = vmatprep.subr.mxu0 0.0
      %3027 = vmatpush1.xpose.msra.mxu0 0.0
      %3028 = vmatprep.subr.mxu0 0.0
      %3029 = vmatpush1.xpose.msra.mxu0 0.0
      %3030 = vmatprep.subr.mxu0 0.0
      %3031 = vmatpush1.xpose.msra.mxu0 0.0
      %3032 = vmatprep.subr.mxu0 0.0
      %3033 = vmatpush1.xpose.msra.mxu0 0.0
      %3034 = vmatprep.subr.mxu0 0.0
      %3035 = vmatpush1.xpose.msra.mxu0 0.0
      %3036 = vmatprep.subr.mxu0 0.0
      %3037 = vmatpush1.xpose.msra.mxu0 0.0
      %3038 = vmatprep.subr.mxu0 0.0
      %3039 = vmatpush1.xpose.msra.mxu0 0.0
      %3040 = vmatprep.subr.mxu0 0.0
      %3041 = vmatpush1.xpose.msra.mxu0 0.0
      %3042 = vmatprep.subr.mxu0 0.0
      %3043 = vmatpush1.xpose.msra.mxu0 0.0
      %3044 = vmatprep.subr.mxu0 0.0
      %3045 = vmatpush1.xpose.msra.mxu0 0.0
      %3046 = vmatprep.subr.mxu0 0.0
      %3047 = vmatpush1.xpose.msra.mxu0 0.0
      %3048 = vmatprep.subr.mxu0 0.0
      %3049 = vmatpush1.xpose.msra.mxu0 0.0
      %3050 = vmatprep.subr.mxu0 0.0
      %3051 = vmatpush1.xpose.msra.mxu0 0.0
      %3052 = vmatprep.subr.mxu0 0.0
      %3053 = vmatpush1.xpose.msra.mxu0 0.0
      %3054 = vmatprep.subr.mxu0 0.0
      %3055 = vmatpush1.xpose.msra.mxu0 0.0
      %3056 = vmatprep.subr.mxu0 0.0
      %3057 = vmatpush1.xpose.msra.mxu0 0.0
      %3058 = vmatprep.subr.mxu0 0.0
      %3059 = vmatpush1.xpose.msra.mxu0 0.0
      %3060 = vmatprep.subr.mxu0 0.0
      %3061 = vmatpush1.xpose.msra.mxu0 0.0
      %3062 = vmatprep.subr.mxu0 0.0
      %3063 = vmatpush1.xpose.msra.mxu0 0.0
      %3064 = vmatprep.subr.mxu0 0.0
      %3065 = vmatpush1.xpose.msra.mxu0 0.0
      %3066 = vmatprep.subr.mxu0 0.0
      %3067 = vmatpush1.xpose.msra.mxu0 0.0
      %3068 = vmatprep.subr.mxu0 0.0
      %3069 = vmatpush1.xpose.msra.mxu0 0.0
      %3070 = vmatprep.subr.mxu0 0.0
      %3071 = vmatpush1.xpose.msra.mxu0 0.0
      %3072 = vmatprep.subr.mxu0 0.0
      %3073 = vmatpush1.xpose.msra.mxu0 0.0
      %3074 = vmatprep.mubr.f32.mxu0 0.0
      %3075 = vmatmul.mubr.f32.gmra.mrb[0].mxu0 %v2998
      %v3076 = vpop.f32.mrb[0].mxu0
      %v3077 = vadd.f32 0.0, %v3076
      %v3078 = vpop.f32.mrb[0].mxu0
      %3079 = vmatprep.mubr.f32.mxu0 0.0
      %3080 = vmatmul.mubr.f32.gmra.mrb[0].mxu0 %v3000
      %v3081 = vpop.f32.mrb[0].mxu0
      %v3082 = vadd.f32 0.0, %v3081
      %v3083 = vpop.f32.mrb[0].mxu0
      %3084 = vmatprep.mubr.f32.mxu0 0.0
      %3085 = vmatmul.mubr.f32.gmra.mrb[0].mxu0 %v3002
      %v3086 = vpop.f32.mrb[0].mxu0
      %v3087 = vadd.f32 0.0, %v3086
      %v3088 = vpop.f32.mrb[0].mxu0
      %3089 = vdwg.mxu0
      %v3090 = vmul.f32 %v3077, 0.35355338
      %v3091 = vmul.f32 %v3082, 0.35355338
      %v3092 = vmul.f32 %v3087, 0.35355338
      %v3093 = vsel %vm1067, %v3090, -inf
      %3094 = vmax.xlane.f32.xlu0 %v3093
      %v3095 = vpop.xlane.xlu0 %3094
      %v3096 = vsel %vm1067, %v3091, -inf
      %3097 = vmax.xlane.f32.xlu0 %v3096
      %v3098 = vpop.xlane.xlu0 %3097
      %v3099 = vsel %vm1074, %v3092, -inf
      %3100 = vmax.xlane.f32.xlu0 %v3099
      %v3101 = vpop.xlane.xlu0 %3100
      %v3102 = vsub.f32 %v3090, %v3095
      %v3103 = vsub.f32 %v3091, %v3098
      %v3104 = vsub.f32 %v3092, %v3101
      %v3105 = vmul.f32 %v3102, 1.442695
      %v3106 = vpow.pop %v3105
      %v3107 = vmul.f32 %v3103, 1.442695
      %v3108 = vpow.pop %v3107
      %v3109 = vmul.f32 %v3104, 1.442695
      %v3110 = vpow.pop %v3109
      %v3111 = vsel %vm1067, %v3106, 0.0
      %3112 = vadd.xlane.f32.xlu0 %v3111
      %v3113 = vpop.xlane.xlu0 %3112
      %v3114 = vsel %vm1067, %v3108, 0.0
      %3115 = vadd.xlane.f32.xlu0 %v3114
      %v3116 = vpop.xlane.xlu0 %3115
      %v3117 = vsel %vm1074, %v3110, 0.0
      %3118 = vadd.xlane.f32.xlu0 %v3117
      %v3119 = vpop.xlane.xlu0 %3118
      %v3120 = vrcp.pop %v3113
      %v3121 = vrcp.pop %v3116
      %v3122 = vrcp.pop %v3119
      %v3123 = vmul.f32 %v3106, %v3120
      %v3124 = vmul.f32 %v3108, %v3121
      %v3125 = vmul.f32 %v3110, %v3122
      %3126 = vrot.lane.b32.xlu0 %v2480, 48
      %v3127 = vpop.permute.xlu0 %3126
      %3128 = vrot.lane.b32.xlu0 %v2483, 48
      %v3129 = vpop.permute.xlu0 %3128
      %3130 = vrot.lane.b32.xlu0 %v2488, 48
      %v3131 = vpop.permute.xlu0 %3130
      %v3135 = vsel %vm1067, %v3123, 0
      %v3138 = vsel %vm1067, %v3124, 0
      %v3141 = vsel %vm1067, %v3125, 0
      %v3143 = vsel %vm1119, %v3131, 0
      %3145 = vmatprep.subr.mxu0 0.0
      %3146 = vmatpush1.msra.mxu0 %v3127
      %3147 = vmatprep.subr.mxu0 0.0
      %3148 = vmatpush1.msra.mxu0 %v3129
      %3149 = vmatprep.subr.mxu0 0.0
      %3150 = vmatpush1.msra.mxu0 %v3143
      %3151 = vmatprep.subr.mxu0 0.0
      %3152 = vmatpush1.msra.mxu0 0.0
      %3153 = vmatprep.subr.mxu0 0.0
      %3154 = vmatpush1.msra.mxu0 0.0
      %3155 = vmatprep.subr.mxu0 0.0
      %3156 = vmatpush1.msra.mxu0 0.0
      %3157 = vmatprep.subr.mxu0 0.0
      %3158 = vmatpush1.msra.mxu0 0.0
      %3159 = vmatprep.subr.mxu0 0.0
      %3160 = vmatpush1.msra.mxu0 0.0
      %3161 = vmatprep.subr.mxu0 0.0
      %3162 = vmatpush1.msra.mxu0 0.0
      %3163 = vmatprep.subr.mxu0 0.0
      %3164 = vmatpush1.msra.mxu0 0.0
      %3165 = vmatprep.subr.mxu0 0.0
      %3166 = vmatpush1.msra.mxu0 0.0
      %3167 = vmatprep.subr.mxu0 0.0
      %3168 = vmatpush1.msra.mxu0 0.0
      %3169 = vmatprep.subr.mxu0 0.0
      %3170 = vmatpush1.msra.mxu0 0.0
      %3171 = vmatprep.subr.mxu0 0.0
      %3172 = vmatpush1.msra.mxu0 0.0
      %3173 = vmatprep.subr.mxu0 0.0
      %3174 = vmatpush1.msra.mxu0 0.0
      %3175 = vmatprep.subr.mxu0 0.0
      %3176 = vmatpush1.msra.mxu0 0.0
      %3177 = vmatprep.subr.mxu0 0.0
      %3178 = vmatpush1.msra.mxu0 0.0
      %3179 = vmatprep.subr.mxu0 0.0
      %3180 = vmatpush1.msra.mxu0 0.0
      %3181 = vmatprep.subr.mxu0 0.0
      %3182 = vmatpush1.msra.mxu0 0.0
      %3183 = vmatprep.subr.mxu0 0.0
      %3184 = vmatpush1.msra.mxu0 0.0
      %3185 = vmatprep.subr.mxu0 0.0
      %3186 = vmatpush1.msra.mxu0 0.0
      %3187 = vmatprep.subr.mxu0 0.0
      %3188 = vmatpush1.msra.mxu0 0.0
      %3189 = vmatprep.subr.mxu0 0.0
      %3190 = vmatpush1.msra.mxu0 0.0
      %3191 = vmatprep.subr.mxu0 0.0
      %3192 = vmatpush1.msra.mxu0 0.0
      %3193 = vmatprep.subr.mxu0 0.0
      %3194 = vmatpush1.msra.mxu0 0.0
      %3195 = vmatprep.subr.mxu0 0.0
      %3196 = vmatpush1.msra.mxu0 0.0
      %3197 = vmatprep.subr.mxu0 0.0
      %3198 = vmatpush1.msra.mxu0 0.0
      %3199 = vmatprep.subr.mxu0 0.0
      %3200 = vmatpush1.msra.mxu0 0.0
      %3201 = vmatprep.subr.mxu0 0.0
      %3202 = vmatpush1.msra.mxu0 0.0
      %3203 = vmatprep.subr.mxu0 0.0
      %3204 = vmatpush1.msra.mxu0 0.0
      %3205 = vmatprep.subr.mxu0 0.0
      %3206 = vmatpush1.msra.mxu0 0.0
      %3207 = vmatprep.subr.mxu0 0.0
      %3208 = vmatpush1.msra.mxu0 0.0
      %3209 = vmatprep.mubr.f32.mxu0 0.0
      %3210 = vmatmul.mubr.f32.gmra.mrb[0].mxu0 %v3135
      %v3211 = vpop.f32.mrb[0].mxu0
      %v3212 = vadd.f32 0.0, %v3211
      %v3213 = vpop.f32.mrb[0].mxu0
      %3214 = vmatprep.mubr.f32.mxu0 0.0
      %3215 = vmatmul.mubr.f32.gmra.mrb[0].mxu0 %v3138
      %v3216 = vpop.f32.mrb[0].mxu0
      %v3217 = vadd.f32 0.0, %v3216
      %v3218 = vpop.f32.mrb[0].mxu0
      %3219 = vmatprep.mubr.f32.mxu0 0.0
      %3220 = vmatmul.mubr.f32.gmra.mrb[0].mxu0 %v3141
      %v3221 = vpop.f32.mrb[0].mxu0
      %v3222 = vadd.f32 0.0, %v3221
      %v3223 = vpop.f32.mrb[0].mxu0
      %3224 = vdwg.mxu0
      %3228 = vrot.lane.b32.xlu0 %v3212, 16
      %v3229 = vpop.permute.xlu0 %3228
      %3230 = vrot.lane.b32.xlu0 %v3217, 16
      %v3231 = vpop.permute.xlu0 %3230
      %3232 = vrot.lane.b32.xlu0 %v3222, 16
      %v3233 = vpop.permute.xlu0 %3232
      %3237 = vst.msk [vmem:[#allocation2] sm:$0xff] %vm1713, %v3229
      %3238 = vst.msk [vmem:[#allocation2 + $0x8] sm:$0xff] %vm1713, %v3231
      %3239 = vst.msk [vmem:[#allocation2 + $0x10] sm:$0x1] %vm1716, %v3233
      %3240 = vrot.lane.b32.xlu0 %v2480, 104
      %v3241 = vpop.permute.xlu0 %3240
      %3242 = vrot.lane.b32.xlu0 %v2483, 104
      %v3243 = vpop.permute.xlu0 %3242
      %3244 = vrot.lane.b32.xlu0 %v2488, 104
      %v3245 = vpop.permute.xlu0 %3244
      %3246 = vrot.lane.b32.xlu0 %v2480, 72
      %v3247 = vpop.permute.xlu0 %3246
      %3248 = vrot.lane.b32.xlu0 %v2483, 72
      %v3249 = vpop.permute.xlu0 %3248
      %3250 = vrot.lane.b32.xlu0 %v2488, 72
      %v3251 = vpop.permute.xlu0 %3250
      %v3252 = vsel %vm971, %v3241, 0
      %v3254 = vsel %vm971, %v3243, 0
      %v3256 = vsel %vm971, %v3245, 0
      %v3258 = vsel %vm971, %v3247, 0
      %v3260 = vsel %vm971, %v3249, 0
      %v3262 = vsel %vm971, %v3251, 0
      %3264 = vmatprep.subr.mxu0 0.0
      %3265 = vmatpush1.xpose.msra.mxu0 %v3258
      %3266 = vmatprep.subr.mxu0 0.0
      %3267 = vmatpush1.xpose.msra.mxu0 %v3260
      %3268 = vmatprep.subr.mxu0 0.0
      %3269 = vmatpush1.xpose.msra.mxu0 %v3262
      %3270 = vmatprep.subr.mxu0 0.0
      %3271 = vmatpush1.xpose.msra.mxu0 0.0
      %3272 = vmatprep.subr.mxu0 0.0
      %3273 = vmatpush1.xpose.msra.mxu0 0.0
      %3274 = vmatprep.subr.mxu0 0.0
      %3275 = vmatpush1.xpose.msra.mxu0 0.0
      %3276 = vmatprep.subr.mxu0 0.0
      %3277 = vmatpush1.xpose.msra.mxu0 0.0
      %3278 = vmatprep.subr.mxu0 0.0
      %3279 = vmatpush1.xpose.msra.mxu0 0.0
      %3280 = vmatprep.subr.mxu0 0.0
      %3281 = vmatpush1.xpose.msra.mxu0 0.0
      %3282 = vmatprep.subr.mxu0 0.0
      %3283 = vmatpush1.xpose.msra.mxu0 0.0
      %3284 = vmatprep.subr.mxu0 0.0
      %3285 = vmatpush1.xpose.msra.mxu0 0.0
      %3286 = vmatprep.subr.mxu0 0.0
      %3287 = vmatpush1.xpose.msra.mxu0 0.0
      %3288 = vmatprep.subr.mxu0 0.0
      %3289 = vmatpush1.xpose.msra.mxu0 0.0
      %3290 = vmatprep.subr.mxu0 0.0
      %3291 = vmatpush1.xpose.msra.mxu0 0.0
      %3292 = vmatprep.subr.mxu0 0.0
      %3293 = vmatpush1.xpose.msra.mxu0 0.0
      %3294 = vmatprep.subr.mxu0 0.0
      %3295 = vmatpush1.xpose.msra.mxu0 0.0
      %3296 = vmatprep.subr.mxu0 0.0
      %3297 = vmatpush1.xpose.msra.mxu0 0.0
      %3298 = vmatprep.subr.mxu0 0.0
      %3299 = vmatpush1.xpose.msra.mxu0 0.0
      %3300 = vmatprep.subr.mxu0 0.0
      %3301 = vmatpush1.xpose.msra.mxu0 0.0
      %3302 = vmatprep.subr.mxu0 0.0
      %3303 = vmatpush1.xpose.msra.mxu0 0.0
      %3304 = vmatprep.subr.mxu0 0.0
      %3305 = vmatpush1.xpose.msra.mxu0 0.0
      %3306 = vmatprep.subr.mxu0 0.0
      %3307 = vmatpush1.xpose.msra.mxu0 0.0
      %3308 = vmatprep.subr.mxu0 0.0
      %3309 = vmatpush1.xpose.msra.mxu0 0.0
      %3310 = vmatprep.subr.mxu0 0.0
      %3311 = vmatpush1.xpose.msra.mxu0 0.0
      %3312 = vmatprep.subr.mxu0 0.0
      %3313 = vmatpush1.xpose.msra.mxu0 0.0
      %3314 = vmatprep.subr.mxu0 0.0
      %3315 = vmatpush1.xpose.msra.mxu0 0.0
      %3316 = vmatprep.subr.mxu0 0.0
      %3317 = vmatpush1.xpose.msra.mxu0 0.0
      %3318 = vmatprep.subr.mxu0 0.0
      %3319 = vmatpush1.xpose.msra.mxu0 0.0
      %3320 = vmatprep.subr.mxu0 0.0
      %3321 = vmatpush1.xpose.msra.mxu0 0.0
      %3322 = vmatprep.subr.mxu0 0.0
      %3323 = vmatpush1.xpose.msra.mxu0 0.0
      %3324 = vmatprep.subr.mxu0 0.0
      %3325 = vmatpush1.xpose.msra.mxu0 0.0
      %3326 = vmatprep.subr.mxu0 0.0
      %3327 = vmatpush1.xpose.msra.mxu0 0.0
      %3328 = vmatprep.mubr.f32.mxu0 0.0
      %3329 = vmatmul.mubr.f32.gmra.mrb[0].mxu0 %v3252
      %v3330 = vpop.f32.mrb[0].mxu0
      %v3331 = vadd.f32 0.0, %v3330
      %v3332 = vpop.f32.mrb[0].mxu0
      %3333 = vmatprep.mubr.f32.mxu0 0.0
      %3334 = vmatmul.mubr.f32.gmra.mrb[0].mxu0 %v3254
      %v3335 = vpop.f32.mrb[0].mxu0
      %v3336 = vadd.f32 0.0, %v3335
      %v3337 = vpop.f32.mrb[0].mxu0
      %3338 = vmatprep.mubr.f32.mxu0 0.0
      %3339 = vmatmul.mubr.f32.gmra.mrb[0].mxu0 %v3256
      %v3340 = vpop.f32.mrb[0].mxu0
      %v3341 = vadd.f32 0.0, %v3340
      %v3342 = vpop.f32.mrb[0].mxu0
      %3343 = vdwg.mxu0
      %v3344 = vmul.f32 %v3331, 0.35355338
      %v3345 = vmul.f32 %v3336, 0.35355338
      %v3346 = vmul.f32 %v3341, 0.35355338
      %v3347 = vsel %vm1067, %v3344, -inf
      %3348 = vmax.xlane.f32.xlu0 %v3347
      %v3349 = vpop.xlane.xlu0 %3348
      %v3350 = vsel %vm1067, %v3345, -inf
      %3351 = vmax.xlane.f32.xlu0 %v3350
      %v3352 = vpop.xlane.xlu0 %3351
      %v3353 = vsel %vm1074, %v3346, -inf
      %3354 = vmax.xlane.f32.xlu0 %v3353
      %v3355 = vpop.xlane.xlu0 %3354
      %v3356 = vsub.f32 %v3344, %v3349
      %v3357 = vsub.f32 %v3345, %v3352
      %v3358 = vsub.f32 %v3346, %v3355
      %v3359 = vmul.f32 %v3356, 1.442695
      %v3360 = vpow.pop %v3359
      %v3361 = vmul.f32 %v3357, 1.442695
      %v3362 = vpow.pop %v3361
      %v3363 = vmul.f32 %v3358, 1.442695
      %v3364 = vpow.pop %v3363
      %v3365 = vsel %vm1067, %v3360, 0.0
      %3366 = vadd.xlane.f32.xlu0 %v3365
      %v3367 = vpop.xlane.xlu0 %3366
      %v3368 = vsel %vm1067, %v3362, 0.0
      %3369 = vadd.xlane.f32.xlu0 %v3368
      %v3370 = vpop.xlane.xlu0 %3369
      %v3371 = vsel %vm1074, %v3364, 0.0
      %3372 = vadd.xlane.f32.xlu0 %v3371
      %v3373 = vpop.xlane.xlu0 %3372
      %v3374 = vrcp.pop %v3367
      %v3375 = vrcp.pop %v3370
      %v3376 = vrcp.pop %v3373
      %v3377 = vmul.f32 %v3360, %v3374
      %v3378 = vmul.f32 %v3362, %v3375
      %v3379 = vmul.f32 %v3364, %v3376
      %3380 = vrot.lane.b32.xlu0 %v2480, 40
      %v3381 = vpop.permute.xlu0 %3380
      %3382 = vrot.lane.b32.xlu0 %v2483, 40
      %v3383 = vpop.permute.xlu0 %3382
      %3384 = vrot.lane.b32.xlu0 %v2488, 40
      %v3385 = vpop.permute.xlu0 %3384
      %v3389 = vsel %vm1067, %v3377, 0
      %v3392 = vsel %vm1067, %v3378, 0
      %v3395 = vsel %vm1067, %v3379, 0
      %v3397 = vsel %vm1119, %v3385, 0
      %3399 = vmatprep.subr.mxu0 0.0
      %3400 = vmatpush1.msra.mxu0 %v3381
      %3401 = vmatprep.subr.mxu0 0.0
      %3402 = vmatpush1.msra.mxu0 %v3383
      %3403 = vmatprep.subr.mxu0 0.0
      %3404 = vmatpush1.msra.mxu0 %v3397
      %3405 = vmatprep.subr.mxu0 0.0
      %3406 = vmatpush1.msra.mxu0 0.0
      %3407 = vmatprep.subr.mxu0 0.0
      %3408 = vmatpush1.msra.mxu0 0.0
      %3409 = vmatprep.subr.mxu0 0.0
      %3410 = vmatpush1.msra.mxu0 0.0
      %3411 = vmatprep.subr.mxu0 0.0
      %3412 = vmatpush1.msra.mxu0 0.0
      %3413 = vmatprep.subr.mxu0 0.0
      %3414 = vmatpush1.msra.mxu0 0.0
      %3415 = vmatprep.subr.mxu0 0.0
      %3416 = vmatpush1.msra.mxu0 0.0
      %3417 = vmatprep.subr.mxu0 0.0
      %3418 = vmatpush1.msra.mxu0 0.0
      %3419 = vmatprep.subr.mxu0 0.0
      %3420 = vmatpush1.msra.mxu0 0.0
      %3421 = vmatprep.subr.mxu0 0.0
      %3422 = vmatpush1.msra.mxu0 0.0
      %3423 = vmatprep.subr.mxu0 0.0
      %3424 = vmatpush1.msra.mxu0 0.0
      %3425 = vmatprep.subr.mxu0 0.0
      %3426 = vmatpush1.msra.mxu0 0.0
      %3427 = vmatprep.subr.mxu0 0.0
      %3428 = vmatpush1.msra.mxu0 0.0
      %3429 = vmatprep.subr.mxu0 0.0
      %3430 = vmatpush1.msra.mxu0 0.0
      %3431 = vmatprep.subr.mxu0 0.0
      %3432 = vmatpush1.msra.mxu0 0.0
      %3433 = vmatprep.subr.mxu0 0.0
      %3434 = vmatpush1.msra.mxu0 0.0
      %3435 = vmatprep.subr.mxu0 0.0
      %3436 = vmatpush1.msra.mxu0 0.0
      %3437 = vmatprep.subr.mxu0 0.0
      %3438 = vmatpush1.msra.mxu0 0.0
      %3439 = vmatprep.subr.mxu0 0.0
      %3440 = vmatpush1.msra.mxu0 0.0
      %3441 = vmatprep.subr.mxu0 0.0
      %3442 = vmatpush1.msra.mxu0 0.0
      %3443 = vmatprep.subr.mxu0 0.0
      %3444 = vmatpush1.msra.mxu0 0.0
      %3445 = vmatprep.subr.mxu0 0.0
      %3446 = vmatpush1.msra.mxu0 0.0
      %3447 = vmatprep.subr.mxu0 0.0
      %3448 = vmatpush1.msra.mxu0 0.0
      %3449 = vmatprep.subr.mxu0 0.0
      %3450 = vmatpush1.msra.mxu0 0.0
      %3451 = vmatprep.subr.mxu0 0.0
      %3452 = vmatpush1.msra.mxu0 0.0
      %3453 = vmatprep.subr.mxu0 0.0
      %3454 = vmatpush1.msra.mxu0 0.0
      %3455 = vmatprep.subr.mxu0 0.0
      %3456 = vmatpush1.msra.mxu0 0.0
      %3457 = vmatprep.subr.mxu0 0.0
      %3458 = vmatpush1.msra.mxu0 0.0
      %3459 = vmatprep.subr.mxu0 0.0
      %3460 = vmatpush1.msra.mxu0 0.0
      %3461 = vmatprep.subr.mxu0 0.0
      %3462 = vmatpush1.msra.mxu0 0.0
      %3463 = vmatprep.mubr.f32.mxu0 0.0
      %3464 = vmatmul.mubr.f32.gmra.mrb[0].mxu0 %v3389
      %v3465 = vpop.f32.mrb[0].mxu0
      %v3466 = vadd.f32 0.0, %v3465
      %v3467 = vpop.f32.mrb[0].mxu0
      %3468 = vmatprep.mubr.f32.mxu0 0.0
      %3469 = vmatmul.mubr.f32.gmra.mrb[0].mxu0 %v3392
      %v3470 = vpop.f32.mrb[0].mxu0
      %v3471 = vadd.f32 0.0, %v3470
      %v3472 = vpop.f32.mrb[0].mxu0
      %3473 = vmatprep.mubr.f32.mxu0 0.0
      %3474 = vmatmul.mubr.f32.gmra.mrb[0].mxu0 %v3395
      %v3475 = vpop.f32.mrb[0].mxu0
      %v3476 = vadd.f32 0.0, %v3475
      %v3477 = vpop.f32.mrb[0].mxu0
      %3478 = vdwg.mxu0
      %3482 = vrot.lane.b32.xlu0 %v3466, 24
      %v3483 = vpop.permute.xlu0 %3482
      %3484 = vrot.lane.b32.xlu0 %v3471, 24
      %v3485 = vpop.permute.xlu0 %3484
      %3486 = vrot.lane.b32.xlu0 %v3476, 24
      %v3487 = vpop.permute.xlu0 %3486
      %3491 = vst.msk [vmem:[#allocation2] sm:$0xff] %vm1969, %v3483
      %3492 = vst.msk [vmem:[#allocation2 + $0x8] sm:$0xff] %vm1969, %v3485
      %3493 = vst.msk [vmem:[#allocation2 + $0x10] sm:$0x1] %vm1972, %v3487
      %v3494 = vld [vmem:[#allocation2] sm:$0xff]
      %v3495 = vld [vmem:[#allocation2 + $0x8] sm:$0xff]
      %v3496 = vld [vmem:[#allocation2 + $0x10] sm:$0x1]
      %v3497 = vpack.c.bf16 %v3495, %v3494
      %v3498 = vpack.c.bf16 %v3496, %v3496
      %s3499 = scalar_lea.vmem %s10, 16
      %v3500 = vld [vmem:[%s3499] sm:$0xf]
      %v3501 = vld [vmem:[%s3499 + $0x4] sm:$0xf]
      %v3502 = vld [vmem:[%s3499 + $0x8] sm:$0xf]
      %v3503 = vld [vmem:[%s3499 + $0xc] sm:$0xf]
      %s3504 = scalar_lea.vmem %s11, 1
      %v3505 = vld [vmem:[%s3504] sm:$0x1]
      %v3507 = vlaneseq
      %v3508 = vshrl.u32 %v3507, 7
      %v3509 = vsub.s32 0, %v3508
      %v3510 = vrot.slane %v3505, %v3509
      %v3516 = vunpack.c.l.b16 %v3500
      %v3517 = vunpack.c.l.b16 %v3501
      %v3518 = vunpack.c.l.b16 %v3502
      %v3519 = vunpack.c.l.b16 %v3503
      %v3520 = vpack.c.b16 %v3517, %v3516
      %v3521 = vpack.c.b16 %v3519, %v3518
      %v3525 = vsel %vm749, %v3497, 0
      %v3528 = vsel %vm749, %v3498, 0
      %3530 = vmatprep.subr.bf16.mxu0 0
      %3531 = vmatpush1.bf16.msra.mxu0 %v3520
      %3532 = vmatprep.subr.bf16.mxu0 0
      %3533 = vmatpush1.bf16.msra.mxu0 %v3521
      %3534 = vmatprep.subr.bf16.mxu0 0
      %3535 = vmatpush1.bf16.msra.mxu0 0
      %3536 = vmatprep.subr.bf16.mxu0 0
      %3537 = vmatpush1.bf16.msra.mxu0 0
      %3538 = vmatprep.subr.bf16.mxu0 0
      %3539 = vmatpush1.bf16.msra.mxu0 0
      %3540 = vmatprep.subr.bf16.mxu0 0
      %3541 = vmatpush1.bf16.msra.mxu0 0
      %3542 = vmatprep.subr.bf16.mxu0 0
      %3543 = vmatpush1.bf16.msra.mxu0 0
      %3544 = vmatprep.subr.bf16.mxu0 0
      %3545 = vmatpush1.bf16.msra.mxu0 0
      %3546 = vmatprep.subr.bf16.mxu0 0
      %3547 = vmatpush1.bf16.msra.mxu0 0
      %3548 = vmatprep.subr.bf16.mxu0 0
      %3549 = vmatpush1.bf16.msra.mxu0 0
      %3550 = vmatprep.subr.bf16.mxu0 0
      %3551 = vmatpush1.bf16.msra.mxu0 0
      %3552 = vmatprep.subr.bf16.mxu0 0
      %3553 = vmatpush1.bf16.msra.mxu0 0
      %3554 = vmatprep.subr.bf16.mxu0 0
      %3555 = vmatpush1.bf16.msra.mxu0 0
      %3556 = vmatprep.subr.bf16.mxu0 0
      %3557 = vmatpush1.bf16.msra.mxu0 0
      %3558 = vmatprep.subr.bf16.mxu0 0
      %3559 = vmatpush1.bf16.msra.mxu0 0
      %3560 = vmatprep.subr.bf16.mxu0 0
      %3561 = vmatpush1.bf16.msra.mxu0 0
      %3562 = vmatprep.mubr.bf16.mxu0 0
      %3563 = vmatmul.mubr.bf16.gmra.mrb[0].mxu0 %v3525
      %v3564 = vpop.f32.mrb[0].mxu0
      %v3565 = vadd.f32 %v3510, %v3564
      %v3566 = vpop.f32.mrb[0].mxu0
      %v3567 = vpop.f32.mrb[0].mxu0
      %v3568 = vadd.f32 %v3510, %v3567
      %v3569 = vpop.f32.mrb[0].mxu0
      %3570 = vmatprep.mubr.bf16.mxu0 0
      %3571 = vmatmul.mubr.bf16.gmra.mrb[0].mxu0 %v3528
      %v3572 = vpop.f32.mrb[0].mxu0
      %v3573 = vadd.f32 %v3510, %v3572
      %v3574 = vpop.f32.mrb[0].mxu0
      %v3575 = vpop.f32.mrb[0].mxu0
      %v3576 = vpop.f32.mrb[0].mxu0
      %3577 = vdwg.mxu0
      %v3578 = vadd.f32 %v2345, %v3565
      %v3579 = vadd.f32 %v2346, %v3568
      %v3580 = vadd.f32 %v2347, %v3573
      %s3581 = scalar_lea.vmem %s12, 1
      %v3582 = vld [vmem:[%s3581] sm:$0x1]
      %s3583 = scalar_lea.vmem %s13, 1
      %v3584 = vld [vmem:[%s3583] sm:$0x1]
      %v3585 = vsel %vm749, %v3578, 0.0
      %3586 = vadd.xlane.f32.xlu0 %v3585
      %v3587 = vpop.xlane.xlu0 %3586
      %v3588 = vsel %vm749, %v3579, 0.0
      %3589 = vadd.xlane.f32.xlu0 %v3588
      %v3590 = vpop.xlane.xlu0 %3589
      %v3591 = vsel %vm747, %v3580, 0.0
      %3592 = vadd.xlane.f32.xlu0 %v3591
      %v3593 = vpop.xlane.xlu0 %3592
      %v3594 = vmul.f32 %v3587, %v772
      %v3595 = vmul.f32 %v3590, %v772
      %v3596 = vmul.f32 %v3593, %v772
      %v3597 = vsub.f32 %v3578, %v3594
      %v3598 = vsub.f32 %v3579, %v3595
      %v3599 = vsub.f32 %v3580, %v3596
      %v3600 = vmul.f32 %v3597, %v3597
      %v3601 = vmul.f32 %v3598, %v3598
      %v3602 = vmul.f32 %v3599, %v3599
      %v3603 = vsel %vm749, %v3600, 0.0
      %3604 = vadd.xlane.f32.xlu0 %v3603
      %v3605 = vpop.xlane.xlu0 %3604
      %v3606 = vsel %vm749, %v3601, 0.0
      %3607 = vadd.xlane.f32.xlu0 %v3606
      %v3608 = vpop.xlane.xlu0 %3607
      %v3609 = vsel %vm747, %v3602, 0.0
      %3610 = vadd.xlane.f32.xlu0 %v3609
      %v3611 = vpop.xlane.xlu0 %3610
      %v3612 = vmul.f32 %v3605, %v772
      %v3613 = vmul.f32 %v3608, %v772
      %v3614 = vmul.f32 %v3611, %v772
      %v3615 = vadd.f32 %v3612, 1e-05
      %v3616 = vadd.f32 %v3613, 1e-05
      %v3617 = vadd.f32 %v3614, 1e-05
      %v3618 = vrsqrt.pop %v3615
      %v3619 = vrsqrt.pop %v3616
      %v3620 = vrsqrt.pop %v3617
      %v3621 = vmul.f32 %v3597, %v3618
      %v3622 = vmul.f32 %v3598, %v3619
      %v3623 = vmul.f32 %v3599, %v3620
      %v3625 = vlaneseq
      %v3626 = vshrl.u32 %v3625, 7
      %v3627 = vsub.s32 0, %v3626
      %v3628 = vrot.slane %v3582, %v3627
      %v3630 = vmul.f32 %v3621, %v3628
      %v3631 = vmul.f32 %v3622, %v3628
      %v3632 = vmul.f32 %v3623, %v3628
      %v3634 = vlaneseq
      %v3635 = vshrl.u32 %v3634, 7
      %v3636 = vsub.s32 0, %v3635
      %v3637 = vrot.slane %v3584, %v3636
      %v3639 = vadd.f32 %v3630, %v3637
      %v3640 = vadd.f32 %v3631, %v3637
      %v3641 = vadd.f32 %v3632, %v3637
      %v3642 = vpack.c.bf16 %v3640, %v3639
      %v3643 = vpack.c.bf16 %v3641, %v3641
      %s3644 = scalar_lea.vmem %s14, 16
      %v3645 = vld [vmem:[%s3644] sm:$0xf]
      %v3646 = vld [vmem:[%s3644 + $0x4] sm:$0xf]
      %v3647 = vld [vmem:[%s3644 + $0x8] sm:$0xf]
      %v3648 = vld [vmem:[%s3644 + $0xc] sm:$0xf]
      %s3649 = scalar_lea.vmem %s15, 1
      %v3650 = vld [vmem:[%s3649] sm:$0x1]
      %v3652 = vlaneseq
      %v3653 = vshrl.u32 %v3652, 7
      %v3654 = vsub.s32 0, %v3653
      %v3655 = vrot.slane %v3650, %v3654
      %v3661 = vunpack.c.l.b16 %v3645
      %v3662 = vunpack.c.l.b16 %v3646
      %v3663 = vunpack.c.l.b16 %v3647
      %v3664 = vunpack.c.l.b16 %v3648
      %v3665 = vpack.c.b16 %v3662, %v3661
      %v3666 = vpack.c.b16 %v3664, %v3663
      %v3670 = vsel %vm749, %v3642, 0
      %v3673 = vsel %vm749, %v3643, 0
      %3675 = vmatprep.subr.bf16.mxu0 0
      %3676 = vmatpush1.bf16.msra.mxu0 %v3665
      %3677 = vmatprep.subr.bf16.mxu0 0
      %3678 = vmatpush1.bf16.msra.mxu0 %v3666
      %3679 = vmatprep.subr.bf16.mxu0 0
      %3680 = vmatpush1.bf16.msra.mxu0 0
      %3681 = vmatprep.subr.bf16.mxu0 0
      %3682 = vmatpush1.bf16.msra.mxu0 0
      %3683 = vmatprep.subr.bf16.mxu0 0
      %3684 = vmatpush1.bf16.msra.mxu0 0
      %3685 = vmatprep.subr.bf16.mxu0 0
      %3686 = vmatpush1.bf16.msra.mxu0 0
      %3687 = vmatprep.subr.bf16.mxu0 0
      %3688 = vmatpush1.bf16.msra.mxu0 0
      %3689 = vmatprep.subr.bf16.mxu0 0
      %3690 = vmatpush1.bf16.msra.mxu0 0
      %3691 = vmatprep.subr.bf16.mxu0 0
      %3692 = vmatpush1.bf16.msra.mxu0 0
      %3693 = vmatprep.subr.bf16.mxu0 0
      %3694 = vmatpush1.bf16.msra.mxu0 0
      %3695 = vmatprep.subr.bf16.mxu0 0
      %3696 = vmatpush1.bf16.msra.mxu0 0
      %3697 = vmatprep.subr.bf16.mxu0 0
      %3698 = vmatpush1.bf16.msra.mxu0 0
      %3699 = vmatprep.subr.bf16.mxu0 0
      %3700 = vmatpush1.bf16.msra.mxu0 0
      %3701 = vmatprep.subr.bf16.mxu0 0
      %3702 = vmatpush1.bf16.msra.mxu0 0
      %3703 = vmatprep.subr.bf16.mxu0 0
      %3704 = vmatpush1.bf16.msra.mxu0 0
      %3705 = vmatprep.subr.bf16.mxu0 0
      %3706 = vmatpush1.bf16.msra.mxu0 0
      %3707 = vmatprep.mubr.bf16.mxu0 0
      %3708 = vmatmul.mubr.bf16.gmra.mrb[0].mxu0 %v3670
      %v3709 = vpop.f32.mrb[0].mxu0
      %v3710 = vadd.f32 %v3655, %v3709
      %v3711 = vpop.f32.mrb[0].mxu0
      %v3712 = vpop.f32.mrb[0].mxu0
      %v3713 = vadd.f32 %v3655, %v3712
      %v3714 = vpop.f32.mrb[0].mxu0
      %3715 = vmatprep.mubr.bf16.mxu0 0
      %3716 = vmatmul.mubr.bf16.gmra.mrb[0].mxu0 %v3673
      %v3717 = vpop.f32.mrb[0].mxu0
      %v3718 = vadd.f32 %v3655, %v3717
      %v3719 = vpop.f32.mrb[0].mxu0
      %v3720 = vpop.f32.mrb[0].mxu0
      %v3721 = vpop.f32.mrb[0].mxu0
      %3722 = vdwg.mxu0
      %v3723 = vmul.f32 %v3710, 0.5
      %v3724 = vmul.f32 %v3713, 0.5
      %v3725 = vmul.f32 %v3718, 0.5
      %v3726 = vmul.f32 %v3710, 0.044715
      %v3727 = vmul.f32 %v3713, 0.044715
      %v3728 = vmul.f32 %v3718, 0.044715
      %v3729 = vmul.f32 %v3726, %v3710
      %v3730 = vmul.f32 %v3727, %v3713
      %v3731 = vmul.f32 %v3728, %v3718
      %v3732 = vmul.f32 %v3729, %v3710
      %v3733 = vmul.f32 %v3730, %v3713
      %v3734 = vmul.f32 %v3731, %v3718
      %v3735 = vadd.f32 %v3710, %v3732
      %v3736 = vadd.f32 %v3713, %v3733
      %v3737 = vadd.f32 %v3718, %v3734
      %v3738 = vmul.f32 %v3735, 0.7978846
      %v3739 = vmul.f32 %v3736, 0.7978846
      %v3740 = vmul.f32 %v3737, 0.7978846
      %v3741 = vtanh.pop %v3738
      %v3742 = vtanh.pop %v3739
      %v3743 = vtanh.pop %v3740
      %v3744 = vadd.f32 %v3741, 1.0
      %v3745 = vadd.f32 %v3742, 1.0
      %v3746 = vadd.f32 %v3743, 1.0
      %v3747 = vmul.f32 %v3723, %v3744
      %v3748 = vmul.f32 %v3724, %v3745
      %v3749 = vmul.f32 %v3725, %v3746
      %v3750 = vpack.c.bf16 %v3748, %v3747
      %v3751 = vpack.c.bf16 %v3749, %v3749
      %s3752 = scalar_lea.vmem %s16, 64
      %v3753 = vld [vmem:[%s3752] sm:$0xf]
      %v3754 = vld [vmem:[%s3752 + $0x4] sm:$0xf]
      %v3755 = vld [vmem:[%s3752 + $0x8] sm:$0xf]
      %v3756 = vld [vmem:[%s3752 + $0xc] sm:$0xf]
      %v3757 = vld [vmem:[%s3752 + $0x10] sm:$0xf]
      %v3758 = vld [vmem:[%s3752 + $0x14] sm:$0xf]
      %v3759 = vld [vmem:[%s3752 + $0x18] sm:$0xf]
      %v3760 = vld [vmem:[%s3752 + $0x1c] sm:$0xf]
      %v3761 = vld [vmem:[%s3752 + $0x20] sm:$0xf]
      %v3762 = vld [vmem:[%s3752 + $0x24] sm:$0xf]
      %v3763 = vld [vmem:[%s3752 + $0x28] sm:$0xf]
      %v3764 = vld [vmem:[%s3752 + $0x2c] sm:$0xf]
      %v3765 = vld [vmem:[%s3752 + $0x30] sm:$0xf]
      %v3766 = vld [vmem:[%s3752 + $0x34] sm:$0xf]
      %v3767 = vld [vmem:[%s3752 + $0x38] sm:$0xf]
      %v3768 = vld [vmem:[%s3752 + $0x3c] sm:$0xf]
      %s3769 = scalar_lea.vmem %s17, 1
      %v3770 = vld [vmem:[%s3769] sm:$0x1]
      %v3772 = vlaneseq
      %v3773 = vshrl.u32 %v3772, 7
      %v3774 = vsub.s32 0, %v3773
      %v3775 = vrot.slane %v3770, %v3774
      %v3793 = vunpack.c.l.b16 %v3753
      %v3794 = vunpack.c.l.b16 %v3754
      %v3795 = vunpack.c.l.b16 %v3755
      %v3796 = vunpack.c.l.b16 %v3756
      %v3797 = vunpack.c.l.b16 %v3757
      %v3798 = vunpack.c.l.b16 %v3758
      %v3799 = vunpack.c.l.b16 %v3759
      %v3800 = vunpack.c.l.b16 %v3760
      %v3801 = vunpack.c.l.b16 %v3761
      %v3802 = vunpack.c.l.b16 %v3762
      %v3803 = vunpack.c.l.b16 %v3763
      %v3804 = vunpack.c.l.b16 %v3764
      %v3805 = vunpack.c.l.b16 %v3765
      %v3806 = vunpack.c.l.b16 %v3766
      %v3807 = vunpack.c.l.b16 %v3767
      %v3808 = vunpack.c.l.b16 %v3768
      %v3809 = vpack.c.b16 %v3794, %v3793
      %v3810 = vpack.c.b16 %v3796, %v3795
      %v3811 = vpack.c.b16 %v3798, %v3797
      %v3812 = vpack.c.b16 %v3800, %v3799
      %v3813 = vpack.c.b16 %v3802, %v3801
      %v3814 = vpack.c.b16 %v3804, %v3803
      %v3815 = vpack.c.b16 %v3806, %v3805
      %v3816 = vpack.c.b16 %v3808, %v3807
      %3825 = vmatprep.subr.bf16.mxu0 0
      %3826 = vmatpush1.bf16.msra.mxu0 %v3809
      %3827 = vmatprep.subr.bf16.mxu0 0
      %3828 = vmatpush1.bf16.msra.mxu0 %v3810
      %3829 = vmatprep.subr.bf16.mxu0 0
      %3830 = vmatpush1.bf16.msra.mxu0 %v3811
      %3831 = vmatprep.subr.bf16.mxu0 0
      %3832 = vmatpush1.bf16.msra.mxu0 %v3812
      %3833 = vmatprep.subr.bf16.mxu0 0
      %3834 = vmatpush1.bf16.msra.mxu0 %v3813
      %3835 = vmatprep.subr.bf16.mxu0 0
      %3836 = vmatpush1.bf16.msra.mxu0 %v3814
      %3837 = vmatprep.subr.bf16.mxu0 0
      %3838 = vmatpush1.bf16.msra.mxu0 %v3815
      %3839 = vmatprep.subr.bf16.mxu0 0
      %3840 = vmatpush1.bf16.msra.mxu0 %v3816
      %3841 = vmatprep.subr.bf16.mxu0 0
      %3842 = vmatpush1.bf16.msra.mxu0 0
      %3843 = vmatprep.subr.bf16.mxu0 0
      %3844 = vmatpush1.bf16.msra.mxu0 0
      %3845 = vmatprep.subr.bf16.mxu0 0
      %3846 = vmatpush1.bf16.msra.mxu0 0
      %3847 = vmatprep.subr.bf16.mxu0 0
      %3848 = vmatpush1.bf16.msra.mxu0 0
      %3849 = vmatprep.subr.bf16.mxu0 0
      %3850 = vmatpush1.bf16.msra.mxu0 0
      %3851 = vmatprep.subr.bf16.mxu0 0
      %3852 = vmatpush1.bf16.msra.mxu0 0
      %3853 = vmatprep.subr.bf16.mxu0 0
      %3854 = vmatpush1.bf16.msra.mxu0 0
      %3855 = vmatprep.subr.bf16.mxu0 0
      %3856 = vmatpush1.bf16.msra.mxu0 0
      %3857 = vmatprep.mubr.bf16.mxu0 0
      %3858 = vmatmul.mubr.bf16.gmra.mrb[0].mxu0 %v3750
      %v3859 = vpop.f32.mrb[0].mxu0
      %v3860 = vadd.f32 %v3775, %v3859
      %v3861 = vpop.f32.mrb[0].mxu0
      %v3862 = vpop.f32.mrb[0].mxu0
      %v3863 = vadd.f32 %v3775, %v3862
      %v3864 = vpop.f32.mrb[0].mxu0
      %3865 = vmatprep.mubr.bf16.mxu0 0
      %3866 = vmatmul.mubr.bf16.gmra.mrb[0].mxu0 %v3751
      %v3867 = vpop.f32.mrb[0].mxu0
      %v3868 = vadd.f32 %v3775, %v3867
      %v3869 = vpop.f32.mrb[0].mxu0
      %v3870 = vpop.f32.mrb[0].mxu0
      %v3871 = vpop.f32.mrb[0].mxu0
      %3872 = vdwg.mxu0
      %v3873 = vadd.f32 %v3578, %v3860
      %v3874 = vadd.f32 %v3579, %v3863
      %v3875 = vadd.f32 %v3580, %v3868
      %3876 = vst.msk [vmem:[%s654] sm:$0xff] %vm749, %v3873
      %3877 = vst.msk [vmem:[%s654 + $0x8] sm:$0xff] %vm749, %v3874
      %3878 = vst.msk [vmem:[%s654 + $0x10] sm:$0x1] %vm747, %v3875
      %p3879 = scmp.lt.s32.totalorder %s32, 1
      %s3880 = scalar_select %p3879, %s32, 1
      %s3881 = smul.addr %s3880, 3
      %s3882 = smul.addr %s3881, 8
      %s3883 = scalar_lea.vmem %s18, %s3882
      %p3884 = scmp.lt.s32.totalorder %s32, 1
      %s3885 = scalar_select %p3884, %s32, 1
      %s3886 = smul.addr %s3885, 3
      %s3887 = smul.addr %s3886, 8
      %s3888 = scalar_lea.vmem %s19, %s3887
      %p3889 = scmp.lt.s32.totalorder %s32, 1
      %s3890 = scalar_select %p3889, %s32, 1
      %s3891 = smul.addr %s3890, 3
      %s3892 = smul.addr %s3891, 8
      %s3893 = scalar_lea.vmem %s20, %s3892
      // Predicated region
      $region93: #{_forward_stack.1} parent=91 // pred_check
        %p3894 = pneg %p433
      $region94: #{_forward_stack.1} parent=91 // pred_check_branch
        %3896 = sbr.rel (%p3894) target = $region96
      $region95: #{_forward_stack.1} parent=91 // pred_region
        _
      $region96: #{_forward_stack.1} parent=91 // pred_fallthru
        _
      // Predicated region
      $region97: #{_forward_stack.1} parent=91 // pred_check
        %p3897 = pneg %p459
      $region98: #{_forward_stack.1} parent=91 // pred_check_branch
        %3899 = sbr.rel (%p3897) target = $region100
      $region99: #{_forward_stack.1} parent=91 // pred_region
        _
      $region100: #{_forward_stack.1} parent=91 // pred_fallthru
        _
      // Predicated region
      $region101: #{_forward_stack.1} parent=91 // pred_check
        %p3900 = pneg %p485
      $region102: #{_forward_stack.1} parent=91 // pred_check_branch
        %3902 = sbr.rel (%p3900) target = $region104
      $region103: #{_forward_stack.1} parent=91 // pred_region
        _
      $region104: #{_forward_stack.1} parent=91 // pred_fallthru
        _
    $region92: #{_forward_stack.1} parent=5 // pred_fallthru
      _
    %p3903 = scmp.le.s32.totalorder 2, %s27
    // Predicated region
    $region105: #{_forward_stack.1} parent=5 // pred_check
      %p3904 = pneg %p3903
    $region106: #{_forward_stack.1} parent=5 // pred_check_branch
      %3906 = sbr.rel (%p3904) target = $region108
    $region107: #{_forward_stack.1} parent=5 // pred_region
      %s3907 = ssub.s32 %s27, 2
      // Predicated region
      $region109: #{_forward_stack.1} parent=107 // pred_check
        %p3908 = pneg %p439
      $region110: #{_forward_stack.1} parent=107 // pred_check_branch
        %3910 = sbr.rel (%p3908) target = $region112
      $region111: #{_forward_stack.1} parent=107 // pred_region
        %p3911 = scmp.lt.s32.totalorder %s33, 1
        %s3912 = scalar_select %p3911, %s33, 1
        %s3913 = smul.addr %s3912, 3
        %s3914 = smul.addr %s3913, 8
        %s3915 = scalar_lea.vmem %s18, %s3914
      $region112: #{_forward_stack.1} parent=107 // pred_fallthru
        _
      // Predicated region
      $region113: #{_forward_stack.1} parent=107 // pred_check
        %p3916 = pneg %p465
      $region114: #{_forward_stack.1} parent=107 // pred_check_branch
        %3918 = sbr.rel (%p3916) target = $region116
      $region115: #{_forward_stack.1} parent=107 // pred_region
        %p3919 = scmp.lt.s32.totalorder %s33, 1
        %s3920 = scalar_select %p3919, %s33, 1
        %s3921 = smul.addr %s3920, 3
        %s3922 = smul.addr %s3921, 8
        %s3923 = scalar_lea.vmem %s19, %s3922
      $region116: #{_forward_stack.1} parent=107 // pred_fallthru
        _
      // Predicated region
      $region117: #{_forward_stack.1} parent=107 // pred_check
        %p3924 = pneg %p491
      $region118: #{_forward_stack.1} parent=107 // pred_check_branch
        %3926 = sbr.rel (%p3924) target = $region120
      $region119: #{_forward_stack.1} parent=107 // pred_region
        %p3927 = scmp.lt.s32.totalorder %s33, 1
        %s3928 = scalar_select %p3927, %s33, 1
        %s3929 = smul.addr %s3928, 3
        %s3930 = smul.addr %s3929, 8
        %s3931 = scalar_lea.vmem %s20, %s3930
      $region120: #{_forward_stack.1} parent=107 // pred_fallthru
        _
    $region108: #{_forward_stack.1} parent=5 // pred_fallthru
      _
  $region6: #{_forward_stack.1} parent=0 // loop_footer
    %s31 = sadd.s32 1, %s27
  $region7: #{_forward_stack.1} parent=0 // loop_footer_branch
    %26 = sbr.rel target = $region3
  $region8: #{_forward_stack.1} parent=0 // loop_exit
    _

</llo_original>
